<compile_context>
chip_gen: v7x
topology: tpu7x:2x2x1
jax: 0.10.0
libtpu: 0.0.40
codegen_flags: <defaults>
</compile_context>

<pallas_src>
import math

import jax
import jax.numpy as jnp
from jax.experimental import pallas as pl
from jax.experimental.pallas import tpu as pltpu

# ----------------------------- configs (small, synthetic) -----------------------------
B = 2                 # batch
C = 3                 # image channels (NCHW)
IMG = 16              # spatial size
PATCH = 4             # patchify-conv kernel = stride
HP = IMG // PATCH     # latent grid
T = HP * HP           # num_image_tokens = 16
D = 32                # hidden / codebook dim
K = 32                # num_codebook_vectors
MASK_TOKEN_ID = K     # = num_codebook_vectors
VOCAB = K + 1         # token-embedding vocabulary (codebook + mask token)
VOCAB_PAD = 40        # padded to a sublane multiple; rows >= VOCAB are zero / never hit
NHEAD = 4
DH = D // NHEAD
MLP = 4 * D
NLAYERS = 2
KIN = C * PATCH * PATCH
N = B * T             # batch folded into matmul rows
HEAD_PAD = 128        # lane-dense logits head; real logits are [..., :K]
CHOICE_TEMPERATURE = 4.5                      # unused by forward(), kept for fidelity
GAMMA = lambda r: math.cos(r * math.pi / 2)   # cosine schedule (unused by forward())

VMEM_BUDGET = 8 * 1024 * 1024  # weights + activations total well under 1 MiB


# ----------------------------- the fused Pallas kernel -----------------------------

def _maskgit_fused_kernel(p_ref, mask_ref,
                          encw_ref, encb_ref, cb_ref, cbsq_ref,
                          tok_ref, pos_ref,
                          ln1g_ref, ln1b_ref, ln2g_ref, ln2b_ref,
                          wqkv_ref, bqkv_ref, wo_ref, bo_ref,
                          w1_ref, b1_ref, w2_ref, b2_ref,
                          lnfg_ref, lnfb_ref, wh_ref, bh_ref,
                          zidx_ref, logit_ref):
    """Whole MaskGit forward for all batch elements, fully resident in VMEM/vregs.

    encode (patchify linear) -> VQ argmin -> mask -> embed -> NLAYERS x
    (LN, MHSA, proj, residual, LN, MLP, residual) -> final LN -> padded logits head.
    """
    # ---------- VQGAN encode (patchify linear) + vector quantization ----------
    z_e = jnp.dot(p_ref[...], encw_ref[...],
                  preferred_element_type=jnp.float32) + encb_ref[...]        # (N, D)
    # dist[n, k] = ||cb_k||^2 - 2 z_n . cb_k   (the ||z_n||^2 term is constant per row
    # and does not affect the argmin over k).
    zcb = jax.lax.dot_general(z_e, cb_ref[...], (((1,), (1,)), ((), ())),
                              preferred_element_type=jnp.float32)            # (N, K)
    dist = cbsq_ref[...] - 2.0 * zcb                                         # (N, K)
    min_d = jnp.min(dist, axis=-1, keepdims=True)                            # (N, 1)
    iota_k = jax.lax.broadcasted_iota(jnp.int32, dist.shape, 1)
    idx = jnp.min(jnp.where(dist <= min_d, iota_k, K),
                  axis=-1, keepdims=True)                                    # (N, 1) int32
    zidx_ref[...] = idx

    # ---------- Bernoulli(0.5) masking + token / positional embedding ----------
    masked = jnp.where(mask_ref[...] != 0, MASK_TOKEN_ID, idx)               # (N, 1)
    iota_v = jax.lax.broadcasted_iota(jnp.int32, (N, VOCAB_PAD), 1)
    onehot = (iota_v == masked).astype(jnp.bfloat16)                         # (N, Vp)
    pos = jnp.concatenate([pos_ref[...]] * B, axis=0)                        # (N, D)
    h = jnp.dot(onehot, tok_ref[...],
                preferred_element_type=jnp.float32) + pos                    # (N, D) f32

    def layer_norm(x, g, bb, eps=1e-5):
        mean = jnp.mean(x, axis=-1, keepdims=True)
        var = jnp.mean((x - mean) ** 2, axis=-1, keepdims=True)
        return (x - mean) * jax.lax.rsqrt(var + eps) * g + bb

    def gelu(y):
        # TODO(synk): PyTorch nn.GELU default is erf-exact; tanh approximation is used
        # here for robust TPU (EUP) lowering.
        return 0.5 * y * (1.0 + jnp.tanh(0.7978845608028654
                                         * (y + 0.044715 * y * y * y)))

    scale = 1.0 / math.sqrt(DH)
    for l in range(NLAYERS):                       # static unroll (NLAYERS = 2)
        # -------- multi-head self-attention --------
        hn = layer_norm(h, ln1g_ref[l], ln1b_ref[l])
        qkv = jnp.dot(hn.astype(jnp.bfloat16), wqkv_ref[l],
                      preferred_element_type=jnp.float32) + bqkv_ref[l]      # (N, 3D) f32
        heads = []
        for hd in range(NHEAD):                    # static unroll; each dot is B-batched
            qh = qkv[:, hd * DH:(hd + 1) * DH].reshape(B, T, DH)
            kh = qkv[:, D + hd * DH:D + (hd + 1) * DH].reshape(B, T, DH)
            vh = qkv[:, 2 * D + hd * DH:2 * D + (hd + 1) * DH].reshape(B, T, DH)
            s = jnp.einsum('bqd,bkd->bqk', qh, kh,
                           preferred_element_type=jnp.float32) * scale       # (B, T, T)
            s = s - jnp.max(s, axis=-1, keepdims=True)
            pr = jnp.exp(s)
            pr = pr * pl.reciprocal(jnp.sum(pr, axis=-1, keepdims=True), approx=True)
            oh = jnp.einsum('bqk,bkd->bqd', pr, vh,
                            preferred_element_type=jnp.float32)              # (B, T, DH)
            heads.append(oh.reshape(N, DH))
        attn = jnp.concatenate(heads, axis=-1)                               # (N, D)
        h = h + jnp.dot(attn.astype(jnp.bfloat16), wo_ref[l],
                        preferred_element_type=jnp.float32) + bo_ref[l]
        # -------- MLP --------
        hn = layer_norm(h, ln2g_ref[l], ln2b_ref[l])
        m = gelu(jnp.dot(hn.astype(jnp.bfloat16), w1_ref[l],
                         preferred_element_type=jnp.float32) + b1_ref[l])
        h = h + jnp.dot(m.astype(jnp.bfloat16), w2_ref[l],
                        preferred_element_type=jnp.float32) + b2_ref[l]

    # ---------- final LN + lane-dense (padded to 128 columns) logits head ----------
    h = layer_norm(h, lnfg_ref[...], lnfb_ref[...])
    logit_ref[...] = jnp.dot(h.astype(jnp.bfloat16), wh_ref[...],
                             preferred_element_type=jnp.float32) + bh_ref[...]


# ----------------------------- parameters (synthetic) -----------------------------

def init_params(key):
    ks = jax.random.split(key, 12)
    it = iter(ks)
    s = 0.02
    p = {}
    # "VQGAN" patchify encoder: Conv2d(C, D, kernel=PATCH, stride=PATCH) flattened.
    p["enc_w"] = s * jax.random.normal(next(it), (KIN, D), jnp.float32)
    p["enc_b"] = jnp.zeros((1, D), jnp.float32)
    codebook = jax.random.uniform(next(it), (K, D), jnp.float32, -1.0 / K, 1.0 / K)
    p["codebook"] = codebook
    p["cb_sq"] = jnp.sum(codebook * codebook, axis=1)[None, :]            # (1, K)
    # Bidirectional transformer (layer-stacked weights; matmul weights in bf16).
    tok = s * jax.random.normal(next(it), (VOCAB, D), jnp.float32)
    p["tok_emb"] = (jnp.zeros((VOCAB_PAD, D), jnp.float32)
                    .at[:VOCAB].set(tok).astype(jnp.bfloat16))
    p["pos_emb"] = s * jax.random.normal(next(it), (T, D), jnp.float32)
    p["ln1_g"] = jnp.ones((NLAYERS, 1, D), jnp.float32)
    p["ln1_b"] = jnp.zeros((NLAYERS, 1, D), jnp.float32)
    p["ln2_g"] = jnp.ones((NLAYERS, 1, D), jnp.float32)
    p["ln2_b"] = jnp.zeros((NLAYERS, 1, D), jnp.float32)
    p["w_qkv"] = (s * jax.random.normal(next(it), (NLAYERS, D, 3 * D),
                                        jnp.float32)).astype(jnp.bfloat16)
    p["b_qkv"] = jnp.zeros((NLAYERS, 1, 3 * D), jnp.float32)
    p["w_o"] = (s * jax.random.normal(next(it), (NLAYERS, D, D),
                                      jnp.float32)).astype(jnp.bfloat16)
    p["b_o"] = jnp.zeros((NLAYERS, 1, D), jnp.float32)
    p["w1"] = (s * jax.random.normal(next(it), (NLAYERS, D, MLP),
                                     jnp.float32)).astype(jnp.bfloat16)
    p["b1"] = jnp.zeros((NLAYERS, 1, MLP), jnp.float32)
    p["w2"] = (s * jax.random.normal(next(it), (NLAYERS, MLP, D),
                                     jnp.float32)).astype(jnp.bfloat16)
    p["b2"] = jnp.zeros((NLAYERS, 1, D), jnp.float32)
    p["lnf_g"] = jnp.ones((1, D), jnp.float32)
    p["lnf_b"] = jnp.zeros((1, D), jnp.float32)
    wh = s * jax.random.normal(next(it), (D, K), jnp.float32)
    p["w_head"] = (jnp.zeros((D, HEAD_PAD), jnp.float32)
                   .at[:, :K].set(wh).astype(jnp.bfloat16))                # lane-dense head
    p["b_head"] = jnp.zeros((1, HEAD_PAD), jnp.float32)
    return p


# ----------------------------- forward wrapper -----------------------------

def maskgit_forward(x, params, mask_key):
    """MaskGit.forward: returns (logits, z_idx) from one fused pallas_call."""
    patches = (x.reshape(B, C, HP, PATCH, HP, PATCH)
                .transpose(0, 2, 4, 1, 3, 5)
                .reshape(N, KIN))                                          # (B*T, C*p*p)
    # Bernoulli(0.5) mask (same RNG stream as before); applied inside the kernel.
    mask = jax.random.bernoulli(mask_key, 0.5, (B, T)).astype(jnp.int32).reshape(N, 1)

    def full(shape):
        return pl.BlockSpec(shape, lambda i, _n=len(shape): (0,) * _n)

    in_specs = [
        full((N, KIN)), full((N, 1)),                            # patches, mask
        full((KIN, D)), full((1, D)), full((K, D)), full((1, K)),  # enc w/b, codebook, ||cb||^2
        full((VOCAB_PAD, D)), full((T, D)),                      # tok_emb, pos_emb
        full((NLAYERS, 1, D)), full((NLAYERS, 1, D)),            # ln1 g/b
        full((NLAYERS, 1, D)), full((NLAYERS, 1, D)),            # ln2 g/b
        full((NLAYERS, D, 3 * D)), full((NLAYERS, 1, 3 * D)),    # qkv w/b
        full((NLAYERS, D, D)), full((NLAYERS, 1, D)),            # proj w/b
        full((NLAYERS, D, MLP)), full((NLAYERS, 1, MLP)),        # mlp1 w/b
        full((NLAYERS, MLP, D)), full((NLAYERS, 1, D)),          # mlp2 w/b
        full((1, D)), full((1, D)),                              # final LN g/b
        full((D, HEAD_PAD)), full((1, HEAD_PAD)),                # padded head w/b
    ]
    z_col, logits_pad = pl.pallas_call(
        _maskgit_fused_kernel,
        out_shape=(jax.ShapeDtypeStruct((N, 1), jnp.int32),
                   jax.ShapeDtypeStruct((N, HEAD_PAD), jnp.float32)),
        grid=(1,),
        in_specs=in_specs,
        out_specs=(full((N, 1)), full((N, HEAD_PAD))),
        compiler_params=pltpu.CompilerParams(
            dimension_semantics=("arbitrary",),
            vmem_limit_bytes=VMEM_BUDGET),
    )(patches, mask,
      params["enc_w"], params["enc_b"], params["codebook"], params["cb_sq"],
      params["tok_emb"], params["pos_emb"],
      params["ln1_g"], params["ln1_b"], params["ln2_g"], params["ln2_b"],
      params["w_qkv"], params["b_qkv"], params["w_o"], params["b_o"],
      params["w1"], params["b1"], params["w2"], params["b2"],
      params["lnf_g"], params["lnf_b"], params["w_head"], params["b_head"])

    z_idx = z_col.reshape(B, T)                                  # (B, T) int32
    logits = logits_pad.reshape(B, T, HEAD_PAD)[:, :, :K]        # slice off lane padding
    return logits, z_idx


# ----------------------------- main -----------------------------

if __name__ == "__main__":
    key = jax.random.PRNGKey(0)
    k_param, k_x, k_mask = jax.random.split(key, 3)
    params = init_params(k_param)
    x = jax.random.normal(k_x, (B, C, IMG, IMG), jnp.float32)    # NCHW image

    fwd = jax.jit(lambda xx: maskgit_forward(xx, params, k_mask))
    logits, z_idx = fwd(x)
    jax.block_until_ready((logits, z_idx))

    assert logits.shape == (B, T, K), logits.shape
    assert z_idx.shape == (B, T), z_idx.shape
    assert logits.dtype == jnp.float32
    assert z_idx.dtype == jnp.int32
    assert bool(jnp.all(jnp.isfinite(logits)))
    assert bool(jnp.all((z_idx >= 0) & (z_idx < K)))
    print("KERNEL_OK")
</pallas_src>

<mosaic_0001>
module attributes {stable_mosaic.version = 11 : i64} {
  func.func @_maskgit_fused_kernel(%arg0: i32, %arg1: memref<32x48xf32, #tpu.memory_space<vmem>>, %arg2: memref<32x1xi32, #tpu.memory_space<vmem>>, %arg3: memref<48x32xf32, #tpu.memory_space<vmem>>, %arg4: memref<1x32xf32, #tpu.memory_space<vmem>>, %arg5: memref<32x32xf32, #tpu.memory_space<vmem>>, %arg6: memref<1x32xf32, #tpu.memory_space<vmem>>, %arg7: memref<40x32xbf16, #tpu.memory_space<vmem>>, %arg8: memref<16x32xf32, #tpu.memory_space<vmem>>, %arg9: memref<2x1x32xf32, #tpu.memory_space<vmem>>, %arg10: memref<2x1x32xf32, #tpu.memory_space<vmem>>, %arg11: memref<2x1x32xf32, #tpu.memory_space<vmem>>, %arg12: memref<2x1x32xf32, #tpu.memory_space<vmem>>, %arg13: memref<2x32x96xbf16, #tpu.memory_space<vmem>>, %arg14: memref<2x1x96xf32, #tpu.memory_space<vmem>>, %arg15: memref<2x32x32xbf16, #tpu.memory_space<vmem>>, %arg16: memref<2x1x32xf32, #tpu.memory_space<vmem>>, %arg17: memref<2x32x128xbf16, #tpu.memory_space<vmem>>, %arg18: memref<2x1x128xf32, #tpu.memory_space<vmem>>, %arg19: memref<2x128x32xbf16, #tpu.memory_space<vmem>>, %arg20: memref<2x1x32xf32, #tpu.memory_space<vmem>>, %arg21: memref<1x32xf32, #tpu.memory_space<vmem>>, %arg22: memref<1x32xf32, #tpu.memory_space<vmem>>, %arg23: memref<32x128xbf16, #tpu.memory_space<vmem>>, %arg24: memref<1x128xf32, #tpu.memory_space<vmem>>, %arg25: memref<32x1xi32, #tpu.memory_space<vmem>>, %arg26: memref<32x128xf32, #tpu.memory_space<vmem>>) attributes {dimension_semantics = [#tpu.dimension_semantics<arbitrary>], iteration_bounds = array<i64: 1>, scalar_prefetch = 0 : i64, scratch_operands = 0 : i64, tpu.core_type = #tpu.core_type<tc>, window_params = [{pipeline_mode = #tpu.pipeline_mode<synchronous>, transform_indices = @transform_0, window_bounds = array<i64: 32, 48>}, {pipeline_mode = #tpu.pipeline_mode<synchronous>, transform_indices = @transform_1, window_bounds = array<i64: 32, 1>}, {pipeline_mode = #tpu.pipeline_mode<synchronous>, transform_indices = @transform_2, window_bounds = array<i64: 48, 32>}, {pipeline_mode = #tpu.pipeline_mode<synchronous>, transform_indices = @transform_3, window_bounds = array<i64: 1, 32>}, {pipeline_mode = #tpu.pipeline_mode<synchronous>, transform_indices = @transform_4, window_bounds = array<i64: 32, 32>}, {pipeline_mode = #tpu.pipeline_mode<synchronous>, transform_indices = @transform_5, window_bounds = array<i64: 1, 32>}, {pipeline_mode = #tpu.pipeline_mode<synchronous>, transform_indices = @transform_6, window_bounds = array<i64: 40, 32>}, {pipeline_mode = #tpu.pipeline_mode<synchronous>, transform_indices = @transform_7, window_bounds = array<i64: 16, 32>}, {pipeline_mode = #tpu.pipeline_mode<synchronous>, transform_indices = @transform_8, window_bounds = array<i64: 2, 1, 32>}, {pipeline_mode = #tpu.pipeline_mode<synchronous>, transform_indices = @transform_9, window_bounds = array<i64: 2, 1, 32>}, {pipeline_mode = #tpu.pipeline_mode<synchronous>, transform_indices = @transform_10, window_bounds = array<i64: 2, 1, 32>}, {pipeline_mode = #tpu.pipeline_mode<synchronous>, transform_indices = @transform_11, window_bounds = array<i64: 2, 1, 32>}, {pipeline_mode = #tpu.pipeline_mode<synchronous>, transform_indices = @transform_12, window_bounds = array<i64: 2, 32, 96>}, {pipeline_mode = #tpu.pipeline_mode<synchronous>, transform_indices = @transform_13, window_bounds = array<i64: 2, 1, 96>}, {pipeline_mode = #tpu.pipeline_mode<synchronous>, transform_indices = @transform_14, window_bounds = array<i64: 2, 32, 32>}, {pipeline_mode = #tpu.pipeline_mode<synchronous>, transform_indices = @transform_15, window_bounds = array<i64: 2, 1, 32>}, {pipeline_mode = #tpu.pipeline_mode<synchronous>, transform_indices = @transform_16, window_bounds = array<i64: 2, 32, 128>}, {pipeline_mode = #tpu.pipeline_mode<synchronous>, transform_indices = @transform_17, window_bounds = array<i64: 2, 1, 128>}, {pipeline_mode = #tpu.pipeline_mode<synchronous>, transform_indices = @transform_18, window_bounds = array<i64: 2, 128, 32>}, {pipeline_mode = #tpu.pipeline_mode<synchronous>, transform_indices = @transform_19, window_bounds = array<i64: 2, 1, 32>}, {pipeline_mode = #tpu.pipeline_mode<synchronous>, transform_indices = @transform_20, window_bounds = array<i64: 1, 32>}, {pipeline_mode = #tpu.pipeline_mode<synchronous>, transform_indices = @transform_21, window_bounds = array<i64: 1, 32>}, {pipeline_mode = #tpu.pipeline_mode<synchronous>, transform_indices = @transform_22, window_bounds = array<i64: 32, 128>}, {pipeline_mode = #tpu.pipeline_mode<synchronous>, transform_indices = @transform_23, window_bounds = array<i64: 1, 128>}, {pipeline_mode = #tpu.pipeline_mode<synchronous>, transform_indices = @transform_24, window_bounds = array<i64: 32, 1>}, {pipeline_mode = #tpu.pipeline_mode<synchronous>, transform_indices = @transform_25, window_bounds = array<i64: 32, 128>}]} {
    %c0 = arith.constant 0 : index
    %c0_0 = arith.constant 0 : index
    %0 = vector.load %arg1[%c0, %c0_0] : memref<32x48xf32, #tpu.memory_space<vmem>>, vector<32x48xf32>
    %c0_1 = arith.constant 0 : index
    %c0_2 = arith.constant 0 : index
    %1 = vector.load %arg3[%c0_1, %c0_2] : memref<48x32xf32, #tpu.memory_space<vmem>>, vector<48x32xf32>
    %cst = arith.constant dense<0.000000e+00> : vector<32x32xf32>
    %2 = tpu.matmul %0, %1, %cst {dimension_numbers = #tpu.dot_dimension_numbers<[1], [0], [0], [1], [0, 0, 1, 1], [], []>} : vector<32x48xf32>, vector<48x32xf32>, vector<32x32xf32> -> vector<32x32xf32>
    %c0_3 = arith.constant 0 : index
    %c0_4 = arith.constant 0 : index
    %3 = vector.load %arg4[%c0_3, %c0_4] : memref<1x32xf32, #tpu.memory_space<vmem>>, vector<1x32xf32>
    %4 = vector.broadcast %3 : vector<1x32xf32> to vector<32x32xf32>
    %5 = arith.addf %2, %4 : vector<32x32xf32>
    %c0_5 = arith.constant 0 : index
    %c0_6 = arith.constant 0 : index
    %6 = vector.load %arg5[%c0_5, %c0_6] : memref<32x32xf32, #tpu.memory_space<vmem>>, vector<32x32xf32>
    %cst_7 = arith.constant dense<0.000000e+00> : vector<32x32xf32>
    %7 = tpu.matmul %5, %6, %cst_7 {dimension_numbers = #tpu.dot_dimension_numbers<[1], [1], [0], [0], [0, 0, 1, 0], [], []>} : vector<32x32xf32>, vector<32x32xf32>, vector<32x32xf32> -> vector<32x32xf32>
    %c0_8 = arith.constant 0 : index
    %c0_9 = arith.constant 0 : index
    %8 = vector.load %arg6[%c0_8, %c0_9] : memref<1x32xf32, #tpu.memory_space<vmem>>, vector<1x32xf32>
    %cst_10 = arith.constant 2.000000e+00 : f32
    %9 = vector.broadcast %cst_10 : f32 to vector<32x32xf32>
    %10 = arith.mulf %9, %7 : vector<32x32xf32>
    %11 = vector.broadcast %8 : vector<1x32xf32> to vector<32x32xf32>
    %12 = arith.subf %11, %10 : vector<32x32xf32>
    %cst_11 = arith.constant dense<0x7F800000> : vector<32xf32>
    %13 = vector.multi_reduction <minimumf>, %12, %cst_11 [1] : vector<32x32xf32> to vector<32xf32>
    %14 = vector.shape_cast %13 : vector<32xf32> to vector<32x1xf32>
    %15 = tpu.iota {dimensions = array<i32: 1>} : vector<32x32xi32>
    %16 = vector.broadcast %14 : vector<32x1xf32> to vector<32x32xf32>
    %17 = arith.cmpf ole, %12, %16 : vector<32x32xf32>
    %c32_i32 = arith.constant 32 : i32
    %18 = vector.broadcast %c32_i32 : i32 to vector<32x32xi32>
    %19 = arith.select %17, %15, %18 : vector<32x32xi1>, vector<32x32xi32>
    %cst_12 = arith.constant dense<2147483647> : vector<32xi32>
    %20 = vector.multi_reduction <minsi>, %19, %cst_12 [1] : vector<32x32xi32> to vector<32xi32>
    %21 = vector.shape_cast %20 : vector<32xi32> to vector<32x1xi32>
    %c0_13 = arith.constant 0 : index
    %c0_14 = arith.constant 0 : index
    %22 = vector.load %arg25[%c0_13, %c0_14] : memref<32x1xi32, #tpu.memory_space<vmem>>, vector<32x1xi32>
    tpu.vector_store %arg25[%c0_13, %c0_14], %21 {strides = array<i32>} : memref<32x1xi32, #tpu.memory_space<vmem>>, vector<32x1xi32>,
    %c0_15 = arith.constant 0 : index
    %c0_16 = arith.constant 0 : index
    %23 = vector.load %arg2[%c0_15, %c0_16] : memref<32x1xi32, #tpu.memory_space<vmem>>, vector<32x1xi32>
    %c0_i32 = arith.constant 0 : i32
    %24 = vector.broadcast %c0_i32 : i32 to vector<32x1xi32>
    %25 = arith.cmpi ne, %23, %24 : vector<32x1xi32>
    %c32_i32_17 = arith.constant 32 : i32
    %26 = vector.broadcast %c32_i32_17 : i32 to vector<32x1xi32>
    %27 = arith.select %25, %26, %21 : vector<32x1xi1>, vector<32x1xi32>
    %28 = tpu.iota {dimensions = array<i32: 1>} : vector<32x40xi32>
    %29 = vector.broadcast %27 : vector<32x1xi32> to vector<32x40xi32>
    %30 = arith.cmpi eq, %28, %29 : vector<32x40xi32>
    %31 = arith.extui %30 : vector<32x40xi1> to vector<32x40xi32>
    %32 = arith.sitofp %31 : vector<32x40xi32> to vector<32x40xf32>
    %33 = arith.truncf %32 : vector<32x40xf32> to vector<32x40xbf16>
    %c0_18 = arith.constant 0 : index
    %c0_19 = arith.constant 0 : index
    %34 = vector.load %arg8[%c0_18, %c0_19] : memref<16x32xf32, #tpu.memory_space<vmem>>, vector<16x32xf32>
    %35 = tpu.concatenate %34, %34 in 0 : vector<16x32xf32>, vector<16x32xf32> -> vector<32x32xf32>
    %c0_20 = arith.constant 0 : index
    %c0_21 = arith.constant 0 : index
    %36 = vector.load %arg7[%c0_20, %c0_21] : memref<40x32xbf16, #tpu.memory_space<vmem>>, vector<40x32xbf16>
    %cst_22 = arith.constant dense<0.000000e+00> : vector<32x32xf32>
    %37 = tpu.matmul %33, %36, %cst_22 {dimension_numbers = #tpu.dot_dimension_numbers<[1], [0], [0], [1], [0, 0, 1, 1], [], []>} : vector<32x40xbf16>, vector<40x32xbf16>, vector<32x32xf32> -> vector<32x32xf32>
    %38 = arith.addf %37, %35 : vector<32x32xf32>
    %c0_23 = arith.constant 0 : index
    %c0_24 = arith.constant 0 : index
    %c0_25 = arith.constant 0 : index
    %39 = vector.load %arg9[%c0_23, %c0_24, %c0_25] : memref<2x1x32xf32, #tpu.memory_space<vmem>>, vector<1x1x32xf32>
    %40 = vector.shape_cast %39 : vector<1x1x32xf32> to vector<1x32xf32>
    %c0_26 = arith.constant 0 : index
    %c0_27 = arith.constant 0 : index
    %c0_28 = arith.constant 0 : index
    %41 = vector.load %arg10[%c0_26, %c0_27, %c0_28] : memref<2x1x32xf32, #tpu.memory_space<vmem>>, vector<1x1x32xf32>
    %42 = vector.shape_cast %41 : vector<1x1x32xf32> to vector<1x32xf32>
    %cst_29 = arith.constant dense<0.000000e+00> : vector<32xf32>
    %43 = vector.multi_reduction <add>, %38, %cst_29 [1] : vector<32x32xf32> to vector<32xf32>
    %44 = vector.shape_cast %43 : vector<32xf32> to vector<32x1xf32>
    %cst_30 = arith.constant 3.200000e+01 : f32
    %45 = vector.broadcast %cst_30 : f32 to vector<32x1xf32>
    %46 = arith.divf %44, %45 : vector<32x1xf32>
    %47 = vector.broadcast %46 : vector<32x1xf32> to vector<32x32xf32>
    %48 = arith.subf %38, %47 : vector<32x32xf32>
    %49 = arith.mulf %48, %48 : vector<32x32xf32>
    %cst_31 = arith.constant dense<0.000000e+00> : vector<32xf32>
    %50 = vector.multi_reduction <add>, %49, %cst_31 [1] : vector<32x32xf32> to vector<32xf32>
    %51 = vector.shape_cast %50 : vector<32xf32> to vector<32x1xf32>
    %cst_32 = arith.constant 3.200000e+01 : f32
    %52 = vector.broadcast %cst_32 : f32 to vector<32x1xf32>
    %53 = arith.divf %51, %52 : vector<32x1xf32>
    %54 = vector.broadcast %46 : vector<32x1xf32> to vector<32x32xf32>
    %55 = arith.subf %38, %54 : vector<32x32xf32>
    %cst_33 = arith.constant 9.99999974E-6 : f32
    %56 = vector.broadcast %cst_33 : f32 to vector<32x1xf32>
    %57 = arith.addf %53, %56 : vector<32x1xf32>
    %58 = math.rsqrt %57 : vector<32x1xf32>
    %59 = vector.broadcast %58 : vector<32x1xf32> to vector<32x32xf32>
    %60 = arith.mulf %55, %59 : vector<32x32xf32>
    %61 = vector.broadcast %40 : vector<1x32xf32> to vector<32x32xf32>
    %62 = arith.mulf %60, %61 : vector<32x32xf32>
    %63 = vector.broadcast %42 : vector<1x32xf32> to vector<32x32xf32>
    %64 = arith.addf %62, %63 : vector<32x32xf32>
    %65 = arith.truncf %64 : vector<32x32xf32> to vector<32x32xbf16>
    %c0_34 = arith.constant 0 : index
    %c0_35 = arith.constant 0 : index
    %c0_36 = arith.constant 0 : index
    %66 = vector.load %arg13[%c0_34, %c0_35, %c0_36] : memref<2x32x96xbf16, #tpu.memory_space<vmem>>, vector<1x32x96xbf16>
    %67 = vector.shape_cast %66 : vector<1x32x96xbf16> to vector<32x96xbf16>
    %cst_37 = arith.constant dense<0.000000e+00> : vector<32x96xf32>
    %68 = tpu.matmul %65, %67, %cst_37 {dimension_numbers = #tpu.dot_dimension_numbers<[1], [0], [0], [1], [0, 0, 1, 1], [], []>} : vector<32x32xbf16>, vector<32x96xbf16>, vector<32x96xf32> -> vector<32x96xf32>
    %c0_38 = arith.constant 0 : index
    %c0_39 = arith.constant 0 : index
    %c0_40 = arith.constant 0 : index
    %69 = vector.load %arg14[%c0_38, %c0_39, %c0_40] : memref<2x1x96xf32, #tpu.memory_space<vmem>>, vector<1x1x96xf32>
    %70 = vector.shape_cast %69 : vector<1x1x96xf32> to vector<1x96xf32>
    %71 = vector.broadcast %70 : vector<1x96xf32> to vector<32x96xf32>
    %72 = arith.addf %68, %71 : vector<32x96xf32>
    %73 = vector.extract_strided_slice %72 {offsets = [0, 0], sizes = [32, 8], strides = [1, 1]} : vector<32x96xf32> to vector<32x8xf32>
    %74 = vector.shape_cast %73 : vector<32x8xf32> to vector<2x16x8xf32>
    %75 = vector.extract_strided_slice %72 {offsets = [0, 32], sizes = [32, 8], strides = [1, 1]} : vector<32x96xf32> to vector<32x8xf32>
    %76 = vector.shape_cast %75 : vector<32x8xf32> to vector<2x16x8xf32>
    %77 = vector.extract_strided_slice %72 {offsets = [0, 64], sizes = [32, 8], strides = [1, 1]} : vector<32x96xf32> to vector<32x8xf32>
    %78 = vector.shape_cast %77 : vector<32x8xf32> to vector<2x16x8xf32>
    "tpu.trace_start"() <{level = 10 : i32, message = "bqd,bkd->bqk"}> : () -> ()
    %cst_41 = arith.constant dense<0.000000e+00> : vector<2x16x16xf32>
    %79 = tpu.matmul %74, %76, %cst_41 {dimension_numbers = #tpu.dot_dimension_numbers<[2], [2], [1], [1], [0, 0, 0, 1, 1, 1], [0], [0]>} : vector<2x16x8xf32>, vector<2x16x8xf32>, vector<2x16x16xf32> -> vector<2x16x16xf32>
    "tpu.trace_stop"() : () -> ()
    %cst_42 = arith.constant 0.353553385 : f32
    %80 = vector.broadcast %cst_42 : f32 to vector<2x16x16xf32>
    %81 = arith.mulf %79, %80 : vector<2x16x16xf32>
    %cst_43 = arith.constant dense<0xFF800000> : vector<2x16xf32>
    %82 = vector.multi_reduction <maximumf>, %81, %cst_43 [2] : vector<2x16x16xf32> to vector<2x16xf32>
    %83 = vector.shape_cast %82 : vector<2x16xf32> to vector<2x16x1xf32>
    %84 = vector.broadcast %83 : vector<2x16x1xf32> to vector<2x16x16xf32>
    %85 = arith.subf %81, %84 : vector<2x16x16xf32>
    %86 = math.exp %85 : vector<2x16x16xf32>
    %cst_44 = arith.constant dense<0.000000e+00> : vector<2x16xf32>
    %87 = vector.multi_reduction <add>, %86, %cst_44 [2] : vector<2x16x16xf32> to vector<2x16xf32>
    %88 = vector.shape_cast %87 : vector<2x16xf32> to vector<2x16x1xf32>
    %89 = tpu.reciprocal %88 {approx = true} : vector<2x16x1xf32> -> vector<2x16x1xf32>
    %90 = vector.broadcast %89 : vector<2x16x1xf32> to vector<2x16x16xf32>
    %91 = arith.mulf %86, %90 : vector<2x16x16xf32>
    "tpu.trace_start"() <{level = 10 : i32, message = "bqk,bkd->bqd"}> : () -> ()
    %cst_45 = arith.constant dense<0.000000e+00> : vector<2x16x8xf32>
    %92 = tpu.matmul %91, %78, %cst_45 {dimension_numbers = #tpu.dot_dimension_numbers<[2], [1], [1], [2], [0, 0, 0, 1, 1, 2], [0], [0]>} : vector<2x16x16xf32>, vector<2x16x8xf32>, vector<2x16x8xf32> -> vector<2x16x8xf32>
    "tpu.trace_stop"() : () -> ()
    %93 = vector.shape_cast %92 : vector<2x16x8xf32> to vector<32x8xf32>
    %94 = vector.extract_strided_slice %72 {offsets = [0, 8], sizes = [32, 8], strides = [1, 1]} : vector<32x96xf32> to vector<32x8xf32>
    %95 = vector.shape_cast %94 : vector<32x8xf32> to vector<2x16x8xf32>
    %96 = vector.extract_strided_slice %72 {offsets = [0, 40], sizes = [32, 8], strides = [1, 1]} : vector<32x96xf32> to vector<32x8xf32>
    %97 = vector.shape_cast %96 : vector<32x8xf32> to vector<2x16x8xf32>
    %98 = vector.extract_strided_slice %72 {offsets = [0, 72], sizes = [32, 8], strides = [1, 1]} : vector<32x96xf32> to vector<32x8xf32>
    %99 = vector.shape_cast %98 : vector<32x8xf32> to vector<2x16x8xf32>
    "tpu.trace_start"() <{level = 10 : i32, message = "bqd,bkd->bqk"}> : () -> ()
    %cst_46 = arith.constant dense<0.000000e+00> : vector<2x16x16xf32>
    %100 = tpu.matmul %95, %97, %cst_46 {dimension_numbers = #tpu.dot_dimension_numbers<[2], [2], [1], [1], [0, 0, 0, 1, 1, 1], [0], [0]>} : vector<2x16x8xf32>, vector<2x16x8xf32>, vector<2x16x16xf32> -> vector<2x16x16xf32>
    "tpu.trace_stop"() : () -> ()
    %cst_47 = arith.constant 0.353553385 : f32
    %101 = vector.broadcast %cst_47 : f32 to vector<2x16x16xf32>
    %102 = arith.mulf %100, %101 : vector<2x16x16xf32>
    %cst_48 = arith.constant dense<0xFF800000> : vector<2x16xf32>
    %103 = vector.multi_reduction <maximumf>, %102, %cst_48 [2] : vector<2x16x16xf32> to vector<2x16xf32>
    %104 = vector.shape_cast %103 : vector<2x16xf32> to vector<2x16x1xf32>
    %105 = vector.broadcast %104 : vector<2x16x1xf32> to vector<2x16x16xf32>
    %106 = arith.subf %102, %105 : vector<2x16x16xf32>
    %107 = math.exp %106 : vector<2x16x16xf32>
    %cst_49 = arith.constant dense<0.000000e+00> : vector<2x16xf32>
    %108 = vector.multi_reduction <add>, %107, %cst_49 [2] : vector<2x16x16xf32> to vector<2x16xf32>
    %109 = vector.shape_cast %108 : vector<2x16xf32> to vector<2x16x1xf32>
    %110 = tpu.reciprocal %109 {approx = true} : vector<2x16x1xf32> -> vector<2x16x1xf32>
    %111 = vector.broadcast %110 : vector<2x16x1xf32> to vector<2x16x16xf32>
    %112 = arith.mulf %107, %111 : vector<2x16x16xf32>
    "tpu.trace_start"() <{level = 10 : i32, message = "bqk,bkd->bqd"}> : () -> ()
    %cst_50 = arith.constant dense<0.000000e+00> : vector<2x16x8xf32>
    %113 = tpu.matmul %112, %99, %cst_50 {dimension_numbers = #tpu.dot_dimension_numbers<[2], [1], [1], [2], [0, 0, 0, 1, 1, 2], [0], [0]>} : vector<2x16x16xf32>, vector<2x16x8xf32>, vector<2x16x8xf32> -> vector<2x16x8xf32>
    "tpu.trace_stop"() : () -> ()
    %114 = vector.shape_cast %113 : vector<2x16x8xf32> to vector<32x8xf32>
    %115 = vector.extract_strided_slice %72 {offsets = [0, 16], sizes = [32, 8], strides = [1, 1]} : vector<32x96xf32> to vector<32x8xf32>
    %116 = vector.shape_cast %115 : vector<32x8xf32> to vector<2x16x8xf32>
    %117 = vector.extract_strided_slice %72 {offsets = [0, 48], sizes = [32, 8], strides = [1, 1]} : vector<32x96xf32> to vector<32x8xf32>
    %118 = vector.shape_cast %117 : vector<32x8xf32> to vector<2x16x8xf32>
    %119 = vector.extract_strided_slice %72 {offsets = [0, 80], sizes = [32, 8], strides = [1, 1]} : vector<32x96xf32> to vector<32x8xf32>
    %120 = vector.shape_cast %119 : vector<32x8xf32> to vector<2x16x8xf32>
    "tpu.trace_start"() <{level = 10 : i32, message = "bqd,bkd->bqk"}> : () -> ()
    %cst_51 = arith.constant dense<0.000000e+00> : vector<2x16x16xf32>
    %121 = tpu.matmul %116, %118, %cst_51 {dimension_numbers = #tpu.dot_dimension_numbers<[2], [2], [1], [1], [0, 0, 0, 1, 1, 1], [0], [0]>} : vector<2x16x8xf32>, vector<2x16x8xf32>, vector<2x16x16xf32> -> vector<2x16x16xf32>
    "tpu.trace_stop"() : () -> ()
    %cst_52 = arith.constant 0.353553385 : f32
    %122 = vector.broadcast %cst_52 : f32 to vector<2x16x16xf32>
    %123 = arith.mulf %121, %122 : vector<2x16x16xf32>
    %cst_53 = arith.constant dense<0xFF800000> : vector<2x16xf32>
    %124 = vector.multi_reduction <maximumf>, %123, %cst_53 [2] : vector<2x16x16xf32> to vector<2x16xf32>
    %125 = vector.shape_cast %124 : vector<2x16xf32> to vector<2x16x1xf32>
    %126 = vector.broadcast %125 : vector<2x16x1xf32> to vector<2x16x16xf32>
    %127 = arith.subf %123, %126 : vector<2x16x16xf32>
    %128 = math.exp %127 : vector<2x16x16xf32>
    %cst_54 = arith.constant dense<0.000000e+00> : vector<2x16xf32>
    %129 = vector.multi_reduction <add>, %128, %cst_54 [2] : vector<2x16x16xf32> to vector<2x16xf32>
    %130 = vector.shape_cast %129 : vector<2x16xf32> to vector<2x16x1xf32>
    %131 = tpu.reciprocal %130 {approx = true} : vector<2x16x1xf32> -> vector<2x16x1xf32>
    %132 = vector.broadcast %131 : vector<2x16x1xf32> to vector<2x16x16xf32>
    %133 = arith.mulf %128, %132 : vector<2x16x16xf32>
    "tpu.trace_start"() <{level = 10 : i32, message = "bqk,bkd->bqd"}> : () -> ()
    %cst_55 = arith.constant dense<0.000000e+00> : vector<2x16x8xf32>
    %134 = tpu.matmul %133, %120, %cst_55 {dimension_numbers = #tpu.dot_dimension_numbers<[2], [1], [1], [2], [0, 0, 0, 1, 1, 2], [0], [0]>} : vector<2x16x16xf32>, vector<2x16x8xf32>, vector<2x16x8xf32> -> vector<2x16x8xf32>
    "tpu.trace_stop"() : () -> ()
    %135 = vector.shape_cast %134 : vector<2x16x8xf32> to vector<32x8xf32>
    %136 = vector.extract_strided_slice %72 {offsets = [0, 24], sizes = [32, 8], strides = [1, 1]} : vector<32x96xf32> to vector<32x8xf32>
    %137 = vector.shape_cast %136 : vector<32x8xf32> to vector<2x16x8xf32>
    %138 = vector.extract_strided_slice %72 {offsets = [0, 56], sizes = [32, 8], strides = [1, 1]} : vector<32x96xf32> to vector<32x8xf32>
    %139 = vector.shape_cast %138 : vector<32x8xf32> to vector<2x16x8xf32>
    %140 = vector.extract_strided_slice %72 {offsets = [0, 88], sizes = [32, 8], strides = [1, 1]} : vector<32x96xf32> to vector<32x8xf32>
    %141 = vector.shape_cast %140 : vector<32x8xf32> to vector<2x16x8xf32>
    "tpu.trace_start"() <{level = 10 : i32, message = "bqd,bkd->bqk"}> : () -> ()
    %cst_56 = arith.constant dense<0.000000e+00> : vector<2x16x16xf32>
    %142 = tpu.matmul %137, %139, %cst_56 {dimension_numbers = #tpu.dot_dimension_numbers<[2], [2], [1], [1], [0, 0, 0, 1, 1, 1], [0], [0]>} : vector<2x16x8xf32>, vector<2x16x8xf32>, vector<2x16x16xf32> -> vector<2x16x16xf32>
    "tpu.trace_stop"() : () -> ()
    %cst_57 = arith.constant 0.353553385 : f32
    %143 = vector.broadcast %cst_57 : f32 to vector<2x16x16xf32>
    %144 = arith.mulf %142, %143 : vector<2x16x16xf32>
    %cst_58 = arith.constant dense<0xFF800000> : vector<2x16xf32>
    %145 = vector.multi_reduction <maximumf>, %144, %cst_58 [2] : vector<2x16x16xf32> to vector<2x16xf32>
    %146 = vector.shape_cast %145 : vector<2x16xf32> to vector<2x16x1xf32>
    %147 = vector.broadcast %146 : vector<2x16x1xf32> to vector<2x16x16xf32>
    %148 = arith.subf %144, %147 : vector<2x16x16xf32>
    %149 = math.exp %148 : vector<2x16x16xf32>
    %cst_59 = arith.constant dense<0.000000e+00> : vector<2x16xf32>
    %150 = vector.multi_reduction <add>, %149, %cst_59 [2] : vector<2x16x16xf32> to vector<2x16xf32>
    %151 = vector.shape_cast %150 : vector<2x16xf32> to vector<2x16x1xf32>
    %152 = tpu.reciprocal %151 {approx = true} : vector<2x16x1xf32> -> vector<2x16x1xf32>
    %153 = vector.broadcast %152 : vector<2x16x1xf32> to vector<2x16x16xf32>
    %154 = arith.mulf %149, %153 : vector<2x16x16xf32>
    "tpu.trace_start"() <{level = 10 : i32, message = "bqk,bkd->bqd"}> : () -> ()
    %cst_60 = arith.constant dense<0.000000e+00> : vector<2x16x8xf32>
    %155 = tpu.matmul %154, %141, %cst_60 {dimension_numbers = #tpu.dot_dimension_numbers<[2], [1], [1], [2], [0, 0, 0, 1, 1, 2], [0], [0]>} : vector<2x16x16xf32>, vector<2x16x8xf32>, vector<2x16x8xf32> -> vector<2x16x8xf32>
    "tpu.trace_stop"() : () -> ()
    %156 = vector.shape_cast %155 : vector<2x16x8xf32> to vector<32x8xf32>
    %157 = tpu.concatenate %93, %114, %135, %156 in 1 : vector<32x8xf32>, vector<32x8xf32>, vector<32x8xf32>, vector<32x8xf32> -> vector<32x32xf32>
    %158 = arith.truncf %157 : vector<32x32xf32> to vector<32x32xbf16>
    %c0_61 = arith.constant 0 : index
    %c0_62 = arith.constant 0 : index
    %c0_63 = arith.constant 0 : index
    %159 = vector.load %arg15[%c0_61, %c0_62, %c0_63] : memref<2x32x32xbf16, #tpu.memory_space<vmem>>, vector<1x32x32xbf16>
    %160 = vector.shape_cast %159 : vector<1x32x32xbf16> to vector<32x32xbf16>
    %cst_64 = arith.constant dense<0.000000e+00> : vector<32x32xf32>
    %161 = tpu.matmul %158, %160, %cst_64 {dimension_numbers = #tpu.dot_dimension_numbers<[1], [0], [0], [1], [0, 0, 1, 1], [], []>} : vector<32x32xbf16>, vector<32x32xbf16>, vector<32x32xf32> -> vector<32x32xf32>
    %162 = arith.addf %38, %161 : vector<32x32xf32>
    %c0_65 = arith.constant 0 : index
    %c0_66 = arith.constant 0 : index
    %c0_67 = arith.constant 0 : index
    %163 = vector.load %arg16[%c0_65, %c0_66, %c0_67] : memref<2x1x32xf32, #tpu.memory_space<vmem>>, vector<1x1x32xf32>
    %164 = vector.shape_cast %163 : vector<1x1x32xf32> to vector<1x32xf32>
    %165 = vector.broadcast %164 : vector<1x32xf32> to vector<32x32xf32>
    %166 = arith.addf %162, %165 : vector<32x32xf32>
    %c0_68 = arith.constant 0 : index
    %c0_69 = arith.constant 0 : index
    %c0_70 = arith.constant 0 : index
    %167 = vector.load %arg11[%c0_68, %c0_69, %c0_70] : memref<2x1x32xf32, #tpu.memory_space<vmem>>, vector<1x1x32xf32>
    %168 = vector.shape_cast %167 : vector<1x1x32xf32> to vector<1x32xf32>
    %c0_71 = arith.constant 0 : index
    %c0_72 = arith.constant 0 : index
    %c0_73 = arith.constant 0 : index
    %169 = vector.load %arg12[%c0_71, %c0_72, %c0_73] : memref<2x1x32xf32, #tpu.memory_space<vmem>>, vector<1x1x32xf32>
    %170 = vector.shape_cast %169 : vector<1x1x32xf32> to vector<1x32xf32>
    %cst_74 = arith.constant dense<0.000000e+00> : vector<32xf32>
    %171 = vector.multi_reduction <add>, %166, %cst_74 [1] : vector<32x32xf32> to vector<32xf32>
    %172 = vector.shape_cast %171 : vector<32xf32> to vector<32x1xf32>
    %cst_75 = arith.constant 3.200000e+01 : f32
    %173 = vector.broadcast %cst_75 : f32 to vector<32x1xf32>
    %174 = arith.divf %172, %173 : vector<32x1xf32>
    %175 = vector.broadcast %174 : vector<32x1xf32> to vector<32x32xf32>
    %176 = arith.subf %166, %175 : vector<32x32xf32>
    %177 = arith.mulf %176, %176 : vector<32x32xf32>
    %cst_76 = arith.constant dense<0.000000e+00> : vector<32xf32>
    %178 = vector.multi_reduction <add>, %177, %cst_76 [1] : vector<32x32xf32> to vector<32xf32>
    %179 = vector.shape_cast %178 : vector<32xf32> to vector<32x1xf32>
    %cst_77 = arith.constant 3.200000e+01 : f32
    %180 = vector.broadcast %cst_77 : f32 to vector<32x1xf32>
    %181 = arith.divf %179, %180 : vector<32x1xf32>
    %182 = vector.broadcast %174 : vector<32x1xf32> to vector<32x32xf32>
    %183 = arith.subf %166, %182 : vector<32x32xf32>
    %cst_78 = arith.constant 9.99999974E-6 : f32
    %184 = vector.broadcast %cst_78 : f32 to vector<32x1xf32>
    %185 = arith.addf %181, %184 : vector<32x1xf32>
    %186 = math.rsqrt %185 : vector<32x1xf32>
    %187 = vector.broadcast %186 : vector<32x1xf32> to vector<32x32xf32>
    %188 = arith.mulf %183, %187 : vector<32x32xf32>
    %189 = vector.broadcast %168 : vector<1x32xf32> to vector<32x32xf32>
    %190 = arith.mulf %188, %189 : vector<32x32xf32>
    %191 = vector.broadcast %170 : vector<1x32xf32> to vector<32x32xf32>
    %192 = arith.addf %190, %191 : vector<32x32xf32>
    %193 = arith.truncf %192 : vector<32x32xf32> to vector<32x32xbf16>
    %c0_79 = arith.constant 0 : index
    %c0_80 = arith.constant 0 : index
    %c0_81 = arith.constant 0 : index
    %194 = vector.load %arg17[%c0_79, %c0_80, %c0_81] : memref<2x32x128xbf16, #tpu.memory_space<vmem>>, vector<1x32x128xbf16>
    %195 = vector.shape_cast %194 : vector<1x32x128xbf16> to vector<32x128xbf16>
    %cst_82 = arith.constant dense<0.000000e+00> : vector<32x128xf32>
    %196 = tpu.matmul %193, %195, %cst_82 {dimension_numbers = #tpu.dot_dimension_numbers<[1], [0], [0], [1], [0, 0, 1, 1], [], []>} : vector<32x32xbf16>, vector<32x128xbf16>, vector<32x128xf32> -> vector<32x128xf32>
    %c0_83 = arith.constant 0 : index
    %c0_84 = arith.constant 0 : index
    %c0_85 = arith.constant 0 : index
    %197 = vector.load %arg18[%c0_83, %c0_84, %c0_85] : memref<2x1x128xf32, #tpu.memory_space<vmem>>, vector<1x1x128xf32>
    %198 = vector.shape_cast %197 : vector<1x1x128xf32> to vector<1x128xf32>
    %199 = vector.broadcast %198 : vector<1x128xf32> to vector<32x128xf32>
    %200 = arith.addf %196, %199 : vector<32x128xf32>
    %cst_86 = arith.constant 5.000000e-01 : f32
    %201 = vector.broadcast %cst_86 : f32 to vector<32x128xf32>
    %202 = arith.mulf %201, %200 : vector<32x128xf32>
    %cst_87 = arith.constant 4.471500e-02 : f32
    %203 = vector.broadcast %cst_87 : f32 to vector<32x128xf32>
    %204 = arith.mulf %203, %200 : vector<32x128xf32>
    %205 = arith.mulf %204, %200 : vector<32x128xf32>
    %206 = arith.mulf %205, %200 : vector<32x128xf32>
    %207 = arith.addf %200, %206 : vector<32x128xf32>
    %cst_88 = arith.constant 0.797884583 : f32
    %208 = vector.broadcast %cst_88 : f32 to vector<32x128xf32>
    %209 = arith.mulf %208, %207 : vector<32x128xf32>
    %210 = math.tanh %209 : vector<32x128xf32>
    %cst_89 = arith.constant 1.000000e+00 : f32
    %211 = vector.broadcast %cst_89 : f32 to vector<32x128xf32>
    %212 = arith.addf %211, %210 : vector<32x128xf32>
    %213 = arith.mulf %202, %212 : vector<32x128xf32>
    %214 = arith.truncf %213 : vector<32x128xf32> to vector<32x128xbf16>
    %c0_90 = arith.constant 0 : index
    %c0_91 = arith.constant 0 : index
    %c0_92 = arith.constant 0 : index
    %215 = vector.load %arg19[%c0_90, %c0_91, %c0_92] : memref<2x128x32xbf16, #tpu.memory_space<vmem>>, vector<1x128x32xbf16>
    %216 = vector.shape_cast %215 : vector<1x128x32xbf16> to vector<128x32xbf16>
    %cst_93 = arith.constant dense<0.000000e+00> : vector<32x32xf32>
    %217 = tpu.matmul %214, %216, %cst_93 {dimension_numbers = #tpu.dot_dimension_numbers<[1], [0], [0], [1], [0, 0, 1, 1], [], []>} : vector<32x128xbf16>, vector<128x32xbf16>, vector<32x32xf32> -> vector<32x32xf32>
    %218 = arith.addf %166, %217 : vector<32x32xf32>
    %c0_94 = arith.constant 0 : index
    %c0_95 = arith.constant 0 : index
    %c0_96 = arith.constant 0 : index
    %219 = vector.load %arg20[%c0_94, %c0_95, %c0_96] : memref<2x1x32xf32, #tpu.memory_space<vmem>>, vector<1x1x32xf32>
    %220 = vector.shape_cast %219 : vector<1x1x32xf32> to vector<1x32xf32>
    %221 = vector.broadcast %220 : vector<1x32xf32> to vector<32x32xf32>
    %222 = arith.addf %218, %221 : vector<32x32xf32>
    %c1 = arith.constant 1 : index
    %c0_97 = arith.constant 0 : index
    %c0_98 = arith.constant 0 : index
    %223 = vector.load %arg9[%c1, %c0_97, %c0_98] : memref<2x1x32xf32, #tpu.memory_space<vmem>>, vector<1x1x32xf32>
    %224 = vector.shape_cast %223 : vector<1x1x32xf32> to vector<1x32xf32>
    %c1_99 = arith.constant 1 : index
    %c0_100 = arith.constant 0 : index
    %c0_101 = arith.constant 0 : index
    %225 = vector.load %arg10[%c1_99, %c0_100, %c0_101] : memref<2x1x32xf32, #tpu.memory_space<vmem>>, vector<1x1x32xf32>
    %226 = vector.shape_cast %225 : vector<1x1x32xf32> to vector<1x32xf32>
    %cst_102 = arith.constant dense<0.000000e+00> : vector<32xf32>
    %227 = vector.multi_reduction <add>, %222, %cst_102 [1] : vector<32x32xf32> to vector<32xf32>
    %228 = vector.shape_cast %227 : vector<32xf32> to vector<32x1xf32>
    %cst_103 = arith.constant 3.200000e+01 : f32
    %229 = vector.broadcast %cst_103 : f32 to vector<32x1xf32>
    %230 = arith.divf %228, %229 : vector<32x1xf32>
    %231 = vector.broadcast %230 : vector<32x1xf32> to vector<32x32xf32>
    %232 = arith.subf %222, %231 : vector<32x32xf32>
    %233 = arith.mulf %232, %232 : vector<32x32xf32>
    %cst_104 = arith.constant dense<0.000000e+00> : vector<32xf32>
    %234 = vector.multi_reduction <add>, %233, %cst_104 [1] : vector<32x32xf32> to vector<32xf32>
    %235 = vector.shape_cast %234 : vector<32xf32> to vector<32x1xf32>
    %cst_105 = arith.constant 3.200000e+01 : f32
    %236 = vector.broadcast %cst_105 : f32 to vector<32x1xf32>
    %237 = arith.divf %235, %236 : vector<32x1xf32>
    %238 = vector.broadcast %230 : vector<32x1xf32> to vector<32x32xf32>
    %239 = arith.subf %222, %238 : vector<32x32xf32>
    %cst_106 = arith.constant 9.99999974E-6 : f32
    %240 = vector.broadcast %cst_106 : f32 to vector<32x1xf32>
    %241 = arith.addf %237, %240 : vector<32x1xf32>
    %242 = math.rsqrt %241 : vector<32x1xf32>
    %243 = vector.broadcast %242 : vector<32x1xf32> to vector<32x32xf32>
    %244 = arith.mulf %239, %243 : vector<32x32xf32>
    %245 = vector.broadcast %224 : vector<1x32xf32> to vector<32x32xf32>
    %246 = arith.mulf %244, %245 : vector<32x32xf32>
    %247 = vector.broadcast %226 : vector<1x32xf32> to vector<32x32xf32>
    %248 = arith.addf %246, %247 : vector<32x32xf32>
    %249 = arith.truncf %248 : vector<32x32xf32> to vector<32x32xbf16>
    %c1_107 = arith.constant 1 : index
    %c0_108 = arith.constant 0 : index
    %c0_109 = arith.constant 0 : index
    %250 = vector.load %arg13[%c1_107, %c0_108, %c0_109] : memref<2x32x96xbf16, #tpu.memory_space<vmem>>, vector<1x32x96xbf16>
    %251 = vector.shape_cast %250 : vector<1x32x96xbf16> to vector<32x96xbf16>
    %cst_110 = arith.constant dense<0.000000e+00> : vector<32x96xf32>
    %252 = tpu.matmul %249, %251, %cst_110 {dimension_numbers = #tpu.dot_dimension_numbers<[1], [0], [0], [1], [0, 0, 1, 1], [], []>} : vector<32x32xbf16>, vector<32x96xbf16>, vector<32x96xf32> -> vector<32x96xf32>
    %c1_111 = arith.constant 1 : index
    %c0_112 = arith.constant 0 : index
    %c0_113 = arith.constant 0 : index
    %253 = vector.load %arg14[%c1_111, %c0_112, %c0_113] : memref<2x1x96xf32, #tpu.memory_space<vmem>>, vector<1x1x96xf32>
    %254 = vector.shape_cast %253 : vector<1x1x96xf32> to vector<1x96xf32>
    %255 = vector.broadcast %254 : vector<1x96xf32> to vector<32x96xf32>
    %256 = arith.addf %252, %255 : vector<32x96xf32>
    %257 = vector.extract_strided_slice %256 {offsets = [0, 0], sizes = [32, 8], strides = [1, 1]} : vector<32x96xf32> to vector<32x8xf32>
    %258 = vector.shape_cast %257 : vector<32x8xf32> to vector<2x16x8xf32>
    %259 = vector.extract_strided_slice %256 {offsets = [0, 32], sizes = [32, 8], strides = [1, 1]} : vector<32x96xf32> to vector<32x8xf32>
    %260 = vector.shape_cast %259 : vector<32x8xf32> to vector<2x16x8xf32>
    %261 = vector.extract_strided_slice %256 {offsets = [0, 64], sizes = [32, 8], strides = [1, 1]} : vector<32x96xf32> to vector<32x8xf32>
    %262 = vector.shape_cast %261 : vector<32x8xf32> to vector<2x16x8xf32>
    "tpu.trace_start"() <{level = 10 : i32, message = "bqd,bkd->bqk"}> : () -> ()
    %cst_114 = arith.constant dense<0.000000e+00> : vector<2x16x16xf32>
    %263 = tpu.matmul %258, %260, %cst_114 {dimension_numbers = #tpu.dot_dimension_numbers<[2], [2], [1], [1], [0, 0, 0, 1, 1, 1], [0], [0]>} : vector<2x16x8xf32>, vector<2x16x8xf32>, vector<2x16x16xf32> -> vector<2x16x16xf32>
    "tpu.trace_stop"() : () -> ()
    %cst_115 = arith.constant 0.353553385 : f32
    %264 = vector.broadcast %cst_115 : f32 to vector<2x16x16xf32>
    %265 = arith.mulf %263, %264 : vector<2x16x16xf32>
    %cst_116 = arith.constant dense<0xFF800000> : vector<2x16xf32>
    %266 = vector.multi_reduction <maximumf>, %265, %cst_116 [2] : vector<2x16x16xf32> to vector<2x16xf32>
    %267 = vector.shape_cast %266 : vector<2x16xf32> to vector<2x16x1xf32>
    %268 = vector.broadcast %267 : vector<2x16x1xf32> to vector<2x16x16xf32>
    %269 = arith.subf %265, %268 : vector<2x16x16xf32>
    %270 = math.exp %269 : vector<2x16x16xf32>
    %cst_117 = arith.constant dense<0.000000e+00> : vector<2x16xf32>
    %271 = vector.multi_reduction <add>, %270, %cst_117 [2] : vector<2x16x16xf32> to vector<2x16xf32>
    %272 = vector.shape_cast %271 : vector<2x16xf32> to vector<2x16x1xf32>
    %273 = tpu.reciprocal %272 {approx = true} : vector<2x16x1xf32> -> vector<2x16x1xf32>
    %274 = vector.broadcast %273 : vector<2x16x1xf32> to vector<2x16x16xf32>
    %275 = arith.mulf %270, %274 : vector<2x16x16xf32>
    "tpu.trace_start"() <{level = 10 : i32, message = "bqk,bkd->bqd"}> : () -> ()
    %cst_118 = arith.constant dense<0.000000e+00> : vector<2x16x8xf32>
    %276 = tpu.matmul %275, %262, %cst_118 {dimension_numbers = #tpu.dot_dimension_numbers<[2], [1], [1], [2], [0, 0, 0, 1, 1, 2], [0], [0]>} : vector<2x16x16xf32>, vector<2x16x8xf32>, vector<2x16x8xf32> -> vector<2x16x8xf32>
    "tpu.trace_stop"() : () -> ()
    %277 = vector.shape_cast %276 : vector<2x16x8xf32> to vector<32x8xf32>
    %278 = vector.extract_strided_slice %256 {offsets = [0, 8], sizes = [32, 8], strides = [1, 1]} : vector<32x96xf32> to vector<32x8xf32>
    %279 = vector.shape_cast %278 : vector<32x8xf32> to vector<2x16x8xf32>
    %280 = vector.extract_strided_slice %256 {offsets = [0, 40], sizes = [32, 8], strides = [1, 1]} : vector<32x96xf32> to vector<32x8xf32>
    %281 = vector.shape_cast %280 : vector<32x8xf32> to vector<2x16x8xf32>
    %282 = vector.extract_strided_slice %256 {offsets = [0, 72], sizes = [32, 8], strides = [1, 1]} : vector<32x96xf32> to vector<32x8xf32>
    %283 = vector.shape_cast %282 : vector<32x8xf32> to vector<2x16x8xf32>
    "tpu.trace_start"() <{level = 10 : i32, message = "bqd,bkd->bqk"}> : () -> ()
    %cst_119 = arith.constant dense<0.000000e+00> : vector<2x16x16xf32>
    %284 = tpu.matmul %279, %281, %cst_119 {dimension_numbers = #tpu.dot_dimension_numbers<[2], [2], [1], [1], [0, 0, 0, 1, 1, 1], [0], [0]>} : vector<2x16x8xf32>, vector<2x16x8xf32>, vector<2x16x16xf32> -> vector<2x16x16xf32>
    "tpu.trace_stop"() : () -> ()
    %cst_120 = arith.constant 0.353553385 : f32
    %285 = vector.broadcast %cst_120 : f32 to vector<2x16x16xf32>
    %286 = arith.mulf %284, %285 : vector<2x16x16xf32>
    %cst_121 = arith.constant dense<0xFF800000> : vector<2x16xf32>
    %287 = vector.multi_reduction <maximumf>, %286, %cst_121 [2] : vector<2x16x16xf32> to vector<2x16xf32>
    %288 = vector.shape_cast %287 : vector<2x16xf32> to vector<2x16x1xf32>
    %289 = vector.broadcast %288 : vector<2x16x1xf32> to vector<2x16x16xf32>
    %290 = arith.subf %286, %289 : vector<2x16x16xf32>
    %291 = math.exp %290 : vector<2x16x16xf32>
    %cst_122 = arith.constant dense<0.000000e+00> : vector<2x16xf32>
    %292 = vector.multi_reduction <add>, %291, %cst_122 [2] : vector<2x16x16xf32> to vector<2x16xf32>
    %293 = vector.shape_cast %292 : vector<2x16xf32> to vector<2x16x1xf32>
    %294 = tpu.reciprocal %293 {approx = true} : vector<2x16x1xf32> -> vector<2x16x1xf32>
    %295 = vector.broadcast %294 : vector<2x16x1xf32> to vector<2x16x16xf32>
    %296 = arith.mulf %291, %295 : vector<2x16x16xf32>
    "tpu.trace_start"() <{level = 10 : i32, message = "bqk,bkd->bqd"}> : () -> ()
    %cst_123 = arith.constant dense<0.000000e+00> : vector<2x16x8xf32>
    %297 = tpu.matmul %296, %283, %cst_123 {dimension_numbers = #tpu.dot_dimension_numbers<[2], [1], [1], [2], [0, 0, 0, 1, 1, 2], [0], [0]>} : vector<2x16x16xf32>, vector<2x16x8xf32>, vector<2x16x8xf32> -> vector<2x16x8xf32>
    "tpu.trace_stop"() : () -> ()
    %298 = vector.shape_cast %297 : vector<2x16x8xf32> to vector<32x8xf32>
    %299 = vector.extract_strided_slice %256 {offsets = [0, 16], sizes = [32, 8], strides = [1, 1]} : vector<32x96xf32> to vector<32x8xf32>
    %300 = vector.shape_cast %299 : vector<32x8xf32> to vector<2x16x8xf32>
    %301 = vector.extract_strided_slice %256 {offsets = [0, 48], sizes = [32, 8], strides = [1, 1]} : vector<32x96xf32> to vector<32x8xf32>
    %302 = vector.shape_cast %301 : vector<32x8xf32> to vector<2x16x8xf32>
    %303 = vector.extract_strided_slice %256 {offsets = [0, 80], sizes = [32, 8], strides = [1, 1]} : vector<32x96xf32> to vector<32x8xf32>
    %304 = vector.shape_cast %303 : vector<32x8xf32> to vector<2x16x8xf32>
    "tpu.trace_start"() <{level = 10 : i32, message = "bqd,bkd->bqk"}> : () -> ()
    %cst_124 = arith.constant dense<0.000000e+00> : vector<2x16x16xf32>
    %305 = tpu.matmul %300, %302, %cst_124 {dimension_numbers = #tpu.dot_dimension_numbers<[2], [2], [1], [1], [0, 0, 0, 1, 1, 1], [0], [0]>} : vector<2x16x8xf32>, vector<2x16x8xf32>, vector<2x16x16xf32> -> vector<2x16x16xf32>
    "tpu.trace_stop"() : () -> ()
    %cst_125 = arith.constant 0.353553385 : f32
    %306 = vector.broadcast %cst_125 : f32 to vector<2x16x16xf32>
    %307 = arith.mulf %305, %306 : vector<2x16x16xf32>
    %cst_126 = arith.constant dense<0xFF800000> : vector<2x16xf32>
    %308 = vector.multi_reduction <maximumf>, %307, %cst_126 [2] : vector<2x16x16xf32> to vector<2x16xf32>
    %309 = vector.shape_cast %308 : vector<2x16xf32> to vector<2x16x1xf32>
    %310 = vector.broadcast %309 : vector<2x16x1xf32> to vector<2x16x16xf32>
    %311 = arith.subf %307, %310 : vector<2x16x16xf32>
    %312 = math.exp %311 : vector<2x16x16xf32>
    %cst_127 = arith.constant dense<0.000000e+00> : vector<2x16xf32>
    %313 = vector.multi_reduction <add>, %312, %cst_127 [2] : vector<2x16x16xf32> to vector<2x16xf32>
    %314 = vector.shape_cast %313 : vector<2x16xf32> to vector<2x16x1xf32>
    %315 = tpu.reciprocal %314 {approx = true} : vector<2x16x1xf32> -> vector<2x16x1xf32>
    %316 = vector.broadcast %315 : vector<2x16x1xf32> to vector<2x16x16xf32>
    %317 = arith.mulf %312, %316 : vector<2x16x16xf32>
    "tpu.trace_start"() <{level = 10 : i32, message = "bqk,bkd->bqd"}> : () -> ()
    %cst_128 = arith.constant dense<0.000000e+00> : vector<2x16x8xf32>
    %318 = tpu.matmul %317, %304, %cst_128 {dimension_numbers = #tpu.dot_dimension_numbers<[2], [1], [1], [2], [0, 0, 0, 1, 1, 2], [0], [0]>} : vector<2x16x16xf32>, vector<2x16x8xf32>, vector<2x16x8xf32> -> vector<2x16x8xf32>
    "tpu.trace_stop"() : () -> ()
    %319 = vector.shape_cast %318 : vector<2x16x8xf32> to vector<32x8xf32>
    %320 = vector.extract_strided_slice %256 {offsets = [0, 24], sizes = [32, 8], strides = [1, 1]} : vector<32x96xf32> to vector<32x8xf32>
    %321 = vector.shape_cast %320 : vector<32x8xf32> to vector<2x16x8xf32>
    %322 = vector.extract_strided_slice %256 {offsets = [0, 56], sizes = [32, 8], strides = [1, 1]} : vector<32x96xf32> to vector<32x8xf32>
    %323 = vector.shape_cast %322 : vector<32x8xf32> to vector<2x16x8xf32>
    %324 = vector.extract_strided_slice %256 {offsets = [0, 88], sizes = [32, 8], strides = [1, 1]} : vector<32x96xf32> to vector<32x8xf32>
    %325 = vector.shape_cast %324 : vector<32x8xf32> to vector<2x16x8xf32>
    "tpu.trace_start"() <{level = 10 : i32, message = "bqd,bkd->bqk"}> : () -> ()
    %cst_129 = arith.constant dense<0.000000e+00> : vector<2x16x16xf32>
    %326 = tpu.matmul %321, %323, %cst_129 {dimension_numbers = #tpu.dot_dimension_numbers<[2], [2], [1], [1], [0, 0, 0, 1, 1, 1], [0], [0]>} : vector<2x16x8xf32>, vector<2x16x8xf32>, vector<2x16x16xf32> -> vector<2x16x16xf32>
    "tpu.trace_stop"() : () -> ()
    %cst_130 = arith.constant 0.353553385 : f32
    %327 = vector.broadcast %cst_130 : f32 to vector<2x16x16xf32>
    %328 = arith.mulf %326, %327 : vector<2x16x16xf32>
    %cst_131 = arith.constant dense<0xFF800000> : vector<2x16xf32>
    %329 = vector.multi_reduction <maximumf>, %328, %cst_131 [2] : vector<2x16x16xf32> to vector<2x16xf32>
    %330 = vector.shape_cast %329 : vector<2x16xf32> to vector<2x16x1xf32>
    %331 = vector.broadcast %330 : vector<2x16x1xf32> to vector<2x16x16xf32>
    %332 = arith.subf %328, %331 : vector<2x16x16xf32>
    %333 = math.exp %332 : vector<2x16x16xf32>
    %cst_132 = arith.constant dense<0.000000e+00> : vector<2x16xf32>
    %334 = vector.multi_reduction <add>, %333, %cst_132 [2] : vector<2x16x16xf32> to vector<2x16xf32>
    %335 = vector.shape_cast %334 : vector<2x16xf32> to vector<2x16x1xf32>
    %336 = tpu.reciprocal %335 {approx = true} : vector<2x16x1xf32> -> vector<2x16x1xf32>
    %337 = vector.broadcast %336 : vector<2x16x1xf32> to vector<2x16x16xf32>
    %338 = arith.mulf %333, %337 : vector<2x16x16xf32>
    "tpu.trace_start"() <{level = 10 : i32, message = "bqk,bkd->bqd"}> : () -> ()
    %cst_133 = arith.constant dense<0.000000e+00> : vector<2x16x8xf32>
    %339 = tpu.matmul %338, %325, %cst_133 {dimension_numbers = #tpu.dot_dimension_numbers<[2], [1], [1], [2], [0, 0, 0, 1, 1, 2], [0], [0]>} : vector<2x16x16xf32>, vector<2x16x8xf32>, vector<2x16x8xf32> -> vector<2x16x8xf32>
    "tpu.trace_stop"() : () -> ()
    %340 = vector.shape_cast %339 : vector<2x16x8xf32> to vector<32x8xf32>
    %341 = tpu.concatenate %277, %298, %319, %340 in 1 : vector<32x8xf32>, vector<32x8xf32>, vector<32x8xf32>, vector<32x8xf32> -> vector<32x32xf32>
    %342 = arith.truncf %341 : vector<32x32xf32> to vector<32x32xbf16>
    %c1_134 = arith.constant 1 : index
    %c0_135 = arith.constant 0 : index
    %c0_136 = arith.constant 0 : index
    %343 = vector.load %arg15[%c1_134, %c0_135, %c0_136] : memref<2x32x32xbf16, #tpu.memory_space<vmem>>, vector<1x32x32xbf16>
    %344 = vector.shape_cast %343 : vector<1x32x32xbf16> to vector<32x32xbf16>
    %cst_137 = arith.constant dense<0.000000e+00> : vector<32x32xf32>
    %345 = tpu.matmul %342, %344, %cst_137 {dimension_numbers = #tpu.dot_dimension_numbers<[1], [0], [0], [1], [0, 0, 1, 1], [], []>} : vector<32x32xbf16>, vector<32x32xbf16>, vector<32x32xf32> -> vector<32x32xf32>
    %346 = arith.addf %222, %345 : vector<32x32xf32>
    %c1_138 = arith.constant 1 : index
    %c0_139 = arith.constant 0 : index
    %c0_140 = arith.constant 0 : index
    %347 = vector.load %arg16[%c1_138, %c0_139, %c0_140] : memref<2x1x32xf32, #tpu.memory_space<vmem>>, vector<1x1x32xf32>
    %348 = vector.shape_cast %347 : vector<1x1x32xf32> to vector<1x32xf32>
    %349 = vector.broadcast %348 : vector<1x32xf32> to vector<32x32xf32>
    %350 = arith.addf %346, %349 : vector<32x32xf32>
    %c1_141 = arith.constant 1 : index
    %c0_142 = arith.constant 0 : index
    %c0_143 = arith.constant 0 : index
    %351 = vector.load %arg11[%c1_141, %c0_142, %c0_143] : memref<2x1x32xf32, #tpu.memory_space<vmem>>, vector<1x1x32xf32>
    %352 = vector.shape_cast %351 : vector<1x1x32xf32> to vector<1x32xf32>
    %c1_144 = arith.constant 1 : index
    %c0_145 = arith.constant 0 : index
    %c0_146 = arith.constant 0 : index
    %353 = vector.load %arg12[%c1_144, %c0_145, %c0_146] : memref<2x1x32xf32, #tpu.memory_space<vmem>>, vector<1x1x32xf32>
    %354 = vector.shape_cast %353 : vector<1x1x32xf32> to vector<1x32xf32>
    %cst_147 = arith.constant dense<0.000000e+00> : vector<32xf32>
    %355 = vector.multi_reduction <add>, %350, %cst_147 [1] : vector<32x32xf32> to vector<32xf32>
    %356 = vector.shape_cast %355 : vector<32xf32> to vector<32x1xf32>
    %cst_148 = arith.constant 3.200000e+01 : f32
    %357 = vector.broadcast %cst_148 : f32 to vector<32x1xf32>
    %358 = arith.divf %356, %357 : vector<32x1xf32>
    %359 = vector.broadcast %358 : vector<32x1xf32> to vector<32x32xf32>
    %360 = arith.subf %350, %359 : vector<32x32xf32>
    %361 = arith.mulf %360, %360 : vector<32x32xf32>
    %cst_149 = arith.constant dense<0.000000e+00> : vector<32xf32>
    %362 = vector.multi_reduction <add>, %361, %cst_149 [1] : vector<32x32xf32> to vector<32xf32>
    %363 = vector.shape_cast %362 : vector<32xf32> to vector<32x1xf32>
    %cst_150 = arith.constant 3.200000e+01 : f32
    %364 = vector.broadcast %cst_150 : f32 to vector<32x1xf32>
    %365 = arith.divf %363, %364 : vector<32x1xf32>
    %366 = vector.broadcast %358 : vector<32x1xf32> to vector<32x32xf32>
    %367 = arith.subf %350, %366 : vector<32x32xf32>
    %cst_151 = arith.constant 9.99999974E-6 : f32
    %368 = vector.broadcast %cst_151 : f32 to vector<32x1xf32>
    %369 = arith.addf %365, %368 : vector<32x1xf32>
    %370 = math.rsqrt %369 : vector<32x1xf32>
    %371 = vector.broadcast %370 : vector<32x1xf32> to vector<32x32xf32>
    %372 = arith.mulf %367, %371 : vector<32x32xf32>
    %373 = vector.broadcast %352 : vector<1x32xf32> to vector<32x32xf32>
    %374 = arith.mulf %372, %373 : vector<32x32xf32>
    %375 = vector.broadcast %354 : vector<1x32xf32> to vector<32x32xf32>
    %376 = arith.addf %374, %375 : vector<32x32xf32>
    %377 = arith.truncf %376 : vector<32x32xf32> to vector<32x32xbf16>
    %c1_152 = arith.constant 1 : index
    %c0_153 = arith.constant 0 : index
    %c0_154 = arith.constant 0 : index
    %378 = vector.load %arg17[%c1_152, %c0_153, %c0_154] : memref<2x32x128xbf16, #tpu.memory_space<vmem>>, vector<1x32x128xbf16>
    %379 = vector.shape_cast %378 : vector<1x32x128xbf16> to vector<32x128xbf16>
    %cst_155 = arith.constant dense<0.000000e+00> : vector<32x128xf32>
    %380 = tpu.matmul %377, %379, %cst_155 {dimension_numbers = #tpu.dot_dimension_numbers<[1], [0], [0], [1], [0, 0, 1, 1], [], []>} : vector<32x32xbf16>, vector<32x128xbf16>, vector<32x128xf32> -> vector<32x128xf32>
    %c1_156 = arith.constant 1 : index
    %c0_157 = arith.constant 0 : index
    %c0_158 = arith.constant 0 : index
    %381 = vector.load %arg18[%c1_156, %c0_157, %c0_158] : memref<2x1x128xf32, #tpu.memory_space<vmem>>, vector<1x1x128xf32>
    %382 = vector.shape_cast %381 : vector<1x1x128xf32> to vector<1x128xf32>
    %383 = vector.broadcast %382 : vector<1x128xf32> to vector<32x128xf32>
    %384 = arith.addf %380, %383 : vector<32x128xf32>
    %cst_159 = arith.constant 5.000000e-01 : f32
    %385 = vector.broadcast %cst_159 : f32 to vector<32x128xf32>
    %386 = arith.mulf %385, %384 : vector<32x128xf32>
    %cst_160 = arith.constant 4.471500e-02 : f32
    %387 = vector.broadcast %cst_160 : f32 to vector<32x128xf32>
    %388 = arith.mulf %387, %384 : vector<32x128xf32>
    %389 = arith.mulf %388, %384 : vector<32x128xf32>
    %390 = arith.mulf %389, %384 : vector<32x128xf32>
    %391 = arith.addf %384, %390 : vector<32x128xf32>
    %cst_161 = arith.constant 0.797884583 : f32
    %392 = vector.broadcast %cst_161 : f32 to vector<32x128xf32>
    %393 = arith.mulf %392, %391 : vector<32x128xf32>
    %394 = math.tanh %393 : vector<32x128xf32>
    %cst_162 = arith.constant 1.000000e+00 : f32
    %395 = vector.broadcast %cst_162 : f32 to vector<32x128xf32>
    %396 = arith.addf %395, %394 : vector<32x128xf32>
    %397 = arith.mulf %386, %396 : vector<32x128xf32>
    %398 = arith.truncf %397 : vector<32x128xf32> to vector<32x128xbf16>
    %c1_163 = arith.constant 1 : index
    %c0_164 = arith.constant 0 : index
    %c0_165 = arith.constant 0 : index
    %399 = vector.load %arg19[%c1_163, %c0_164, %c0_165] : memref<2x128x32xbf16, #tpu.memory_space<vmem>>, vector<1x128x32xbf16>
    %400 = vector.shape_cast %399 : vector<1x128x32xbf16> to vector<128x32xbf16>
    %cst_166 = arith.constant dense<0.000000e+00> : vector<32x32xf32>
    %401 = tpu.matmul %398, %400, %cst_166 {dimension_numbers = #tpu.dot_dimension_numbers<[1], [0], [0], [1], [0, 0, 1, 1], [], []>} : vector<32x128xbf16>, vector<128x32xbf16>, vector<32x32xf32> -> vector<32x32xf32>
    %402 = arith.addf %350, %401 : vector<32x32xf32>
    %c1_167 = arith.constant 1 : index
    %c0_168 = arith.constant 0 : index
    %c0_169 = arith.constant 0 : index
    %403 = vector.load %arg20[%c1_167, %c0_168, %c0_169] : memref<2x1x32xf32, #tpu.memory_space<vmem>>, vector<1x1x32xf32>
    %404 = vector.shape_cast %403 : vector<1x1x32xf32> to vector<1x32xf32>
    %405 = vector.broadcast %404 : vector<1x32xf32> to vector<32x32xf32>
    %406 = arith.addf %402, %405 : vector<32x32xf32>
    %c0_170 = arith.constant 0 : index
    %c0_171 = arith.constant 0 : index
    %407 = vector.load %arg21[%c0_170, %c0_171] : memref<1x32xf32, #tpu.memory_space<vmem>>, vector<1x32xf32>
    %c0_172 = arith.constant 0 : index
    %c0_173 = arith.constant 0 : index
    %408 = vector.load %arg22[%c0_172, %c0_173] : memref<1x32xf32, #tpu.memory_space<vmem>>, vector<1x32xf32>
    %cst_174 = arith.constant dense<0.000000e+00> : vector<32xf32>
    %409 = vector.multi_reduction <add>, %406, %cst_174 [1] : vector<32x32xf32> to vector<32xf32>
    %410 = vector.shape_cast %409 : vector<32xf32> to vector<32x1xf32>
    %cst_175 = arith.constant 3.200000e+01 : f32
    %411 = vector.broadcast %cst_175 : f32 to vector<32x1xf32>
    %412 = arith.divf %410, %411 : vector<32x1xf32>
    %413 = vector.broadcast %412 : vector<32x1xf32> to vector<32x32xf32>
    %414 = arith.subf %406, %413 : vector<32x32xf32>
    %415 = arith.mulf %414, %414 : vector<32x32xf32>
    %cst_176 = arith.constant dense<0.000000e+00> : vector<32xf32>
    %416 = vector.multi_reduction <add>, %415, %cst_176 [1] : vector<32x32xf32> to vector<32xf32>
    %417 = vector.shape_cast %416 : vector<32xf32> to vector<32x1xf32>
    %cst_177 = arith.constant 3.200000e+01 : f32
    %418 = vector.broadcast %cst_177 : f32 to vector<32x1xf32>
    %419 = arith.divf %417, %418 : vector<32x1xf32>
    %420 = vector.broadcast %412 : vector<32x1xf32> to vector<32x32xf32>
    %421 = arith.subf %406, %420 : vector<32x32xf32>
    %cst_178 = arith.constant 9.99999974E-6 : f32
    %422 = vector.broadcast %cst_178 : f32 to vector<32x1xf32>
    %423 = arith.addf %419, %422 : vector<32x1xf32>
    %424 = math.rsqrt %423 : vector<32x1xf32>
    %425 = vector.broadcast %424 : vector<32x1xf32> to vector<32x32xf32>
    %426 = arith.mulf %421, %425 : vector<32x32xf32>
    %427 = vector.broadcast %407 : vector<1x32xf32> to vector<32x32xf32>
    %428 = arith.mulf %426, %427 : vector<32x32xf32>
    %429 = vector.broadcast %408 : vector<1x32xf32> to vector<32x32xf32>
    %430 = arith.addf %428, %429 : vector<32x32xf32>
    %431 = arith.truncf %430 : vector<32x32xf32> to vector<32x32xbf16>
    %c0_179 = arith.constant 0 : index
    %c0_180 = arith.constant 0 : index
    %432 = vector.load %arg23[%c0_179, %c0_180] : memref<32x128xbf16, #tpu.memory_space<vmem>>, vector<32x128xbf16>
    %cst_181 = arith.constant dense<0.000000e+00> : vector<32x128xf32>
    %433 = tpu.matmul %431, %432, %cst_181 {dimension_numbers = #tpu.dot_dimension_numbers<[1], [0], [0], [1], [0, 0, 1, 1], [], []>} : vector<32x32xbf16>, vector<32x128xbf16>, vector<32x128xf32> -> vector<32x128xf32>
    %c0_182 = arith.constant 0 : index
    %c0_183 = arith.constant 0 : index
    %434 = vector.load %arg24[%c0_182, %c0_183] : memref<1x128xf32, #tpu.memory_space<vmem>>, vector<1x128xf32>
    %435 = vector.broadcast %434 : vector<1x128xf32> to vector<32x128xf32>
    %436 = arith.addf %433, %435 : vector<32x128xf32>
    %c0_184 = arith.constant 0 : index
    %c0_185 = arith.constant 0 : index
    %437 = vector.load %arg26[%c0_184, %c0_185] : memref<32x128xf32, #tpu.memory_space<vmem>>, vector<32x128xf32>
    tpu.vector_store %arg26[%c0_184, %c0_185], %436 {strides = array<i32>} : memref<32x128xf32, #tpu.memory_space<vmem>>, vector<32x128xf32>,
    return
  }
  func.func @transform_0(%arg0: i32) -> (i32, i32) {
    %c0_i32 = arith.constant 0 : i32
    %c0_i32_0 = arith.constant 0 : i32
    %c0_i32_1 = arith.constant 0 : i32
    return %c0_i32, %c0_i32_0 : i32, i32
  }
  func.func @transform_1(%arg0: i32) -> (i32, i32) {
    %c0_i32 = arith.constant 0 : i32
    %c0_i32_0 = arith.constant 0 : i32
    %c0_i32_1 = arith.constant 0 : i32
    return %c0_i32, %c0_i32_0 : i32, i32
  }
  func.func @transform_2(%arg0: i32) -> (i32, i32) {
    %c0_i32 = arith.constant 0 : i32
    %c0_i32_0 = arith.constant 0 : i32
    %c0_i32_1 = arith.constant 0 : i32
    return %c0_i32, %c0_i32_0 : i32, i32
  }
  func.func @transform_3(%arg0: i32) -> (i32, i32) {
    %c0_i32 = arith.constant 0 : i32
    %c0_i32_0 = arith.constant 0 : i32
    %c0_i32_1 = arith.constant 0 : i32
    return %c0_i32, %c0_i32_0 : i32, i32
  }
  func.func @transform_4(%arg0: i32) -> (i32, i32) {
    %c0_i32 = arith.constant 0 : i32
    %c0_i32_0 = arith.constant 0 : i32
    %c0_i32_1 = arith.constant 0 : i32
    return %c0_i32, %c0_i32_0 : i32, i32
  }
  func.func @transform_5(%arg0: i32) -> (i32, i32) {
    %c0_i32 = arith.constant 0 : i32
    %c0_i32_0 = arith.constant 0 : i32
    %c0_i32_1 = arith.constant 0 : i32
    return %c0_i32, %c0_i32_0 : i32, i32
  }
  func.func @transform_6(%arg0: i32) -> (i32, i32) {
    %c0_i32 = arith.constant 0 : i32
    %c0_i32_0 = arith.constant 0 : i32
    %c0_i32_1 = arith.constant 0 : i32
    return %c0_i32, %c0_i32_0 : i32, i32
  }
  func.func @transform_7(%arg0: i32) -> (i32, i32) {
    %c0_i32 = arith.constant 0 : i32
    %c0_i32_0 = arith.constant 0 : i32
    %c0_i32_1 = arith.constant 0 : i32
    return %c0_i32, %c0_i32_0 : i32, i32
  }
  func.func @transform_8(%arg0: i32) -> (i32, i32, i32) {
    %c0_i32 = arith.constant 0 : i32
    %c0_i32_0 = arith.constant 0 : i32
    %c0_i32_1 = arith.constant 0 : i32
    %c0_i32_2 = arith.constant 0 : i32
    return %c0_i32, %c0_i32_0, %c0_i32_1 : i32, i32, i32
  }
  func.func @transform_9(%arg0: i32) -> (i32, i32, i32) {
    %c0_i32 = arith.constant 0 : i32
    %c0_i32_0 = arith.constant 0 : i32
    %c0_i32_1 = arith.constant 0 : i32
    %c0_i32_2 = arith.constant 0 : i32
    return %c0_i32, %c0_i32_0, %c0_i32_1 : i32, i32, i32
  }
  func.func @transform_10(%arg0: i32) -> (i32, i32, i32) {
    %c0_i32 = arith.constant 0 : i32
    %c0_i32_0 = arith.constant 0 : i32
    %c0_i32_1 = arith.constant 0 : i32
    %c0_i32_2 = arith.constant 0 : i32
    return %c0_i32, %c0_i32_0, %c0_i32_1 : i32, i32, i32
  }
  func.func @transform_11(%arg0: i32) -> (i32, i32, i32) {
    %c0_i32 = arith.constant 0 : i32
    %c0_i32_0 = arith.constant 0 : i32
    %c0_i32_1 = arith.constant 0 : i32
    %c0_i32_2 = arith.constant 0 : i32
    return %c0_i32, %c0_i32_0, %c0_i32_1 : i32, i32, i32
  }
  func.func @transform_12(%arg0: i32) -> (i32, i32, i32) {
    %c0_i32 = arith.constant 0 : i32
    %c0_i32_0 = arith.constant 0 : i32
    %c0_i32_1 = arith.constant 0 : i32
    %c0_i32_2 = arith.constant 0 : i32
    return %c0_i32, %c0_i32_0, %c0_i32_1 : i32, i32, i32
  }
  func.func @transform_13(%arg0: i32) -> (i32, i32, i32) {
    %c0_i32 = arith.constant 0 : i32
    %c0_i32_0 = arith.constant 0 : i32
    %c0_i32_1 = arith.constant 0 : i32
    %c0_i32_2 = arith.constant 0 : i32
    return %c0_i32, %c0_i32_0, %c0_i32_1 : i32, i32, i32
  }
  func.func @transform_14(%arg0: i32) -> (i32, i32, i32) {
    %c0_i32 = arith.constant 0 : i32
    %c0_i32_0 = arith.constant 0 : i32
    %c0_i32_1 = arith.constant 0 : i32
    %c0_i32_2 = arith.constant 0 : i32
    return %c0_i32, %c0_i32_0, %c0_i32_1 : i32, i32, i32
  }
  func.func @transform_15(%arg0: i32) -> (i32, i32, i32) {
    %c0_i32 = arith.constant 0 : i32
    %c0_i32_0 = arith.constant 0 : i32
    %c0_i32_1 = arith.constant 0 : i32
    %c0_i32_2 = arith.constant 0 : i32
    return %c0_i32, %c0_i32_0, %c0_i32_1 : i32, i32, i32
  }
  func.func @transform_16(%arg0: i32) -> (i32, i32, i32) {
    %c0_i32 = arith.constant 0 : i32
    %c0_i32_0 = arith.constant 0 : i32
    %c0_i32_1 = arith.constant 0 : i32
    %c0_i32_2 = arith.constant 0 : i32
    return %c0_i32, %c0_i32_0, %c0_i32_1 : i32, i32, i32
  }
  func.func @transform_17(%arg0: i32) -> (i32, i32, i32) {
    %c0_i32 = arith.constant 0 : i32
    %c0_i32_0 = arith.constant 0 : i32
    %c0_i32_1 = arith.constant 0 : i32
    %c0_i32_2 = arith.constant 0 : i32
    return %c0_i32, %c0_i32_0, %c0_i32_1 : i32, i32, i32
  }
  func.func @transform_18(%arg0: i32) -> (i32, i32, i32) {
    %c0_i32 = arith.constant 0 : i32
    %c0_i32_0 = arith.constant 0 : i32
    %c0_i32_1 = arith.constant 0 : i32
    %c0_i32_2 = arith.constant 0 : i32
    return %c0_i32, %c0_i32_0, %c0_i32_1 : i32, i32, i32
  }
  func.func @transform_19(%arg0: i32) -> (i32, i32, i32) {
    %c0_i32 = arith.constant 0 : i32
    %c0_i32_0 = arith.constant 0 : i32
    %c0_i32_1 = arith.constant 0 : i32
    %c0_i32_2 = arith.constant 0 : i32
    return %c0_i32, %c0_i32_0, %c0_i32_1 : i32, i32, i32
  }
  func.func @transform_20(%arg0: i32) -> (i32, i32) {
    %c0_i32 = arith.constant 0 : i32
    %c0_i32_0 = arith.constant 0 : i32
    %c0_i32_1 = arith.constant 0 : i32
    return %c0_i32, %c0_i32_0 : i32, i32
  }
  func.func @transform_21(%arg0: i32) -> (i32, i32) {
    %c0_i32 = arith.constant 0 : i32
    %c0_i32_0 = arith.constant 0 : i32
    %c0_i32_1 = arith.constant 0 : i32
    return %c0_i32, %c0_i32_0 : i32, i32
  }
  func.func @transform_22(%arg0: i32) -> (i32, i32) {
    %c0_i32 = arith.constant 0 : i32
    %c0_i32_0 = arith.constant 0 : i32
    %c0_i32_1 = arith.constant 0 : i32
    return %c0_i32, %c0_i32_0 : i32, i32
  }
  func.func @transform_23(%arg0: i32) -> (i32, i32) {
    %c0_i32 = arith.constant 0 : i32
    %c0_i32_0 = arith.constant 0 : i32
    %c0_i32_1 = arith.constant 0 : i32
    return %c0_i32, %c0_i32_0 : i32, i32
  }
  func.func @transform_24(%arg0: i32) -> (i32, i32) {
    %c0_i32 = arith.constant 0 : i32
    %c0_i32_0 = arith.constant 0 : i32
    %c0_i32_1 = arith.constant 0 : i32
    return %c0_i32, %c0_i32_0 : i32, i32
  }
  func.func @transform_25(%arg0: i32) -> (i32, i32) {
    %c0_i32 = arith.constant 0 : i32
    %c0_i32_0 = arith.constant 0 : i32
    %c0_i32_1 = arith.constant 0 : i32
    return %c0_i32, %c0_i32_0 : i32, i32
  }
}

</mosaic_0001>

<llo_original>
// kernel: _lambda_.1
$region0: #{_lambda_.1}
  #allocation0 [shape = 'u32[]', space=smem, size = 0x4, offset = 0x4, fixed_abs, tag = 'smem constant byte address 0x4 - core index']
  #allocation1 [shape = 'u32[144,128]{1,0:T(1,128)}', space=vmem, size = 0x12000, scoped, tag = 'internal scratch']
  %s0 = inlined_call_operand.vmem [shape: f32[32,48], index: 0, kind: input, shape index: {}]
  %s1 = inlined_call_operand.vmem [shape: s32[32,1], index: 1, kind: input, shape index: {}]
  %s2 = inlined_call_operand.vmem [shape: f32[48,32], index: 2, kind: input, shape index: {}]
  %s3 = inlined_call_operand.vmem [shape: f32[1,32], index: 3, kind: input, shape index: {}, may-alias: {3,21}]
  %s4 = inlined_call_operand.vmem [shape: f32[32,32], index: 4, kind: input, shape index: {}]
  %s5 = inlined_call_operand.vmem [shape: f32[1,32], index: 5, kind: input, shape index: {}]
  %s6 = inlined_call_operand.vmem [shape: bf16[40,32], index: 6, kind: input, shape index: {}]
  %s7 = inlined_call_operand.vmem [shape: f32[16,32], index: 7, kind: input, shape index: {}]
  %s8 = inlined_call_operand.vmem [shape: f32[2,1,32], index: 8, kind: input, shape index: {}, may-alias: {8,10}]
  %s9 = inlined_call_operand.vmem [shape: f32[2,1,32], index: 9, kind: input, shape index: {}, may-alias: {9,11,15,19}]
  %s10 = inlined_call_operand.vmem [shape: f32[2,1,32], index: 10, kind: input, shape index: {}, may-alias: {8,10}]
  %s11 = inlined_call_operand.vmem [shape: f32[2,1,32], index: 11, kind: input, shape index: {}, may-alias: {9,11,15,19}]
  %s12 = inlined_call_operand.vmem [shape: bf16[2,32,96], index: 12, kind: input, shape index: {}]
  %s13 = inlined_call_operand.vmem [shape: f32[2,1,96], index: 13, kind: input, shape index: {}]
  %s14 = inlined_call_operand.vmem [shape: bf16[2,32,32], index: 14, kind: input, shape index: {}]
  %s15 = inlined_call_operand.vmem [shape: f32[2,1,32], index: 15, kind: input, shape index: {}, may-alias: {9,11,15,19}]
  %s16 = inlined_call_operand.vmem [shape: bf16[2,32,128], index: 16, kind: input, shape index: {}]
  %s17 = inlined_call_operand.vmem [shape: f32[2,1,128], index: 17, kind: input, shape index: {}]
  %s18 = inlined_call_operand.vmem [shape: bf16[2,128,32], index: 18, kind: input, shape index: {}]
  %s19 = inlined_call_operand.vmem [shape: f32[2,1,32], index: 19, kind: input, shape index: {}, may-alias: {9,11,15,19}]
  %s20 = inlined_call_operand.vmem [shape: f32[1,32], index: 20, kind: input, shape index: {}]
  %s21 = inlined_call_operand.vmem [shape: f32[1,32], index: 21, kind: input, shape index: {}, may-alias: {3,21}]
  %s22 = inlined_call_operand.vmem [shape: bf16[32,128], index: 22, kind: input, shape index: {}]
  %s23 = inlined_call_operand.vmem [shape: f32[1,128], index: 23, kind: input, shape index: {}]
  %s24 = inlined_call_operand.vmem [shape: s32[32,1], index: 24, kind: output, shape index: {0}]
  %s25 = inlined_call_operand.hbm [shape: f32[32,128], index: 25, kind: output, shape index: {1}]
  %26 = xla_tuple %s24, %s25
  %s27 = sld [smem:[#allocation0]]
  $region114: #{_lambda_.1} parent=0
    _
  %s29 = ssub.s32 1, %s27
  %s30 = scalar_select 0, %s29, %s27
  $region1: #{_lambda_.1} parent=0
    #allocation2 [shape = 'u8[16384]{0}', space=vmem, size = 0x4000, scoped, tag = 'output window, operand 1, single buffered']
    #allocation3 [shape = 's32[1]{0}', space=sflag, size = 0x4, scoped, tag = 'scoped memory for _lambda_.1']
    %31 = vsyncpa [#allocation3], 0
    // Predicated region
    $region2: #{_lambda_.1} parent=1 // pred_check
      _
    $region3: #{_lambda_.1} parent=1 // pred_check_branch
      %33 = sbr.rel (0) target = $region5
    $region4: #{_lambda_.1} parent=1 // pred_region
      _
    $region5: #{_lambda_.1} parent=1 // pred_fallthru
      _
    // Predicated region
    $region6: #{_lambda_.1} parent=1 // pred_check
      _
    $region7: #{_lambda_.1} parent=1 // pred_check_branch
      %35 = sbr.rel (0) target = $region9
    $region8: #{_lambda_.1} parent=1 // pred_region
      _
    $region9: #{_lambda_.1} parent=1 // pred_fallthru
      _
    // Predicated region
    $region10: #{_lambda_.1} parent=1 // pred_check
      _
    $region11: #{_lambda_.1} parent=1 // pred_check_branch
      %37 = sbr.rel (0) target = $region13
    $region12: #{_lambda_.1} parent=1 // pred_region
      _
    $region13: #{_lambda_.1} parent=1 // pred_fallthru
      _
    // Predicated region
    $region14: #{_lambda_.1} parent=1 // pred_check
      _
    $region15: #{_lambda_.1} parent=1 // pred_check_branch
      %39 = sbr.rel (0) target = $region17
    $region16: #{_lambda_.1} parent=1 // pred_region
      _
    $region17: #{_lambda_.1} parent=1 // pred_fallthru
      _
    // Predicated region
    $region18: #{_lambda_.1} parent=1 // pred_check
      _
    $region19: #{_lambda_.1} parent=1 // pred_check_branch
      %41 = sbr.rel (0) target = $region21
    $region20: #{_lambda_.1} parent=1 // pred_region
      _
    $region21: #{_lambda_.1} parent=1 // pred_fallthru
      _
    // Predicated region
    $region22: #{_lambda_.1} parent=1 // pred_check
      _
    $region23: #{_lambda_.1} parent=1 // pred_check_branch
      %43 = sbr.rel (0) target = $region25
    $region24: #{_lambda_.1} parent=1 // pred_region
      _
    $region25: #{_lambda_.1} parent=1 // pred_fallthru
      _
    // Predicated region
    $region26: #{_lambda_.1} parent=1 // pred_check
      _
    $region27: #{_lambda_.1} parent=1 // pred_check_branch
      %45 = sbr.rel (0) target = $region29
    $region28: #{_lambda_.1} parent=1 // pred_region
      _
    $region29: #{_lambda_.1} parent=1 // pred_fallthru
      _
    // Predicated region
    $region30: #{_lambda_.1} parent=1 // pred_check
      _
    $region31: #{_lambda_.1} parent=1 // pred_check_branch
      %47 = sbr.rel (0) target = $region33
    $region32: #{_lambda_.1} parent=1 // pred_region
      _
    $region33: #{_lambda_.1} parent=1 // pred_fallthru
      _
    // Predicated region
    $region34: #{_lambda_.1} parent=1 // pred_check
      _
    $region35: #{_lambda_.1} parent=1 // pred_check_branch
      %49 = sbr.rel (0) target = $region37
    $region36: #{_lambda_.1} parent=1 // pred_region
      _
    $region37: #{_lambda_.1} parent=1 // pred_fallthru
      _
    // Predicated region
    $region38: #{_lambda_.1} parent=1 // pred_check
      _
    $region39: #{_lambda_.1} parent=1 // pred_check_branch
      %51 = sbr.rel (0) target = $region41
    $region40: #{_lambda_.1} parent=1 // pred_region
      _
    $region41: #{_lambda_.1} parent=1 // pred_fallthru
      _
    // Predicated region
    $region42: #{_lambda_.1} parent=1 // pred_check
      _
    $region43: #{_lambda_.1} parent=1 // pred_check_branch
      %53 = sbr.rel (0) target = $region45
    $region44: #{_lambda_.1} parent=1 // pred_region
      _
    $region45: #{_lambda_.1} parent=1 // pred_fallthru
      _
    // Predicated region
    $region46: #{_lambda_.1} parent=1 // pred_check
      _
    $region47: #{_lambda_.1} parent=1 // pred_check_branch
      %55 = sbr.rel (0) target = $region49
    $region48: #{_lambda_.1} parent=1 // pred_region
      _
    $region49: #{_lambda_.1} parent=1 // pred_fallthru
      _
    // Predicated region
    $region50: #{_lambda_.1} parent=1 // pred_check
      _
    $region51: #{_lambda_.1} parent=1 // pred_check_branch
      %57 = sbr.rel (0) target = $region53
    $region52: #{_lambda_.1} parent=1 // pred_region
      _
    $region53: #{_lambda_.1} parent=1 // pred_fallthru
      _
    // Predicated region
    $region54: #{_lambda_.1} parent=1 // pred_check
      _
    $region55: #{_lambda_.1} parent=1 // pred_check_branch
      %59 = sbr.rel (0) target = $region57
    $region56: #{_lambda_.1} parent=1 // pred_region
      _
    $region57: #{_lambda_.1} parent=1 // pred_fallthru
      _
    // Predicated region
    $region58: #{_lambda_.1} parent=1 // pred_check
      _
    $region59: #{_lambda_.1} parent=1 // pred_check_branch
      %61 = sbr.rel (0) target = $region61
    $region60: #{_lambda_.1} parent=1 // pred_region
      _
    $region61: #{_lambda_.1} parent=1 // pred_fallthru
      _
    // Predicated region
    $region62: #{_lambda_.1} parent=1 // pred_check
      _
    $region63: #{_lambda_.1} parent=1 // pred_check_branch
      %63 = sbr.rel (0) target = $region65
    $region64: #{_lambda_.1} parent=1 // pred_region
      _
    $region65: #{_lambda_.1} parent=1 // pred_fallthru
      _
    // Predicated region
    $region66: #{_lambda_.1} parent=1 // pred_check
      _
    $region67: #{_lambda_.1} parent=1 // pred_check_branch
      %65 = sbr.rel (0) target = $region69
    $region68: #{_lambda_.1} parent=1 // pred_region
      _
    $region69: #{_lambda_.1} parent=1 // pred_fallthru
      _
    // Predicated region
    $region70: #{_lambda_.1} parent=1 // pred_check
      _
    $region71: #{_lambda_.1} parent=1 // pred_check_branch
      %67 = sbr.rel (0) target = $region73
    $region72: #{_lambda_.1} parent=1 // pred_region
      _
    $region73: #{_lambda_.1} parent=1 // pred_fallthru
      _
    // Predicated region
    $region74: #{_lambda_.1} parent=1 // pred_check
      _
    $region75: #{_lambda_.1} parent=1 // pred_check_branch
      %69 = sbr.rel (0) target = $region77
    $region76: #{_lambda_.1} parent=1 // pred_region
      _
    $region77: #{_lambda_.1} parent=1 // pred_fallthru
      _
    // Predicated region
    $region78: #{_lambda_.1} parent=1 // pred_check
      _
    $region79: #{_lambda_.1} parent=1 // pred_check_branch
      %71 = sbr.rel (0) target = $region81
    $region80: #{_lambda_.1} parent=1 // pred_region
      _
    $region81: #{_lambda_.1} parent=1 // pred_fallthru
      _
    // Predicated region
    $region82: #{_lambda_.1} parent=1 // pred_check
      _
    $region83: #{_lambda_.1} parent=1 // pred_check_branch
      %73 = sbr.rel (0) target = $region85
    $region84: #{_lambda_.1} parent=1 // pred_region
      _
    $region85: #{_lambda_.1} parent=1 // pred_fallthru
      _
    // Predicated region
    $region86: #{_lambda_.1} parent=1 // pred_check
      _
    $region87: #{_lambda_.1} parent=1 // pred_check_branch
      %75 = sbr.rel (0) target = $region89
    $region88: #{_lambda_.1} parent=1 // pred_region
      _
    $region89: #{_lambda_.1} parent=1 // pred_fallthru
      _
    // Predicated region
    $region90: #{_lambda_.1} parent=1 // pred_check
      _
    $region91: #{_lambda_.1} parent=1 // pred_check_branch
      %77 = sbr.rel (0) target = $region93
    $region92: #{_lambda_.1} parent=1 // pred_region
      _
    $region93: #{_lambda_.1} parent=1 // pred_fallthru
      _
    // Predicated region
    $region94: #{_lambda_.1} parent=1 // pred_check
      _
    $region95: #{_lambda_.1} parent=1 // pred_check_branch
      %79 = sbr.rel (0) target = $region97
    $region96: #{_lambda_.1} parent=1 // pred_region
      _
    $region97: #{_lambda_.1} parent=1 // pred_fallthru
      _
    %v81 = vld [vmem:[%s0] sm:$0xff]
    %v82 = vld [vmem:[%s0 + $0x8] sm:$0xff]
    %v83 = vld [vmem:[%s0 + $0x10] sm:$0xff]
    %v84 = vld [vmem:[%s0 + $0x18] sm:$0xff]
    %v85 = vld [vmem:[%s2] sm:$0xff]
    %v86 = vld [vmem:[%s2 + $0x8] sm:$0xff]
    %v87 = vld [vmem:[%s2 + $0x10] sm:$0xff]
    %v88 = vld [vmem:[%s2 + $0x18] sm:$0xff]
    %v89 = vld [vmem:[%s2 + $0x20] sm:$0xff]
    %v90 = vld [vmem:[%s2 + $0x28] sm:$0xff]
    %v91 = vld [vmem:[%s3] sm:$0x1]
    %v93 = vlaneseq
    %v94 = vshrl.u32 %v93, 7
    %v95 = vsub.s32 0, %v94
    %v96 = vrot.slane %v91, %v95
    %vm98 = vcmask 392192
    %v100 = vsel %vm98, %v81, 0
    %v103 = vsel %vm98, %v82, 0
    %v106 = vsel %vm98, %v83, 0
    %v109 = vsel %vm98, %v84, 0
    %111 = vmatprep.subr.mxu0 0.0
    %112 = vmatpush1.msra.mxu0 %v85
    %113 = vmatprep.subr.mxu0 0.0
    %114 = vmatpush1.msra.mxu0 %v86
    %115 = vmatprep.subr.mxu0 0.0
    %116 = vmatpush1.msra.mxu0 %v87
    %117 = vmatprep.subr.mxu0 0.0
    %118 = vmatpush1.msra.mxu0 %v88
    %119 = vmatprep.subr.mxu0 0.0
    %120 = vmatpush1.msra.mxu0 %v89
    %121 = vmatprep.subr.mxu0 0.0
    %122 = vmatpush1.msra.mxu0 %v90
    %123 = vmatprep.subr.mxu0 0.0
    %124 = vmatpush1.msra.mxu0 0.0
    %125 = vmatprep.subr.mxu0 0.0
    %126 = vmatpush1.msra.mxu0 0.0
    %127 = vmatprep.subr.mxu0 0.0
    %128 = vmatpush1.msra.mxu0 0.0
    %129 = vmatprep.subr.mxu0 0.0
    %130 = vmatpush1.msra.mxu0 0.0
    %131 = vmatprep.subr.mxu0 0.0
    %132 = vmatpush1.msra.mxu0 0.0
    %133 = vmatprep.subr.mxu0 0.0
    %134 = vmatpush1.msra.mxu0 0.0
    %135 = vmatprep.subr.mxu0 0.0
    %136 = vmatpush1.msra.mxu0 0.0
    %137 = vmatprep.subr.mxu0 0.0
    %138 = vmatpush1.msra.mxu0 0.0
    %139 = vmatprep.subr.mxu0 0.0
    %140 = vmatpush1.msra.mxu0 0.0
    %141 = vmatprep.subr.mxu0 0.0
    %142 = vmatpush1.msra.mxu0 0.0
    %143 = vmatprep.subr.mxu0 0.0
    %144 = vmatpush1.msra.mxu0 0.0
    %145 = vmatprep.subr.mxu0 0.0
    %146 = vmatpush1.msra.mxu0 0.0
    %147 = vmatprep.subr.mxu0 0.0
    %148 = vmatpush1.msra.mxu0 0.0
    %149 = vmatprep.subr.mxu0 0.0
    %150 = vmatpush1.msra.mxu0 0.0
    %151 = vmatprep.subr.mxu0 0.0
    %152 = vmatpush1.msra.mxu0 0.0
    %153 = vmatprep.subr.mxu0 0.0
    %154 = vmatpush1.msra.mxu0 0.0
    %155 = vmatprep.subr.mxu0 0.0
    %156 = vmatpush1.msra.mxu0 0.0
    %157 = vmatprep.subr.mxu0 0.0
    %158 = vmatpush1.msra.mxu0 0.0
    %159 = vmatprep.subr.mxu0 0.0
    %160 = vmatpush1.msra.mxu0 0.0
    %161 = vmatprep.subr.mxu0 0.0
    %162 = vmatpush1.msra.mxu0 0.0
    %163 = vmatprep.subr.mxu0 0.0
    %164 = vmatpush1.msra.mxu0 0.0
    %165 = vmatprep.subr.mxu0 0.0
    %166 = vmatpush1.msra.mxu0 0.0
    %167 = vmatprep.subr.mxu0 0.0
    %168 = vmatpush1.msra.mxu0 0.0
    %169 = vmatprep.subr.mxu0 0.0
    %170 = vmatpush1.msra.mxu0 0.0
    %171 = vmatprep.subr.mxu0 0.0
    %172 = vmatpush1.msra.mxu0 0.0
    %173 = vmatprep.subr.mxu0 0.0
    %174 = vmatpush1.msra.mxu0 0.0
    %175 = vmatprep.mubr.f32.mxu0 0.0
    %176 = vmatmul.mubr.f32.gmra.mrb[0].mxu0 %v100
    %v177 = vpop.f32.mrb[0].mxu0
    %v178 = vadd.f32 %v96, %v177
    %v179 = vpop.f32.mrb[0].mxu0
    %180 = vmatprep.mubr.f32.mxu0 0.0
    %181 = vmatmul.mubr.f32.gmra.mrb[0].mxu0 %v103
    %v182 = vpop.f32.mrb[0].mxu0
    %v183 = vadd.f32 %v96, %v182
    %v184 = vpop.f32.mrb[0].mxu0
    %185 = vmatprep.mubr.f32.mxu0 0.0
    %186 = vmatmul.mubr.f32.gmra.mrb[0].mxu0 %v106
    %v187 = vpop.f32.mrb[0].mxu0
    %v188 = vadd.f32 %v96, %v187
    %v189 = vpop.f32.mrb[0].mxu0
    %190 = vmatprep.mubr.f32.mxu0 0.0
    %191 = vmatmul.mubr.f32.gmra.mrb[0].mxu0 %v109
    %v192 = vpop.f32.mrb[0].mxu0
    %v193 = vadd.f32 %v96, %v192
    %v194 = vpop.f32.mrb[0].mxu0
    %195 = vdwg.mxu0
    %v196 = vld [vmem:[%s4] sm:$0xff]
    %v197 = vld [vmem:[%s4 + $0x8] sm:$0xff]
    %v198 = vld [vmem:[%s4 + $0x10] sm:$0xff]
    %v199 = vld [vmem:[%s4 + $0x18] sm:$0xff]
    %vm200 = vcmask 261120
    %v202 = vsel %vm200, %v178, 0
    %v205 = vsel %vm200, %v183, 0
    %v208 = vsel %vm200, %v188, 0
    %v211 = vsel %vm200, %v193, 0
    %v214 = vsel %vm200, %v196, 0
    %v217 = vsel %vm200, %v197, 0
    %v220 = vsel %vm200, %v198, 0
    %v223 = vsel %vm200, %v199, 0
    %225 = vmatprep.subr.mxu0 0.0
    %226 = vmatpush1.xpose.msra.mxu0 %v214
    %227 = vmatprep.subr.mxu0 0.0
    %228 = vmatpush1.xpose.msra.mxu0 %v217
    %229 = vmatprep.subr.mxu0 0.0
    %230 = vmatpush1.xpose.msra.mxu0 %v220
    %231 = vmatprep.subr.mxu0 0.0
    %232 = vmatpush1.xpose.msra.mxu0 %v223
    %233 = vmatprep.subr.mxu0 0.0
    %234 = vmatpush1.xpose.msra.mxu0 0.0
    %235 = vmatprep.subr.mxu0 0.0
    %236 = vmatpush1.xpose.msra.mxu0 0.0
    %237 = vmatprep.subr.mxu0 0.0
    %238 = vmatpush1.xpose.msra.mxu0 0.0
    %239 = vmatprep.subr.mxu0 0.0
    %240 = vmatpush1.xpose.msra.mxu0 0.0
    %241 = vmatprep.subr.mxu0 0.0
    %242 = vmatpush1.xpose.msra.mxu0 0.0
    %243 = vmatprep.subr.mxu0 0.0
    %244 = vmatpush1.xpose.msra.mxu0 0.0
    %245 = vmatprep.subr.mxu0 0.0
    %246 = vmatpush1.xpose.msra.mxu0 0.0
    %247 = vmatprep.subr.mxu0 0.0
    %248 = vmatpush1.xpose.msra.mxu0 0.0
    %249 = vmatprep.subr.mxu0 0.0
    %250 = vmatpush1.xpose.msra.mxu0 0.0
    %251 = vmatprep.subr.mxu0 0.0
    %252 = vmatpush1.xpose.msra.mxu0 0.0
    %253 = vmatprep.subr.mxu0 0.0
    %254 = vmatpush1.xpose.msra.mxu0 0.0
    %255 = vmatprep.subr.mxu0 0.0
    %256 = vmatpush1.xpose.msra.mxu0 0.0
    %257 = vmatprep.subr.mxu0 0.0
    %258 = vmatpush1.xpose.msra.mxu0 0.0
    %259 = vmatprep.subr.mxu0 0.0
    %260 = vmatpush1.xpose.msra.mxu0 0.0
    %261 = vmatprep.subr.mxu0 0.0
    %262 = vmatpush1.xpose.msra.mxu0 0.0
    %263 = vmatprep.subr.mxu0 0.0
    %264 = vmatpush1.xpose.msra.mxu0 0.0
    %265 = vmatprep.subr.mxu0 0.0
    %266 = vmatpush1.xpose.msra.mxu0 0.0
    %267 = vmatprep.subr.mxu0 0.0
    %268 = vmatpush1.xpose.msra.mxu0 0.0
    %269 = vmatprep.subr.mxu0 0.0
    %270 = vmatpush1.xpose.msra.mxu0 0.0
    %271 = vmatprep.subr.mxu0 0.0
    %272 = vmatpush1.xpose.msra.mxu0 0.0
    %273 = vmatprep.subr.mxu0 0.0
    %274 = vmatpush1.xpose.msra.mxu0 0.0
    %275 = vmatprep.subr.mxu0 0.0
    %276 = vmatpush1.xpose.msra.mxu0 0.0
    %277 = vmatprep.subr.mxu0 0.0
    %278 = vmatpush1.xpose.msra.mxu0 0.0
    %279 = vmatprep.subr.mxu0 0.0
    %280 = vmatpush1.xpose.msra.mxu0 0.0
    %281 = vmatprep.subr.mxu0 0.0
    %282 = vmatpush1.xpose.msra.mxu0 0.0
    %283 = vmatprep.subr.mxu0 0.0
    %284 = vmatpush1.xpose.msra.mxu0 0.0
    %285 = vmatprep.subr.mxu0 0.0
    %286 = vmatpush1.xpose.msra.mxu0 0.0
    %287 = vmatprep.subr.mxu0 0.0
    %288 = vmatpush1.xpose.msra.mxu0 0.0
    %289 = vmatprep.mubr.f32.mxu0 0.0
    %290 = vmatmul.mubr.f32.gmra.mrb[0].mxu0 %v202
    %v291 = vpop.f32.mrb[0].mxu0
    %v292 = vadd.f32 0.0, %v291
    %v293 = vpop.f32.mrb[0].mxu0
    %294 = vmatprep.mubr.f32.mxu0 0.0
    %295 = vmatmul.mubr.f32.gmra.mrb[0].mxu0 %v205
    %v296 = vpop.f32.mrb[0].mxu0
    %v297 = vadd.f32 0.0, %v296
    %v298 = vpop.f32.mrb[0].mxu0
    %299 = vmatprep.mubr.f32.mxu0 0.0
    %300 = vmatmul.mubr.f32.gmra.mrb[0].mxu0 %v208
    %v301 = vpop.f32.mrb[0].mxu0
    %v302 = vadd.f32 0.0, %v301
    %v303 = vpop.f32.mrb[0].mxu0
    %304 = vmatprep.mubr.f32.mxu0 0.0
    %305 = vmatmul.mubr.f32.gmra.mrb[0].mxu0 %v211
    %v306 = vpop.f32.mrb[0].mxu0
    %v307 = vadd.f32 0.0, %v306
    %v308 = vpop.f32.mrb[0].mxu0
    %309 = vdwg.mxu0
    %v310 = vld [vmem:[%s5] sm:$0x1]
    %v311 = vmul.f32 %v292, 2.0
    %v312 = vmul.f32 %v297, 2.0
    %v313 = vmul.f32 %v302, 2.0
    %v314 = vmul.f32 %v307, 2.0
    %v316 = vlaneseq
    %v317 = vshrl.u32 %v316, 7
    %v318 = vsub.s32 0, %v317
    %v319 = vrot.slane %v310, %v318
    %v321 = vsub.f32 %v319, %v311
    %v322 = vsub.f32 %v319, %v312
    %v323 = vsub.f32 %v319, %v313
    %v324 = vsub.f32 %v319, %v314
    %v325 = vsel %vm200, %v321, inf
    %326 = vmin.xlane.f32.xlu0 %v325
    %v327 = vpop.xlane.xlu0 %326
    %v328 = vsel %vm200, %v322, inf
    %329 = vmin.xlane.f32.xlu0 %v328
    %v330 = vpop.xlane.xlu0 %329
    %v331 = vsel %vm200, %v323, inf
    %332 = vmin.xlane.f32.xlu0 %v331
    %v333 = vpop.xlane.xlu0 %332
    %v334 = vsel %vm200, %v324, inf
    %335 = vmin.xlane.f32.xlu0 %v334
    %v336 = vpop.xlane.xlu0 %335
    %v337 = vlaneseq
    %v338 = vand.u32 %v337, 127
    %vm339 = vcmp.le.f32.partialorder %v321, %v327
    %vm340 = vcmp.le.f32.partialorder %v322, %v330
    %vm341 = vcmp.le.f32.partialorder %v323, %v333
    %vm342 = vcmp.le.f32.partialorder %v324, %v336
    %v343 = vsel %vm339, %v338, 32
    %v344 = vsel %vm340, %v338, 32
    %v345 = vsel %vm341, %v338, 32
    %v346 = vsel %vm342, %v338, 32
    %v347 = vsel %vm200, %v343, 2147483647
    %v348 = vand.u32 %v347, 65535
    %v349 = vshra.s32 %v347, 16
    %v350 = vcvt.s32.f32 %v348
    %v351 = vcvt.s32.f32 %v349
    %352 = vmin.xlane.f32.xlu0 %v351
    %v353 = vpop.xlane.xlu0 %352
    %vm354 = vcmp.eq.f32.partialorder %v351, %v353
    %v355 = vsel %vm354, %v350, inf
    %356 = vmin.xlane.f32.xlu0 %v355
    %v357 = vpop.xlane.xlu0 %356
    %v358 = vcvt.f32.s32 %v357
    %v359 = vcvt.f32.s32 %v353
    %v360 = vshll.u32 %v359, 16
    %v361 = vadd.s32 %v360, %v358
    %v362 = vsel %vm200, %v344, 2147483647
    %v363 = vand.u32 %v362, 65535
    %v364 = vshra.s32 %v362, 16
    %v365 = vcvt.s32.f32 %v363
    %v366 = vcvt.s32.f32 %v364
    %367 = vmin.xlane.f32.xlu0 %v366
    %v368 = vpop.xlane.xlu0 %367
    %vm369 = vcmp.eq.f32.partialorder %v366, %v368
    %v370 = vsel %vm369, %v365, inf
    %371 = vmin.xlane.f32.xlu0 %v370
    %v372 = vpop.xlane.xlu0 %371
    %v373 = vcvt.f32.s32 %v372
    %v374 = vcvt.f32.s32 %v368
    %v375 = vshll.u32 %v374, 16
    %v376 = vadd.s32 %v375, %v373
    %v377 = vsel %vm200, %v345, 2147483647
    %v378 = vand.u32 %v377, 65535
    %v379 = vshra.s32 %v377, 16
    %v380 = vcvt.s32.f32 %v378
    %v381 = vcvt.s32.f32 %v379
    %382 = vmin.xlane.f32.xlu0 %v381
    %v383 = vpop.xlane.xlu0 %382
    %vm384 = vcmp.eq.f32.partialorder %v381, %v383
    %v385 = vsel %vm384, %v380, inf
    %386 = vmin.xlane.f32.xlu0 %v385
    %v387 = vpop.xlane.xlu0 %386
    %v388 = vcvt.f32.s32 %v387
    %v389 = vcvt.f32.s32 %v383
    %v390 = vshll.u32 %v389, 16
    %v391 = vadd.s32 %v390, %v388
    %v392 = vsel %vm200, %v346, 2147483647
    %v393 = vand.u32 %v392, 65535
    %v394 = vshra.s32 %v392, 16
    %v395 = vcvt.s32.f32 %v393
    %v396 = vcvt.s32.f32 %v394
    %397 = vmin.xlane.f32.xlu0 %v396
    %v398 = vpop.xlane.xlu0 %397
    %vm399 = vcmp.eq.f32.partialorder %v396, %v398
    %v400 = vsel %vm399, %v395, inf
    %401 = vmin.xlane.f32.xlu0 %v400
    %v402 = vpop.xlane.xlu0 %401
    %v403 = vcvt.f32.s32 %v402
    %v404 = vcvt.f32.s32 %v398
    %v405 = vshll.u32 %v404, 16
    %v406 = vadd.s32 %v405, %v403
    %vm407 = vcmask 7168
    %408 = vst.msk [vmem:[%s24] sm:$0xff] %vm407, %v361
    %409 = vst.msk [vmem:[%s24 + $0x8] sm:$0xff] %vm407, %v376
    %410 = vst.msk [vmem:[%s24 + $0x10] sm:$0xff] %vm407, %v391
    %411 = vst.msk [vmem:[%s24 + $0x18] sm:$0xff] %vm407, %v406
    %v412 = vld [vmem:[%s1] sm:$0xff]
    %v413 = vld [vmem:[%s1 + $0x8] sm:$0xff]
    %v414 = vld [vmem:[%s1 + $0x10] sm:$0xff]
    %v415 = vld [vmem:[%s1 + $0x18] sm:$0xff]
    %vm416 = vcmp.ne.s32.totalorder %v412, 0
    %vm417 = vcmp.ne.s32.totalorder %v413, 0
    %vm418 = vcmp.ne.s32.totalorder %v414, 0
    %vm419 = vcmp.ne.s32.totalorder %v415, 0
    %v420 = vsel %vm416, 32, %v361
    %v421 = vsel %vm417, 32, %v376
    %v422 = vsel %vm418, 32, %v391
    %v423 = vsel %vm419, 32, %v406
    %424 = vset.pattern.permute.xlu0 0
    %425 = vperm.xlu0 %424, %v420
    %v426 = vpop.permute.xlu0 %425
    %427 = vset.pattern.permute.xlu0 0
    %428 = vperm.xlu0 %427, %v421
    %v429 = vpop.permute.xlu0 %428
    %430 = vset.pattern.permute.xlu0 0
    %431 = vperm.xlu0 %430, %v422
    %v432 = vpop.permute.xlu0 %431
    %433 = vset.pattern.permute.xlu0 0
    %434 = vperm.xlu0 %433, %v423
    %v435 = vpop.permute.xlu0 %434
    %vm436 = vcmp.eq.s32.totalorder %v338, %v426
    %vm437 = vcmp.eq.s32.totalorder %v338, %v429
    %vm438 = vcmp.eq.s32.totalorder %v338, %v432
    %vm439 = vcmp.eq.s32.totalorder %v338, %v435
    %v440 = vsel %vm436, 1, 0
    %v441 = vsel %vm437, 1, 0
    %v442 = vsel %vm438, 1, 0
    %v443 = vsel %vm439, 1, 0
    %v444 = vcvt.s32.f32 %v440
    %v445 = vcvt.s32.f32 %v441
    %v446 = vcvt.s32.f32 %v442
    %v447 = vcvt.s32.f32 %v443
    %v448 = vpack.c.bf16 %v445, %v444
    %v449 = vpack.c.bf16 %v447, %v446
    %v450 = vld [vmem:[%s7] sm:$0xff]
    %v451 = vld [vmem:[%s7 + $0x8] sm:$0xff]
    %v452 = vld [vmem:[%s6] sm:$0xf]
    %v453 = vld [vmem:[%s6 + $0x4] sm:$0xf]
    %v454 = vld [vmem:[%s6 + $0x8] sm:$0xf]
    %v455 = vld [vmem:[%s6 + $0xc] sm:$0xf]
    %v456 = vld [vmem:[%s6 + $0x10] sm:$0xf]
    %v462 = vunpack.c.l.b16 %v452
    %v463 = vunpack.c.l.b16 %v453
    %v464 = vunpack.c.l.b16 %v454
    %v465 = vunpack.c.l.b16 %v455
    %v466 = vunpack.c.l.b16 %v456
    %v467 = vpack.c.b16 %v463, %v462
    %v468 = vpack.c.b16 %v465, %v464
    %v469 = vpack.c.b16 %v466, %v466
    %vm472 = vcmask 326656
    %v474 = vsel %vm472, %v448, 0
    %v477 = vsel %vm472, %v449, 0
    %vm479 = vcmask 1043456
    %v481 = vsel %vm479, %v469, 0
    %483 = vmatprep.subr.bf16.mxu0 0
    %484 = vmatpush1.bf16.msra.mxu0 %v467
    %485 = vmatprep.subr.bf16.mxu0 0
    %486 = vmatpush1.bf16.msra.mxu0 %v468
    %487 = vmatprep.subr.bf16.mxu0 0
    %488 = vmatpush1.bf16.msra.mxu0 %v481
    %489 = vmatprep.subr.bf16.mxu0 0
    %490 = vmatpush1.bf16.msra.mxu0 0
    %491 = vmatprep.subr.bf16.mxu0 0
    %492 = vmatpush1.bf16.msra.mxu0 0
    %493 = vmatprep.subr.bf16.mxu0 0
    %494 = vmatpush1.bf16.msra.mxu0 0
    %495 = vmatprep.subr.bf16.mxu0 0
    %496 = vmatpush1.bf16.msra.mxu0 0
    %497 = vmatprep.subr.bf16.mxu0 0
    %498 = vmatpush1.bf16.msra.mxu0 0
    %499 = vmatprep.subr.bf16.mxu0 0
    %500 = vmatpush1.bf16.msra.mxu0 0
    %501 = vmatprep.subr.bf16.mxu0 0
    %502 = vmatpush1.bf16.msra.mxu0 0
    %503 = vmatprep.subr.bf16.mxu0 0
    %504 = vmatpush1.bf16.msra.mxu0 0
    %505 = vmatprep.subr.bf16.mxu0 0
    %506 = vmatpush1.bf16.msra.mxu0 0
    %507 = vmatprep.subr.bf16.mxu0 0
    %508 = vmatpush1.bf16.msra.mxu0 0
    %509 = vmatprep.subr.bf16.mxu0 0
    %510 = vmatpush1.bf16.msra.mxu0 0
    %511 = vmatprep.subr.bf16.mxu0 0
    %512 = vmatpush1.bf16.msra.mxu0 0
    %513 = vmatprep.subr.bf16.mxu0 0
    %514 = vmatpush1.bf16.msra.mxu0 0
    %515 = vmatprep.mubr.bf16.mxu0 0
    %516 = vmatmul.mubr.bf16.gmra.mrb[0].mxu0 %v474
    %v517 = vpop.f32.mrb[0].mxu0
    %v518 = vadd.f32 %v450, %v517
    %v519 = vpop.f32.mrb[0].mxu0
    %v520 = vpop.f32.mrb[0].mxu0
    %v521 = vadd.f32 %v451, %v520
    %v522 = vpop.f32.mrb[0].mxu0
    %523 = vmatprep.mubr.bf16.mxu0 0
    %524 = vmatmul.mubr.bf16.gmra.mrb[0].mxu0 %v477
    %v525 = vpop.f32.mrb[0].mxu0
    %v526 = vadd.f32 %v450, %v525
    %v527 = vpop.f32.mrb[0].mxu0
    %v528 = vpop.f32.mrb[0].mxu0
    %v529 = vadd.f32 %v451, %v528
    %v530 = vpop.f32.mrb[0].mxu0
    %531 = vdwg.mxu0
    %v532 = vld [vmem:[%s8] sm:$0x1]
    %v533 = vld [vmem:[%s9] sm:$0x1]
    %v534 = vsel %vm200, %v518, 0.0
    %535 = vadd.xlane.f32.xlu0 %v534
    %v536 = vpop.xlane.xlu0 %535
    %v537 = vsel %vm200, %v521, 0.0
    %538 = vadd.xlane.f32.xlu0 %v537
    %v539 = vpop.xlane.xlu0 %538
    %v540 = vsel %vm200, %v526, 0.0
    %541 = vadd.xlane.f32.xlu0 %v540
    %v542 = vpop.xlane.xlu0 %541
    %v543 = vsel %vm200, %v529, 0.0
    %544 = vadd.xlane.f32.xlu0 %v543
    %v545 = vpop.xlane.xlu0 %544
    %v546 = vrcp.pop 32.0
    %v547 = vmul.f32 %v536, %v546
    %v548 = vmul.f32 %v539, %v546
    %v549 = vmul.f32 %v542, %v546
    %v550 = vmul.f32 %v545, %v546
    %v551 = vsub.f32 %v518, %v547
    %v552 = vsub.f32 %v521, %v548
    %v553 = vsub.f32 %v526, %v549
    %v554 = vsub.f32 %v529, %v550
    %v555 = vmul.f32 %v551, %v551
    %v556 = vmul.f32 %v552, %v552
    %v557 = vmul.f32 %v553, %v553
    %v558 = vmul.f32 %v554, %v554
    %v559 = vsel %vm200, %v555, 0.0
    %560 = vadd.xlane.f32.xlu0 %v559
    %v561 = vpop.xlane.xlu0 %560
    %v562 = vsel %vm200, %v556, 0.0
    %563 = vadd.xlane.f32.xlu0 %v562
    %v564 = vpop.xlane.xlu0 %563
    %v565 = vsel %vm200, %v557, 0.0
    %566 = vadd.xlane.f32.xlu0 %v565
    %v567 = vpop.xlane.xlu0 %566
    %v568 = vsel %vm200, %v558, 0.0
    %569 = vadd.xlane.f32.xlu0 %v568
    %v570 = vpop.xlane.xlu0 %569
    %v571 = vmul.f32 %v561, %v546
    %v572 = vmul.f32 %v564, %v546
    %v573 = vmul.f32 %v567, %v546
    %v574 = vmul.f32 %v570, %v546
    %v575 = vadd.f32 %v571, 1e-05
    %v576 = vadd.f32 %v572, 1e-05
    %v577 = vadd.f32 %v573, 1e-05
    %v578 = vadd.f32 %v574, 1e-05
    %v579 = vrsqrt.pop %v575
    %v580 = vrsqrt.pop %v576
    %v581 = vrsqrt.pop %v577
    %v582 = vrsqrt.pop %v578
    %v583 = vmul.f32 %v551, %v579
    %v584 = vmul.f32 %v552, %v580
    %v585 = vmul.f32 %v553, %v581
    %v586 = vmul.f32 %v554, %v582
    %v588 = vlaneseq
    %v589 = vshrl.u32 %v588, 7
    %v590 = vsub.s32 0, %v589
    %v591 = vrot.slane %v532, %v590
    %v593 = vmul.f32 %v583, %v591
    %v594 = vmul.f32 %v584, %v591
    %v595 = vmul.f32 %v585, %v591
    %v596 = vmul.f32 %v586, %v591
    %v598 = vlaneseq
    %v599 = vshrl.u32 %v598, 7
    %v600 = vsub.s32 0, %v599
    %v601 = vrot.slane %v533, %v600
    %v603 = vadd.f32 %v593, %v601
    %v604 = vadd.f32 %v594, %v601
    %v605 = vadd.f32 %v595, %v601
    %v606 = vadd.f32 %v596, %v601
    %v607 = vpack.c.bf16 %v604, %v603
    %v608 = vpack.c.bf16 %v606, %v605
    %v609 = vld [vmem:[%s12] sm:$0xf]
    %v610 = vld [vmem:[%s12 + $0x4] sm:$0xf]
    %v611 = vld [vmem:[%s12 + $0x8] sm:$0xf]
    %v612 = vld [vmem:[%s12 + $0xc] sm:$0xf]
    %v613 = vld [vmem:[%s13] sm:$0x1]
    %v615 = vlaneseq
    %v616 = vshrl.u32 %v615, 7
    %v617 = vsub.s32 0, %v616
    %v618 = vrot.slane %v613, %v617
    %v624 = vunpack.c.l.b16 %v609
    %v625 = vunpack.c.l.b16 %v610
    %v626 = vunpack.c.l.b16 %v611
    %v627 = vunpack.c.l.b16 %v612
    %v628 = vpack.c.b16 %v625, %v624
    %v629 = vpack.c.b16 %v627, %v626
    %v633 = vsel %vm200, %v607, 0
    %v636 = vsel %vm200, %v608, 0
    %638 = vmatprep.subr.bf16.mxu0 0
    %639 = vmatpush1.bf16.msra.mxu0 %v628
    %640 = vmatprep.subr.bf16.mxu0 0
    %641 = vmatpush1.bf16.msra.mxu0 %v629
    %642 = vmatprep.subr.bf16.mxu0 0
    %643 = vmatpush1.bf16.msra.mxu0 0
    %644 = vmatprep.subr.bf16.mxu0 0
    %645 = vmatpush1.bf16.msra.mxu0 0
    %646 = vmatprep.subr.bf16.mxu0 0
    %647 = vmatpush1.bf16.msra.mxu0 0
    %648 = vmatprep.subr.bf16.mxu0 0
    %649 = vmatpush1.bf16.msra.mxu0 0
    %650 = vmatprep.subr.bf16.mxu0 0
    %651 = vmatpush1.bf16.msra.mxu0 0
    %652 = vmatprep.subr.bf16.mxu0 0
    %653 = vmatpush1.bf16.msra.mxu0 0
    %654 = vmatprep.subr.bf16.mxu0 0
    %655 = vmatpush1.bf16.msra.mxu0 0
    %656 = vmatprep.subr.bf16.mxu0 0
    %657 = vmatpush1.bf16.msra.mxu0 0
    %658 = vmatprep.subr.bf16.mxu0 0
    %659 = vmatpush1.bf16.msra.mxu0 0
    %660 = vmatprep.subr.bf16.mxu0 0
    %661 = vmatpush1.bf16.msra.mxu0 0
    %662 = vmatprep.subr.bf16.mxu0 0
    %663 = vmatpush1.bf16.msra.mxu0 0
    %664 = vmatprep.subr.bf16.mxu0 0
    %665 = vmatpush1.bf16.msra.mxu0 0
    %666 = vmatprep.subr.bf16.mxu0 0
    %667 = vmatpush1.bf16.msra.mxu0 0
    %668 = vmatprep.subr.bf16.mxu0 0
    %669 = vmatpush1.bf16.msra.mxu0 0
    %670 = vmatprep.mubr.bf16.mxu0 0
    %671 = vmatmul.mubr.bf16.gmra.mrb[0].mxu0 %v633
    %v672 = vpop.f32.mrb[0].mxu0
    %v673 = vadd.f32 %v618, %v672
    %v674 = vpop.f32.mrb[0].mxu0
    %v675 = vpop.f32.mrb[0].mxu0
    %v676 = vadd.f32 %v618, %v675
    %v677 = vpop.f32.mrb[0].mxu0
    %678 = vmatprep.mubr.bf16.mxu0 0
    %679 = vmatmul.mubr.bf16.gmra.mrb[0].mxu0 %v636
    %v680 = vpop.f32.mrb[0].mxu0
    %v681 = vadd.f32 %v618, %v680
    %v682 = vpop.f32.mrb[0].mxu0
    %v683 = vpop.f32.mrb[0].mxu0
    %v684 = vadd.f32 %v618, %v683
    %v685 = vpop.f32.mrb[0].mxu0
    %686 = vdwg.mxu0
    %689 = vrot.lane.b32.xlu0 %v673, 96
    %v690 = vpop.permute.xlu0 %689
    %691 = vrot.lane.b32.xlu0 %v676, 96
    %v692 = vpop.permute.xlu0 %691
    %vm693 = vcmask 64512
    %v694 = vsel %vm693, %v673, 0
    %v696 = vsel %vm693, %v676, 0
    %v698 = vsel %vm693, %v690, 0
    %v700 = vsel %vm693, %v692, 0
    %702 = vmatprep.subr.mxu0 0.0
    %703 = vmatpush1.xpose.msra.mxu0 %v698
    %704 = vmatprep.subr.mxu0 0.0
    %705 = vmatpush1.xpose.msra.mxu0 %v700
    %706 = vmatprep.subr.mxu0 0.0
    %707 = vmatpush1.xpose.msra.mxu0 0.0
    %708 = vmatprep.subr.mxu0 0.0
    %709 = vmatpush1.xpose.msra.mxu0 0.0
    %710 = vmatprep.subr.mxu0 0.0
    %711 = vmatpush1.xpose.msra.mxu0 0.0
    %712 = vmatprep.subr.mxu0 0.0
    %713 = vmatpush1.xpose.msra.mxu0 0.0
    %714 = vmatprep.subr.mxu0 0.0
    %715 = vmatpush1.xpose.msra.mxu0 0.0
    %716 = vmatprep.subr.mxu0 0.0
    %717 = vmatpush1.xpose.msra.mxu0 0.0
    %718 = vmatprep.subr.mxu0 0.0
    %719 = vmatpush1.xpose.msra.mxu0 0.0
    %720 = vmatprep.subr.mxu0 0.0
    %721 = vmatpush1.xpose.msra.mxu0 0.0
    %722 = vmatprep.subr.mxu0 0.0
    %723 = vmatpush1.xpose.msra.mxu0 0.0
    %724 = vmatprep.subr.mxu0 0.0
    %725 = vmatpush1.xpose.msra.mxu0 0.0
    %726 = vmatprep.subr.mxu0 0.0
    %727 = vmatpush1.xpose.msra.mxu0 0.0
    %728 = vmatprep.subr.mxu0 0.0
    %729 = vmatpush1.xpose.msra.mxu0 0.0
    %730 = vmatprep.subr.mxu0 0.0
    %731 = vmatpush1.xpose.msra.mxu0 0.0
    %732 = vmatprep.subr.mxu0 0.0
    %733 = vmatpush1.xpose.msra.mxu0 0.0
    %734 = vmatprep.subr.mxu0 0.0
    %735 = vmatpush1.xpose.msra.mxu0 0.0
    %736 = vmatprep.subr.mxu0 0.0
    %737 = vmatpush1.xpose.msra.mxu0 0.0
    %738 = vmatprep.subr.mxu0 0.0
    %739 = vmatpush1.xpose.msra.mxu0 0.0
    %740 = vmatprep.subr.mxu0 0.0
    %741 = vmatpush1.xpose.msra.mxu0 0.0
    %742 = vmatprep.subr.mxu0 0.0
    %743 = vmatpush1.xpose.msra.mxu0 0.0
    %744 = vmatprep.subr.mxu0 0.0
    %745 = vmatpush1.xpose.msra.mxu0 0.0
    %746 = vmatprep.subr.mxu0 0.0
    %747 = vmatpush1.xpose.msra.mxu0 0.0
    %748 = vmatprep.subr.mxu0 0.0
    %749 = vmatpush1.xpose.msra.mxu0 0.0
    %750 = vmatprep.subr.mxu0 0.0
    %751 = vmatpush1.xpose.msra.mxu0 0.0
    %752 = vmatprep.subr.mxu0 0.0
    %753 = vmatpush1.xpose.msra.mxu0 0.0
    %754 = vmatprep.subr.mxu0 0.0
    %755 = vmatpush1.xpose.msra.mxu0 0.0
    %756 = vmatprep.subr.mxu0 0.0
    %757 = vmatpush1.xpose.msra.mxu0 0.0
    %758 = vmatprep.subr.mxu0 0.0
    %759 = vmatpush1.xpose.msra.mxu0 0.0
    %760 = vmatprep.subr.mxu0 0.0
    %761 = vmatpush1.xpose.msra.mxu0 0.0
    %762 = vmatprep.subr.mxu0 0.0
    %763 = vmatpush1.xpose.msra.mxu0 0.0
    %764 = vmatprep.subr.mxu0 0.0
    %765 = vmatpush1.xpose.msra.mxu0 0.0
    %766 = vmatprep.mubr.f32.mxu0 0.0
    %767 = vmatmul.mubr.f32.gmra.mrb[0].mxu0 %v694
    %v768 = vpop.f32.mrb[0].mxu0
    %v769 = vadd.f32 0.0, %v768
    %v770 = vpop.f32.mrb[0].mxu0
    %771 = vmatprep.mubr.f32.mxu0 0.0
    %772 = vmatmul.mubr.f32.gmra.mrb[0].mxu0 %v696
    %v773 = vpop.f32.mrb[0].mxu0
    %v774 = vadd.f32 0.0, %v773
    %v775 = vpop.f32.mrb[0].mxu0
    %776 = vdwg.mxu0
    %779 = vrot.lane.b32.xlu0 %v681, 96
    %v780 = vpop.permute.xlu0 %779
    %781 = vrot.lane.b32.xlu0 %v684, 96
    %v782 = vpop.permute.xlu0 %781
    %v783 = vsel %vm693, %v681, 0
    %v785 = vsel %vm693, %v684, 0
    %v787 = vsel %vm693, %v780, 0
    %v789 = vsel %vm693, %v782, 0
    %791 = vmatprep.subr.mxu0 0.0
    %792 = vmatpush1.xpose.msra.mxu0 %v787
    %793 = vmatprep.subr.mxu0 0.0
    %794 = vmatpush1.xpose.msra.mxu0 %v789
    %795 = vmatprep.subr.mxu0 0.0
    %796 = vmatpush1.xpose.msra.mxu0 0.0
    %797 = vmatprep.subr.mxu0 0.0
    %798 = vmatpush1.xpose.msra.mxu0 0.0
    %799 = vmatprep.subr.mxu0 0.0
    %800 = vmatpush1.xpose.msra.mxu0 0.0
    %801 = vmatprep.subr.mxu0 0.0
    %802 = vmatpush1.xpose.msra.mxu0 0.0
    %803 = vmatprep.subr.mxu0 0.0
    %804 = vmatpush1.xpose.msra.mxu0 0.0
    %805 = vmatprep.subr.mxu0 0.0
    %806 = vmatpush1.xpose.msra.mxu0 0.0
    %807 = vmatprep.subr.mxu0 0.0
    %808 = vmatpush1.xpose.msra.mxu0 0.0
    %809 = vmatprep.subr.mxu0 0.0
    %810 = vmatpush1.xpose.msra.mxu0 0.0
    %811 = vmatprep.subr.mxu0 0.0
    %812 = vmatpush1.xpose.msra.mxu0 0.0
    %813 = vmatprep.subr.mxu0 0.0
    %814 = vmatpush1.xpose.msra.mxu0 0.0
    %815 = vmatprep.subr.mxu0 0.0
    %816 = vmatpush1.xpose.msra.mxu0 0.0
    %817 = vmatprep.subr.mxu0 0.0
    %818 = vmatpush1.xpose.msra.mxu0 0.0
    %819 = vmatprep.subr.mxu0 0.0
    %820 = vmatpush1.xpose.msra.mxu0 0.0
    %821 = vmatprep.subr.mxu0 0.0
    %822 = vmatpush1.xpose.msra.mxu0 0.0
    %823 = vmatprep.subr.mxu0 0.0
    %824 = vmatpush1.xpose.msra.mxu0 0.0
    %825 = vmatprep.subr.mxu0 0.0
    %826 = vmatpush1.xpose.msra.mxu0 0.0
    %827 = vmatprep.subr.mxu0 0.0
    %828 = vmatpush1.xpose.msra.mxu0 0.0
    %829 = vmatprep.subr.mxu0 0.0
    %830 = vmatpush1.xpose.msra.mxu0 0.0
    %831 = vmatprep.subr.mxu0 0.0
    %832 = vmatpush1.xpose.msra.mxu0 0.0
    %833 = vmatprep.subr.mxu0 0.0
    %834 = vmatpush1.xpose.msra.mxu0 0.0
    %835 = vmatprep.subr.mxu0 0.0
    %836 = vmatpush1.xpose.msra.mxu0 0.0
    %837 = vmatprep.subr.mxu0 0.0
    %838 = vmatpush1.xpose.msra.mxu0 0.0
    %839 = vmatprep.subr.mxu0 0.0
    %840 = vmatpush1.xpose.msra.mxu0 0.0
    %841 = vmatprep.subr.mxu0 0.0
    %842 = vmatpush1.xpose.msra.mxu0 0.0
    %843 = vmatprep.subr.mxu0 0.0
    %844 = vmatpush1.xpose.msra.mxu0 0.0
    %845 = vmatprep.subr.mxu0 0.0
    %846 = vmatpush1.xpose.msra.mxu0 0.0
    %847 = vmatprep.subr.mxu0 0.0
    %848 = vmatpush1.xpose.msra.mxu0 0.0
    %849 = vmatprep.subr.mxu0 0.0
    %850 = vmatpush1.xpose.msra.mxu0 0.0
    %851 = vmatprep.subr.mxu0 0.0
    %852 = vmatpush1.xpose.msra.mxu0 0.0
    %853 = vmatprep.subr.mxu0 0.0
    %854 = vmatpush1.xpose.msra.mxu0 0.0
    %855 = vmatprep.mubr.f32.mxu0 0.0
    %856 = vmatmul.mubr.f32.gmra.mrb[0].mxu0 %v783
    %v857 = vpop.f32.mrb[0].mxu0
    %v858 = vadd.f32 0.0, %v857
    %v859 = vpop.f32.mrb[0].mxu0
    %860 = vmatprep.mubr.f32.mxu0 0.0
    %861 = vmatmul.mubr.f32.gmra.mrb[0].mxu0 %v785
    %v862 = vpop.f32.mrb[0].mxu0
    %v863 = vadd.f32 0.0, %v862
    %v864 = vpop.f32.mrb[0].mxu0
    %865 = vdwg.mxu0
    %v866 = vmul.f32 %v769, 0.35355338
    %v867 = vmul.f32 %v774, 0.35355338
    %v868 = vmul.f32 %v858, 0.35355338
    %v869 = vmul.f32 %v863, 0.35355338
    %vm870 = vcmask 130048
    %v871 = vsel %vm870, %v866, -inf
    %872 = vmax.xlane.f32.xlu0 %v871
    %v873 = vpop.xlane.xlu0 %872
    %v874 = vsel %vm870, %v867, -inf
    %875 = vmax.xlane.f32.xlu0 %v874
    %v876 = vpop.xlane.xlu0 %875
    %v877 = vsel %vm870, %v868, -inf
    %878 = vmax.xlane.f32.xlu0 %v877
    %v879 = vpop.xlane.xlu0 %878
    %v880 = vsel %vm870, %v869, -inf
    %881 = vmax.xlane.f32.xlu0 %v880
    %v882 = vpop.xlane.xlu0 %881
    %v883 = vsub.f32 %v866, %v873
    %v884 = vsub.f32 %v867, %v876
    %v885 = vsub.f32 %v868, %v879
    %v886 = vsub.f32 %v869, %v882
    %v887 = vmul.f32 %v883, 1.442695
    %v888 = vpow.pop %v887
    %v889 = vmul.f32 %v884, 1.442695
    %v890 = vpow.pop %v889
    %v891 = vmul.f32 %v885, 1.442695
    %v892 = vpow.pop %v891
    %v893 = vmul.f32 %v886, 1.442695
    %v894 = vpow.pop %v893
    %v895 = vsel %vm870, %v888, 0.0
    %896 = vadd.xlane.f32.xlu0 %v895
    %v897 = vpop.xlane.xlu0 %896
    %v898 = vsel %vm870, %v890, 0.0
    %899 = vadd.xlane.f32.xlu0 %v898
    %v900 = vpop.xlane.xlu0 %899
    %v901 = vsel %vm870, %v892, 0.0
    %902 = vadd.xlane.f32.xlu0 %v901
    %v903 = vpop.xlane.xlu0 %902
    %v904 = vsel %vm870, %v894, 0.0
    %905 = vadd.xlane.f32.xlu0 %v904
    %v906 = vpop.xlane.xlu0 %905
    %v907 = vrcp.pop %v897
    %v908 = vrcp.pop %v900
    %v909 = vrcp.pop %v903
    %v910 = vrcp.pop %v906
    %v911 = vmul.f32 %v888, %v907
    %v912 = vmul.f32 %v890, %v908
    %v913 = vmul.f32 %v892, %v909
    %v914 = vmul.f32 %v894, %v910
    %915 = vrot.lane.b32.xlu0 %v673, 64
    %v916 = vpop.permute.xlu0 %915
    %917 = vrot.lane.b32.xlu0 %v676, 64
    %v918 = vpop.permute.xlu0 %917
    %v922 = vsel %vm870, %v911, 0
    %v925 = vsel %vm870, %v912, 0
    %927 = vmatprep.subr.mxu0 0.0
    %928 = vmatpush1.msra.mxu0 %v916
    %929 = vmatprep.subr.mxu0 0.0
    %930 = vmatpush1.msra.mxu0 %v918
    %931 = vmatprep.subr.mxu0 0.0
    %932 = vmatpush1.msra.mxu0 0.0
    %933 = vmatprep.subr.mxu0 0.0
    %934 = vmatpush1.msra.mxu0 0.0
    %935 = vmatprep.subr.mxu0 0.0
    %936 = vmatpush1.msra.mxu0 0.0
    %937 = vmatprep.subr.mxu0 0.0
    %938 = vmatpush1.msra.mxu0 0.0
    %939 = vmatprep.subr.mxu0 0.0
    %940 = vmatpush1.msra.mxu0 0.0
    %941 = vmatprep.subr.mxu0 0.0
    %942 = vmatpush1.msra.mxu0 0.0
    %943 = vmatprep.subr.mxu0 0.0
    %944 = vmatpush1.msra.mxu0 0.0
    %945 = vmatprep.subr.mxu0 0.0
    %946 = vmatpush1.msra.mxu0 0.0
    %947 = vmatprep.subr.mxu0 0.0
    %948 = vmatpush1.msra.mxu0 0.0
    %949 = vmatprep.subr.mxu0 0.0
    %950 = vmatpush1.msra.mxu0 0.0
    %951 = vmatprep.subr.mxu0 0.0
    %952 = vmatpush1.msra.mxu0 0.0
    %953 = vmatprep.subr.mxu0 0.0
    %954 = vmatpush1.msra.mxu0 0.0
    %955 = vmatprep.subr.mxu0 0.0
    %956 = vmatpush1.msra.mxu0 0.0
    %957 = vmatprep.subr.mxu0 0.0
    %958 = vmatpush1.msra.mxu0 0.0
    %959 = vmatprep.subr.mxu0 0.0
    %960 = vmatpush1.msra.mxu0 0.0
    %961 = vmatprep.subr.mxu0 0.0
    %962 = vmatpush1.msra.mxu0 0.0
    %963 = vmatprep.subr.mxu0 0.0
    %964 = vmatpush1.msra.mxu0 0.0
    %965 = vmatprep.subr.mxu0 0.0
    %966 = vmatpush1.msra.mxu0 0.0
    %967 = vmatprep.subr.mxu0 0.0
    %968 = vmatpush1.msra.mxu0 0.0
    %969 = vmatprep.subr.mxu0 0.0
    %970 = vmatpush1.msra.mxu0 0.0
    %971 = vmatprep.subr.mxu0 0.0
    %972 = vmatpush1.msra.mxu0 0.0
    %973 = vmatprep.subr.mxu0 0.0
    %974 = vmatpush1.msra.mxu0 0.0
    %975 = vmatprep.subr.mxu0 0.0
    %976 = vmatpush1.msra.mxu0 0.0
    %977 = vmatprep.subr.mxu0 0.0
    %978 = vmatpush1.msra.mxu0 0.0
    %979 = vmatprep.subr.mxu0 0.0
    %980 = vmatpush1.msra.mxu0 0.0
    %981 = vmatprep.subr.mxu0 0.0
    %982 = vmatpush1.msra.mxu0 0.0
    %983 = vmatprep.subr.mxu0 0.0
    %984 = vmatpush1.msra.mxu0 0.0
    %985 = vmatprep.subr.mxu0 0.0
    %986 = vmatpush1.msra.mxu0 0.0
    %987 = vmatprep.subr.mxu0 0.0
    %988 = vmatpush1.msra.mxu0 0.0
    %989 = vmatprep.subr.mxu0 0.0
    %990 = vmatpush1.msra.mxu0 0.0
    %991 = vmatprep.mubr.f32.mxu0 0.0
    %992 = vmatmul.mubr.f32.gmra.mrb[0].mxu0 %v922
    %v993 = vpop.f32.mrb[0].mxu0
    %v994 = vadd.f32 0.0, %v993
    %v995 = vpop.f32.mrb[0].mxu0
    %996 = vmatprep.mubr.f32.mxu0 0.0
    %997 = vmatmul.mubr.f32.gmra.mrb[0].mxu0 %v925
    %v998 = vpop.f32.mrb[0].mxu0
    %v999 = vadd.f32 0.0, %v998
    %v1000 = vpop.f32.mrb[0].mxu0
    %1001 = vdwg.mxu0
    %1002 = vrot.lane.b32.xlu0 %v681, 64
    %v1003 = vpop.permute.xlu0 %1002
    %1004 = vrot.lane.b32.xlu0 %v684, 64
    %v1005 = vpop.permute.xlu0 %1004
    %v1009 = vsel %vm870, %v913, 0
    %v1012 = vsel %vm870, %v914, 0
    %1014 = vmatprep.subr.mxu0 0.0
    %1015 = vmatpush1.msra.mxu0 %v1003
    %1016 = vmatprep.subr.mxu0 0.0
    %1017 = vmatpush1.msra.mxu0 %v1005
    %1018 = vmatprep.subr.mxu0 0.0
    %1019 = vmatpush1.msra.mxu0 0.0
    %1020 = vmatprep.subr.mxu0 0.0
    %1021 = vmatpush1.msra.mxu0 0.0
    %1022 = vmatprep.subr.mxu0 0.0
    %1023 = vmatpush1.msra.mxu0 0.0
    %1024 = vmatprep.subr.mxu0 0.0
    %1025 = vmatpush1.msra.mxu0 0.0
    %1026 = vmatprep.subr.mxu0 0.0
    %1027 = vmatpush1.msra.mxu0 0.0
    %1028 = vmatprep.subr.mxu0 0.0
    %1029 = vmatpush1.msra.mxu0 0.0
    %1030 = vmatprep.subr.mxu0 0.0
    %1031 = vmatpush1.msra.mxu0 0.0
    %1032 = vmatprep.subr.mxu0 0.0
    %1033 = vmatpush1.msra.mxu0 0.0
    %1034 = vmatprep.subr.mxu0 0.0
    %1035 = vmatpush1.msra.mxu0 0.0
    %1036 = vmatprep.subr.mxu0 0.0
    %1037 = vmatpush1.msra.mxu0 0.0
    %1038 = vmatprep.subr.mxu0 0.0
    %1039 = vmatpush1.msra.mxu0 0.0
    %1040 = vmatprep.subr.mxu0 0.0
    %1041 = vmatpush1.msra.mxu0 0.0
    %1042 = vmatprep.subr.mxu0 0.0
    %1043 = vmatpush1.msra.mxu0 0.0
    %1044 = vmatprep.subr.mxu0 0.0
    %1045 = vmatpush1.msra.mxu0 0.0
    %1046 = vmatprep.subr.mxu0 0.0
    %1047 = vmatpush1.msra.mxu0 0.0
    %1048 = vmatprep.subr.mxu0 0.0
    %1049 = vmatpush1.msra.mxu0 0.0
    %1050 = vmatprep.subr.mxu0 0.0
    %1051 = vmatpush1.msra.mxu0 0.0
    %1052 = vmatprep.subr.mxu0 0.0
    %1053 = vmatpush1.msra.mxu0 0.0
    %1054 = vmatprep.subr.mxu0 0.0
    %1055 = vmatpush1.msra.mxu0 0.0
    %1056 = vmatprep.subr.mxu0 0.0
    %1057 = vmatpush1.msra.mxu0 0.0
    %1058 = vmatprep.subr.mxu0 0.0
    %1059 = vmatpush1.msra.mxu0 0.0
    %1060 = vmatprep.subr.mxu0 0.0
    %1061 = vmatpush1.msra.mxu0 0.0
    %1062 = vmatprep.subr.mxu0 0.0
    %1063 = vmatpush1.msra.mxu0 0.0
    %1064 = vmatprep.subr.mxu0 0.0
    %1065 = vmatpush1.msra.mxu0 0.0
    %1066 = vmatprep.subr.mxu0 0.0
    %1067 = vmatpush1.msra.mxu0 0.0
    %1068 = vmatprep.subr.mxu0 0.0
    %1069 = vmatpush1.msra.mxu0 0.0
    %1070 = vmatprep.subr.mxu0 0.0
    %1071 = vmatpush1.msra.mxu0 0.0
    %1072 = vmatprep.subr.mxu0 0.0
    %1073 = vmatpush1.msra.mxu0 0.0
    %1074 = vmatprep.subr.mxu0 0.0
    %1075 = vmatpush1.msra.mxu0 0.0
    %1076 = vmatprep.subr.mxu0 0.0
    %1077 = vmatpush1.msra.mxu0 0.0
    %1078 = vmatprep.mubr.f32.mxu0 0.0
    %1079 = vmatmul.mubr.f32.gmra.mrb[0].mxu0 %v1009
    %v1080 = vpop.f32.mrb[0].mxu0
    %v1081 = vadd.f32 0.0, %v1080
    %v1082 = vpop.f32.mrb[0].mxu0
    %1083 = vmatprep.mubr.f32.mxu0 0.0
    %1084 = vmatmul.mubr.f32.gmra.mrb[0].mxu0 %v1012
    %v1085 = vpop.f32.mrb[0].mxu0
    %v1086 = vadd.f32 0.0, %v1085
    %v1087 = vpop.f32.mrb[0].mxu0
    %1088 = vdwg.mxu0
    %1089 = vrot.lane.b32.xlu0 %v673, 120
    %v1090 = vpop.permute.xlu0 %1089
    %1091 = vrot.lane.b32.xlu0 %v676, 120
    %v1092 = vpop.permute.xlu0 %1091
    %1093 = vrot.lane.b32.xlu0 %v673, 88
    %v1094 = vpop.permute.xlu0 %1093
    %1095 = vrot.lane.b32.xlu0 %v676, 88
    %v1096 = vpop.permute.xlu0 %1095
    %v1097 = vsel %vm693, %v1090, 0
    %v1099 = vsel %vm693, %v1092, 0
    %v1101 = vsel %vm693, %v1094, 0
    %v1103 = vsel %vm693, %v1096, 0
    %1105 = vmatprep.subr.mxu0 0.0
    %1106 = vmatpush1.xpose.msra.mxu0 %v1101
    %1107 = vmatprep.subr.mxu0 0.0
    %1108 = vmatpush1.xpose.msra.mxu0 %v1103
    %1109 = vmatprep.subr.mxu0 0.0
    %1110 = vmatpush1.xpose.msra.mxu0 0.0
    %1111 = vmatprep.subr.mxu0 0.0
    %1112 = vmatpush1.xpose.msra.mxu0 0.0
    %1113 = vmatprep.subr.mxu0 0.0
    %1114 = vmatpush1.xpose.msra.mxu0 0.0
    %1115 = vmatprep.subr.mxu0 0.0
    %1116 = vmatpush1.xpose.msra.mxu0 0.0
    %1117 = vmatprep.subr.mxu0 0.0
    %1118 = vmatpush1.xpose.msra.mxu0 0.0
    %1119 = vmatprep.subr.mxu0 0.0
    %1120 = vmatpush1.xpose.msra.mxu0 0.0
    %1121 = vmatprep.subr.mxu0 0.0
    %1122 = vmatpush1.xpose.msra.mxu0 0.0
    %1123 = vmatprep.subr.mxu0 0.0
    %1124 = vmatpush1.xpose.msra.mxu0 0.0
    %1125 = vmatprep.subr.mxu0 0.0
    %1126 = vmatpush1.xpose.msra.mxu0 0.0
    %1127 = vmatprep.subr.mxu0 0.0
    %1128 = vmatpush1.xpose.msra.mxu0 0.0
    %1129 = vmatprep.subr.mxu0 0.0
    %1130 = vmatpush1.xpose.msra.mxu0 0.0
    %1131 = vmatprep.subr.mxu0 0.0
    %1132 = vmatpush1.xpose.msra.mxu0 0.0
    %1133 = vmatprep.subr.mxu0 0.0
    %1134 = vmatpush1.xpose.msra.mxu0 0.0
    %1135 = vmatprep.subr.mxu0 0.0
    %1136 = vmatpush1.xpose.msra.mxu0 0.0
    %1137 = vmatprep.subr.mxu0 0.0
    %1138 = vmatpush1.xpose.msra.mxu0 0.0
    %1139 = vmatprep.subr.mxu0 0.0
    %1140 = vmatpush1.xpose.msra.mxu0 0.0
    %1141 = vmatprep.subr.mxu0 0.0
    %1142 = vmatpush1.xpose.msra.mxu0 0.0
    %1143 = vmatprep.subr.mxu0 0.0
    %1144 = vmatpush1.xpose.msra.mxu0 0.0
    %1145 = vmatprep.subr.mxu0 0.0
    %1146 = vmatpush1.xpose.msra.mxu0 0.0
    %1147 = vmatprep.subr.mxu0 0.0
    %1148 = vmatpush1.xpose.msra.mxu0 0.0
    %1149 = vmatprep.subr.mxu0 0.0
    %1150 = vmatpush1.xpose.msra.mxu0 0.0
    %1151 = vmatprep.subr.mxu0 0.0
    %1152 = vmatpush1.xpose.msra.mxu0 0.0
    %1153 = vmatprep.subr.mxu0 0.0
    %1154 = vmatpush1.xpose.msra.mxu0 0.0
    %1155 = vmatprep.subr.mxu0 0.0
    %1156 = vmatpush1.xpose.msra.mxu0 0.0
    %1157 = vmatprep.subr.mxu0 0.0
    %1158 = vmatpush1.xpose.msra.mxu0 0.0
    %1159 = vmatprep.subr.mxu0 0.0
    %1160 = vmatpush1.xpose.msra.mxu0 0.0
    %1161 = vmatprep.subr.mxu0 0.0
    %1162 = vmatpush1.xpose.msra.mxu0 0.0
    %1163 = vmatprep.subr.mxu0 0.0
    %1164 = vmatpush1.xpose.msra.mxu0 0.0
    %1165 = vmatprep.subr.mxu0 0.0
    %1166 = vmatpush1.xpose.msra.mxu0 0.0
    %1167 = vmatprep.subr.mxu0 0.0
    %1168 = vmatpush1.xpose.msra.mxu0 0.0
    %1169 = vmatprep.mubr.f32.mxu0 0.0
    %1170 = vmatmul.mubr.f32.gmra.mrb[0].mxu0 %v1097
    %v1171 = vpop.f32.mrb[0].mxu0
    %v1172 = vadd.f32 0.0, %v1171
    %v1173 = vpop.f32.mrb[0].mxu0
    %1174 = vmatprep.mubr.f32.mxu0 0.0
    %1175 = vmatmul.mubr.f32.gmra.mrb[0].mxu0 %v1099
    %v1176 = vpop.f32.mrb[0].mxu0
    %v1177 = vadd.f32 0.0, %v1176
    %v1178 = vpop.f32.mrb[0].mxu0
    %1179 = vdwg.mxu0
    %1180 = vrot.lane.b32.xlu0 %v681, 120
    %v1181 = vpop.permute.xlu0 %1180
    %1182 = vrot.lane.b32.xlu0 %v684, 120
    %v1183 = vpop.permute.xlu0 %1182
    %1184 = vrot.lane.b32.xlu0 %v681, 88
    %v1185 = vpop.permute.xlu0 %1184
    %1186 = vrot.lane.b32.xlu0 %v684, 88
    %v1187 = vpop.permute.xlu0 %1186
    %v1188 = vsel %vm693, %v1181, 0
    %v1190 = vsel %vm693, %v1183, 0
    %v1192 = vsel %vm693, %v1185, 0
    %v1194 = vsel %vm693, %v1187, 0
    %1196 = vmatprep.subr.mxu0 0.0
    %1197 = vmatpush1.xpose.msra.mxu0 %v1192
    %1198 = vmatprep.subr.mxu0 0.0
    %1199 = vmatpush1.xpose.msra.mxu0 %v1194
    %1200 = vmatprep.subr.mxu0 0.0
    %1201 = vmatpush1.xpose.msra.mxu0 0.0
    %1202 = vmatprep.subr.mxu0 0.0
    %1203 = vmatpush1.xpose.msra.mxu0 0.0
    %1204 = vmatprep.subr.mxu0 0.0
    %1205 = vmatpush1.xpose.msra.mxu0 0.0
    %1206 = vmatprep.subr.mxu0 0.0
    %1207 = vmatpush1.xpose.msra.mxu0 0.0
    %1208 = vmatprep.subr.mxu0 0.0
    %1209 = vmatpush1.xpose.msra.mxu0 0.0
    %1210 = vmatprep.subr.mxu0 0.0
    %1211 = vmatpush1.xpose.msra.mxu0 0.0
    %1212 = vmatprep.subr.mxu0 0.0
    %1213 = vmatpush1.xpose.msra.mxu0 0.0
    %1214 = vmatprep.subr.mxu0 0.0
    %1215 = vmatpush1.xpose.msra.mxu0 0.0
    %1216 = vmatprep.subr.mxu0 0.0
    %1217 = vmatpush1.xpose.msra.mxu0 0.0
    %1218 = vmatprep.subr.mxu0 0.0
    %1219 = vmatpush1.xpose.msra.mxu0 0.0
    %1220 = vmatprep.subr.mxu0 0.0
    %1221 = vmatpush1.xpose.msra.mxu0 0.0
    %1222 = vmatprep.subr.mxu0 0.0
    %1223 = vmatpush1.xpose.msra.mxu0 0.0
    %1224 = vmatprep.subr.mxu0 0.0
    %1225 = vmatpush1.xpose.msra.mxu0 0.0
    %1226 = vmatprep.subr.mxu0 0.0
    %1227 = vmatpush1.xpose.msra.mxu0 0.0
    %1228 = vmatprep.subr.mxu0 0.0
    %1229 = vmatpush1.xpose.msra.mxu0 0.0
    %1230 = vmatprep.subr.mxu0 0.0
    %1231 = vmatpush1.xpose.msra.mxu0 0.0
    %1232 = vmatprep.subr.mxu0 0.0
    %1233 = vmatpush1.xpose.msra.mxu0 0.0
    %1234 = vmatprep.subr.mxu0 0.0
    %1235 = vmatpush1.xpose.msra.mxu0 0.0
    %1236 = vmatprep.subr.mxu0 0.0
    %1237 = vmatpush1.xpose.msra.mxu0 0.0
    %1238 = vmatprep.subr.mxu0 0.0
    %1239 = vmatpush1.xpose.msra.mxu0 0.0
    %1240 = vmatprep.subr.mxu0 0.0
    %1241 = vmatpush1.xpose.msra.mxu0 0.0
    %1242 = vmatprep.subr.mxu0 0.0
    %1243 = vmatpush1.xpose.msra.mxu0 0.0
    %1244 = vmatprep.subr.mxu0 0.0
    %1245 = vmatpush1.xpose.msra.mxu0 0.0
    %1246 = vmatprep.subr.mxu0 0.0
    %1247 = vmatpush1.xpose.msra.mxu0 0.0
    %1248 = vmatprep.subr.mxu0 0.0
    %1249 = vmatpush1.xpose.msra.mxu0 0.0
    %1250 = vmatprep.subr.mxu0 0.0
    %1251 = vmatpush1.xpose.msra.mxu0 0.0
    %1252 = vmatprep.subr.mxu0 0.0
    %1253 = vmatpush1.xpose.msra.mxu0 0.0
    %1254 = vmatprep.subr.mxu0 0.0
    %1255 = vmatpush1.xpose.msra.mxu0 0.0
    %1256 = vmatprep.subr.mxu0 0.0
    %1257 = vmatpush1.xpose.msra.mxu0 0.0
    %1258 = vmatprep.subr.mxu0 0.0
    %1259 = vmatpush1.xpose.msra.mxu0 0.0
    %1260 = vmatprep.mubr.f32.mxu0 0.0
    %1261 = vmatmul.mubr.f32.gmra.mrb[0].mxu0 %v1188
    %v1262 = vpop.f32.mrb[0].mxu0
    %v1263 = vadd.f32 0.0, %v1262
    %v1264 = vpop.f32.mrb[0].mxu0
    %1265 = vmatprep.mubr.f32.mxu0 0.0
    %1266 = vmatmul.mubr.f32.gmra.mrb[0].mxu0 %v1190
    %v1267 = vpop.f32.mrb[0].mxu0
    %v1268 = vadd.f32 0.0, %v1267
    %v1269 = vpop.f32.mrb[0].mxu0
    %1270 = vdwg.mxu0
    %v1271 = vmul.f32 %v1172, 0.35355338
    %v1272 = vmul.f32 %v1177, 0.35355338
    %v1273 = vmul.f32 %v1263, 0.35355338
    %v1274 = vmul.f32 %v1268, 0.35355338
    %v1275 = vsel %vm870, %v1271, -inf
    %1276 = vmax.xlane.f32.xlu0 %v1275
    %v1277 = vpop.xlane.xlu0 %1276
    %v1278 = vsel %vm870, %v1272, -inf
    %1279 = vmax.xlane.f32.xlu0 %v1278
    %v1280 = vpop.xlane.xlu0 %1279
    %v1281 = vsel %vm870, %v1273, -inf
    %1282 = vmax.xlane.f32.xlu0 %v1281
    %v1283 = vpop.xlane.xlu0 %1282
    %v1284 = vsel %vm870, %v1274, -inf
    %1285 = vmax.xlane.f32.xlu0 %v1284
    %v1286 = vpop.xlane.xlu0 %1285
    %v1287 = vsub.f32 %v1271, %v1277
    %v1288 = vsub.f32 %v1272, %v1280
    %v1289 = vsub.f32 %v1273, %v1283
    %v1290 = vsub.f32 %v1274, %v1286
    %v1291 = vmul.f32 %v1287, 1.442695
    %v1292 = vpow.pop %v1291
    %v1293 = vmul.f32 %v1288, 1.442695
    %v1294 = vpow.pop %v1293
    %v1295 = vmul.f32 %v1289, 1.442695
    %v1296 = vpow.pop %v1295
    %v1297 = vmul.f32 %v1290, 1.442695
    %v1298 = vpow.pop %v1297
    %v1299 = vsel %vm870, %v1292, 0.0
    %1300 = vadd.xlane.f32.xlu0 %v1299
    %v1301 = vpop.xlane.xlu0 %1300
    %v1302 = vsel %vm870, %v1294, 0.0
    %1303 = vadd.xlane.f32.xlu0 %v1302
    %v1304 = vpop.xlane.xlu0 %1303
    %v1305 = vsel %vm870, %v1296, 0.0
    %1306 = vadd.xlane.f32.xlu0 %v1305
    %v1307 = vpop.xlane.xlu0 %1306
    %v1308 = vsel %vm870, %v1298, 0.0
    %1309 = vadd.xlane.f32.xlu0 %v1308
    %v1310 = vpop.xlane.xlu0 %1309
    %v1311 = vrcp.pop %v1301
    %v1312 = vrcp.pop %v1304
    %v1313 = vrcp.pop %v1307
    %v1314 = vrcp.pop %v1310
    %v1315 = vmul.f32 %v1292, %v1311
    %v1316 = vmul.f32 %v1294, %v1312
    %v1317 = vmul.f32 %v1296, %v1313
    %v1318 = vmul.f32 %v1298, %v1314
    %1319 = vrot.lane.b32.xlu0 %v673, 56
    %v1320 = vpop.permute.xlu0 %1319
    %1321 = vrot.lane.b32.xlu0 %v676, 56
    %v1322 = vpop.permute.xlu0 %1321
    %v1326 = vsel %vm870, %v1315, 0
    %v1329 = vsel %vm870, %v1316, 0
    %1331 = vmatprep.subr.mxu0 0.0
    %1332 = vmatpush1.msra.mxu0 %v1320
    %1333 = vmatprep.subr.mxu0 0.0
    %1334 = vmatpush1.msra.mxu0 %v1322
    %1335 = vmatprep.subr.mxu0 0.0
    %1336 = vmatpush1.msra.mxu0 0.0
    %1337 = vmatprep.subr.mxu0 0.0
    %1338 = vmatpush1.msra.mxu0 0.0
    %1339 = vmatprep.subr.mxu0 0.0
    %1340 = vmatpush1.msra.mxu0 0.0
    %1341 = vmatprep.subr.mxu0 0.0
    %1342 = vmatpush1.msra.mxu0 0.0
    %1343 = vmatprep.subr.mxu0 0.0
    %1344 = vmatpush1.msra.mxu0 0.0
    %1345 = vmatprep.subr.mxu0 0.0
    %1346 = vmatpush1.msra.mxu0 0.0
    %1347 = vmatprep.subr.mxu0 0.0
    %1348 = vmatpush1.msra.mxu0 0.0
    %1349 = vmatprep.subr.mxu0 0.0
    %1350 = vmatpush1.msra.mxu0 0.0
    %1351 = vmatprep.subr.mxu0 0.0
    %1352 = vmatpush1.msra.mxu0 0.0
    %1353 = vmatprep.subr.mxu0 0.0
    %1354 = vmatpush1.msra.mxu0 0.0
    %1355 = vmatprep.subr.mxu0 0.0
    %1356 = vmatpush1.msra.mxu0 0.0
    %1357 = vmatprep.subr.mxu0 0.0
    %1358 = vmatpush1.msra.mxu0 0.0
    %1359 = vmatprep.subr.mxu0 0.0
    %1360 = vmatpush1.msra.mxu0 0.0
    %1361 = vmatprep.subr.mxu0 0.0
    %1362 = vmatpush1.msra.mxu0 0.0
    %1363 = vmatprep.subr.mxu0 0.0
    %1364 = vmatpush1.msra.mxu0 0.0
    %1365 = vmatprep.subr.mxu0 0.0
    %1366 = vmatpush1.msra.mxu0 0.0
    %1367 = vmatprep.subr.mxu0 0.0
    %1368 = vmatpush1.msra.mxu0 0.0
    %1369 = vmatprep.subr.mxu0 0.0
    %1370 = vmatpush1.msra.mxu0 0.0
    %1371 = vmatprep.subr.mxu0 0.0
    %1372 = vmatpush1.msra.mxu0 0.0
    %1373 = vmatprep.subr.mxu0 0.0
    %1374 = vmatpush1.msra.mxu0 0.0
    %1375 = vmatprep.subr.mxu0 0.0
    %1376 = vmatpush1.msra.mxu0 0.0
    %1377 = vmatprep.subr.mxu0 0.0
    %1378 = vmatpush1.msra.mxu0 0.0
    %1379 = vmatprep.subr.mxu0 0.0
    %1380 = vmatpush1.msra.mxu0 0.0
    %1381 = vmatprep.subr.mxu0 0.0
    %1382 = vmatpush1.msra.mxu0 0.0
    %1383 = vmatprep.subr.mxu0 0.0
    %1384 = vmatpush1.msra.mxu0 0.0
    %1385 = vmatprep.subr.mxu0 0.0
    %1386 = vmatpush1.msra.mxu0 0.0
    %1387 = vmatprep.subr.mxu0 0.0
    %1388 = vmatpush1.msra.mxu0 0.0
    %1389 = vmatprep.subr.mxu0 0.0
    %1390 = vmatpush1.msra.mxu0 0.0
    %1391 = vmatprep.subr.mxu0 0.0
    %1392 = vmatpush1.msra.mxu0 0.0
    %1393 = vmatprep.subr.mxu0 0.0
    %1394 = vmatpush1.msra.mxu0 0.0
    %1395 = vmatprep.mubr.f32.mxu0 0.0
    %1396 = vmatmul.mubr.f32.gmra.mrb[0].mxu0 %v1326
    %v1397 = vpop.f32.mrb[0].mxu0
    %v1398 = vadd.f32 0.0, %v1397
    %v1399 = vpop.f32.mrb[0].mxu0
    %1400 = vmatprep.mubr.f32.mxu0 0.0
    %1401 = vmatmul.mubr.f32.gmra.mrb[0].mxu0 %v1329
    %v1402 = vpop.f32.mrb[0].mxu0
    %v1403 = vadd.f32 0.0, %v1402
    %v1404 = vpop.f32.mrb[0].mxu0
    %1405 = vdwg.mxu0
    %1406 = vrot.lane.b32.xlu0 %v681, 56
    %v1407 = vpop.permute.xlu0 %1406
    %1408 = vrot.lane.b32.xlu0 %v684, 56
    %v1409 = vpop.permute.xlu0 %1408
    %v1413 = vsel %vm870, %v1317, 0
    %v1416 = vsel %vm870, %v1318, 0
    %1418 = vmatprep.subr.mxu0 0.0
    %1419 = vmatpush1.msra.mxu0 %v1407
    %1420 = vmatprep.subr.mxu0 0.0
    %1421 = vmatpush1.msra.mxu0 %v1409
    %1422 = vmatprep.subr.mxu0 0.0
    %1423 = vmatpush1.msra.mxu0 0.0
    %1424 = vmatprep.subr.mxu0 0.0
    %1425 = vmatpush1.msra.mxu0 0.0
    %1426 = vmatprep.subr.mxu0 0.0
    %1427 = vmatpush1.msra.mxu0 0.0
    %1428 = vmatprep.subr.mxu0 0.0
    %1429 = vmatpush1.msra.mxu0 0.0
    %1430 = vmatprep.subr.mxu0 0.0
    %1431 = vmatpush1.msra.mxu0 0.0
    %1432 = vmatprep.subr.mxu0 0.0
    %1433 = vmatpush1.msra.mxu0 0.0
    %1434 = vmatprep.subr.mxu0 0.0
    %1435 = vmatpush1.msra.mxu0 0.0
    %1436 = vmatprep.subr.mxu0 0.0
    %1437 = vmatpush1.msra.mxu0 0.0
    %1438 = vmatprep.subr.mxu0 0.0
    %1439 = vmatpush1.msra.mxu0 0.0
    %1440 = vmatprep.subr.mxu0 0.0
    %1441 = vmatpush1.msra.mxu0 0.0
    %1442 = vmatprep.subr.mxu0 0.0
    %1443 = vmatpush1.msra.mxu0 0.0
    %1444 = vmatprep.subr.mxu0 0.0
    %1445 = vmatpush1.msra.mxu0 0.0
    %1446 = vmatprep.subr.mxu0 0.0
    %1447 = vmatpush1.msra.mxu0 0.0
    %1448 = vmatprep.subr.mxu0 0.0
    %1449 = vmatpush1.msra.mxu0 0.0
    %1450 = vmatprep.subr.mxu0 0.0
    %1451 = vmatpush1.msra.mxu0 0.0
    %1452 = vmatprep.subr.mxu0 0.0
    %1453 = vmatpush1.msra.mxu0 0.0
    %1454 = vmatprep.subr.mxu0 0.0
    %1455 = vmatpush1.msra.mxu0 0.0
    %1456 = vmatprep.subr.mxu0 0.0
    %1457 = vmatpush1.msra.mxu0 0.0
    %1458 = vmatprep.subr.mxu0 0.0
    %1459 = vmatpush1.msra.mxu0 0.0
    %1460 = vmatprep.subr.mxu0 0.0
    %1461 = vmatpush1.msra.mxu0 0.0
    %1462 = vmatprep.subr.mxu0 0.0
    %1463 = vmatpush1.msra.mxu0 0.0
    %1464 = vmatprep.subr.mxu0 0.0
    %1465 = vmatpush1.msra.mxu0 0.0
    %1466 = vmatprep.subr.mxu0 0.0
    %1467 = vmatpush1.msra.mxu0 0.0
    %1468 = vmatprep.subr.mxu0 0.0
    %1469 = vmatpush1.msra.mxu0 0.0
    %1470 = vmatprep.subr.mxu0 0.0
    %1471 = vmatpush1.msra.mxu0 0.0
    %1472 = vmatprep.subr.mxu0 0.0
    %1473 = vmatpush1.msra.mxu0 0.0
    %1474 = vmatprep.subr.mxu0 0.0
    %1475 = vmatpush1.msra.mxu0 0.0
    %1476 = vmatprep.subr.mxu0 0.0
    %1477 = vmatpush1.msra.mxu0 0.0
    %1478 = vmatprep.subr.mxu0 0.0
    %1479 = vmatpush1.msra.mxu0 0.0
    %1480 = vmatprep.subr.mxu0 0.0
    %1481 = vmatpush1.msra.mxu0 0.0
    %1482 = vmatprep.mubr.f32.mxu0 0.0
    %1483 = vmatmul.mubr.f32.gmra.mrb[0].mxu0 %v1413
    %v1484 = vpop.f32.mrb[0].mxu0
    %v1485 = vadd.f32 0.0, %v1484
    %v1486 = vpop.f32.mrb[0].mxu0
    %1487 = vmatprep.mubr.f32.mxu0 0.0
    %1488 = vmatmul.mubr.f32.gmra.mrb[0].mxu0 %v1416
    %v1489 = vpop.f32.mrb[0].mxu0
    %v1490 = vadd.f32 0.0, %v1489
    %v1491 = vpop.f32.mrb[0].mxu0
    %1492 = vdwg.mxu0
    %1493 = vrot.lane.b32.xlu0 %v673, 112
    %v1494 = vpop.permute.xlu0 %1493
    %1495 = vrot.lane.b32.xlu0 %v676, 112
    %v1496 = vpop.permute.xlu0 %1495
    %1497 = vrot.lane.b32.xlu0 %v673, 80
    %v1498 = vpop.permute.xlu0 %1497
    %1499 = vrot.lane.b32.xlu0 %v676, 80
    %v1500 = vpop.permute.xlu0 %1499
    %v1501 = vsel %vm693, %v1494, 0
    %v1503 = vsel %vm693, %v1496, 0
    %v1505 = vsel %vm693, %v1498, 0
    %v1507 = vsel %vm693, %v1500, 0
    %1509 = vmatprep.subr.mxu0 0.0
    %1510 = vmatpush1.xpose.msra.mxu0 %v1505
    %1511 = vmatprep.subr.mxu0 0.0
    %1512 = vmatpush1.xpose.msra.mxu0 %v1507
    %1513 = vmatprep.subr.mxu0 0.0
    %1514 = vmatpush1.xpose.msra.mxu0 0.0
    %1515 = vmatprep.subr.mxu0 0.0
    %1516 = vmatpush1.xpose.msra.mxu0 0.0
    %1517 = vmatprep.subr.mxu0 0.0
    %1518 = vmatpush1.xpose.msra.mxu0 0.0
    %1519 = vmatprep.subr.mxu0 0.0
    %1520 = vmatpush1.xpose.msra.mxu0 0.0
    %1521 = vmatprep.subr.mxu0 0.0
    %1522 = vmatpush1.xpose.msra.mxu0 0.0
    %1523 = vmatprep.subr.mxu0 0.0
    %1524 = vmatpush1.xpose.msra.mxu0 0.0
    %1525 = vmatprep.subr.mxu0 0.0
    %1526 = vmatpush1.xpose.msra.mxu0 0.0
    %1527 = vmatprep.subr.mxu0 0.0
    %1528 = vmatpush1.xpose.msra.mxu0 0.0
    %1529 = vmatprep.subr.mxu0 0.0
    %1530 = vmatpush1.xpose.msra.mxu0 0.0
    %1531 = vmatprep.subr.mxu0 0.0
    %1532 = vmatpush1.xpose.msra.mxu0 0.0
    %1533 = vmatprep.subr.mxu0 0.0
    %1534 = vmatpush1.xpose.msra.mxu0 0.0
    %1535 = vmatprep.subr.mxu0 0.0
    %1536 = vmatpush1.xpose.msra.mxu0 0.0
    %1537 = vmatprep.subr.mxu0 0.0
    %1538 = vmatpush1.xpose.msra.mxu0 0.0
    %1539 = vmatprep.subr.mxu0 0.0
    %1540 = vmatpush1.xpose.msra.mxu0 0.0
    %1541 = vmatprep.subr.mxu0 0.0
    %1542 = vmatpush1.xpose.msra.mxu0 0.0
    %1543 = vmatprep.subr.mxu0 0.0
    %1544 = vmatpush1.xpose.msra.mxu0 0.0
    %1545 = vmatprep.subr.mxu0 0.0
    %1546 = vmatpush1.xpose.msra.mxu0 0.0
    %1547 = vmatprep.subr.mxu0 0.0
    %1548 = vmatpush1.xpose.msra.mxu0 0.0
    %1549 = vmatprep.subr.mxu0 0.0
    %1550 = vmatpush1.xpose.msra.mxu0 0.0
    %1551 = vmatprep.subr.mxu0 0.0
    %1552 = vmatpush1.xpose.msra.mxu0 0.0
    %1553 = vmatprep.subr.mxu0 0.0
    %1554 = vmatpush1.xpose.msra.mxu0 0.0
    %1555 = vmatprep.subr.mxu0 0.0
    %1556 = vmatpush1.xpose.msra.mxu0 0.0
    %1557 = vmatprep.subr.mxu0 0.0
    %1558 = vmatpush1.xpose.msra.mxu0 0.0
    %1559 = vmatprep.subr.mxu0 0.0
    %1560 = vmatpush1.xpose.msra.mxu0 0.0
    %1561 = vmatprep.subr.mxu0 0.0
    %1562 = vmatpush1.xpose.msra.mxu0 0.0
    %1563 = vmatprep.subr.mxu0 0.0
    %1564 = vmatpush1.xpose.msra.mxu0 0.0
    %1565 = vmatprep.subr.mxu0 0.0
    %1566 = vmatpush1.xpose.msra.mxu0 0.0
    %1567 = vmatprep.subr.mxu0 0.0
    %1568 = vmatpush1.xpose.msra.mxu0 0.0
    %1569 = vmatprep.subr.mxu0 0.0
    %1570 = vmatpush1.xpose.msra.mxu0 0.0
    %1571 = vmatprep.subr.mxu0 0.0
    %1572 = vmatpush1.xpose.msra.mxu0 0.0
    %1573 = vmatprep.mubr.f32.mxu0 0.0
    %1574 = vmatmul.mubr.f32.gmra.mrb[0].mxu0 %v1501
    %v1575 = vpop.f32.mrb[0].mxu0
    %v1576 = vadd.f32 0.0, %v1575
    %v1577 = vpop.f32.mrb[0].mxu0
    %1578 = vmatprep.mubr.f32.mxu0 0.0
    %1579 = vmatmul.mubr.f32.gmra.mrb[0].mxu0 %v1503
    %v1580 = vpop.f32.mrb[0].mxu0
    %v1581 = vadd.f32 0.0, %v1580
    %v1582 = vpop.f32.mrb[0].mxu0
    %1583 = vdwg.mxu0
    %1584 = vrot.lane.b32.xlu0 %v681, 112
    %v1585 = vpop.permute.xlu0 %1584
    %1586 = vrot.lane.b32.xlu0 %v684, 112
    %v1587 = vpop.permute.xlu0 %1586
    %1588 = vrot.lane.b32.xlu0 %v681, 80
    %v1589 = vpop.permute.xlu0 %1588
    %1590 = vrot.lane.b32.xlu0 %v684, 80
    %v1591 = vpop.permute.xlu0 %1590
    %v1592 = vsel %vm693, %v1585, 0
    %v1594 = vsel %vm693, %v1587, 0
    %v1596 = vsel %vm693, %v1589, 0
    %v1598 = vsel %vm693, %v1591, 0
    %1600 = vmatprep.subr.mxu0 0.0
    %1601 = vmatpush1.xpose.msra.mxu0 %v1596
    %1602 = vmatprep.subr.mxu0 0.0
    %1603 = vmatpush1.xpose.msra.mxu0 %v1598
    %1604 = vmatprep.subr.mxu0 0.0
    %1605 = vmatpush1.xpose.msra.mxu0 0.0
    %1606 = vmatprep.subr.mxu0 0.0
    %1607 = vmatpush1.xpose.msra.mxu0 0.0
    %1608 = vmatprep.subr.mxu0 0.0
    %1609 = vmatpush1.xpose.msra.mxu0 0.0
    %1610 = vmatprep.subr.mxu0 0.0
    %1611 = vmatpush1.xpose.msra.mxu0 0.0
    %1612 = vmatprep.subr.mxu0 0.0
    %1613 = vmatpush1.xpose.msra.mxu0 0.0
    %1614 = vmatprep.subr.mxu0 0.0
    %1615 = vmatpush1.xpose.msra.mxu0 0.0
    %1616 = vmatprep.subr.mxu0 0.0
    %1617 = vmatpush1.xpose.msra.mxu0 0.0
    %1618 = vmatprep.subr.mxu0 0.0
    %1619 = vmatpush1.xpose.msra.mxu0 0.0
    %1620 = vmatprep.subr.mxu0 0.0
    %1621 = vmatpush1.xpose.msra.mxu0 0.0
    %1622 = vmatprep.subr.mxu0 0.0
    %1623 = vmatpush1.xpose.msra.mxu0 0.0
    %1624 = vmatprep.subr.mxu0 0.0
    %1625 = vmatpush1.xpose.msra.mxu0 0.0
    %1626 = vmatprep.subr.mxu0 0.0
    %1627 = vmatpush1.xpose.msra.mxu0 0.0
    %1628 = vmatprep.subr.mxu0 0.0
    %1629 = vmatpush1.xpose.msra.mxu0 0.0
    %1630 = vmatprep.subr.mxu0 0.0
    %1631 = vmatpush1.xpose.msra.mxu0 0.0
    %1632 = vmatprep.subr.mxu0 0.0
    %1633 = vmatpush1.xpose.msra.mxu0 0.0
    %1634 = vmatprep.subr.mxu0 0.0
    %1635 = vmatpush1.xpose.msra.mxu0 0.0
    %1636 = vmatprep.subr.mxu0 0.0
    %1637 = vmatpush1.xpose.msra.mxu0 0.0
    %1638 = vmatprep.subr.mxu0 0.0
    %1639 = vmatpush1.xpose.msra.mxu0 0.0
    %1640 = vmatprep.subr.mxu0 0.0
    %1641 = vmatpush1.xpose.msra.mxu0 0.0
    %1642 = vmatprep.subr.mxu0 0.0
    %1643 = vmatpush1.xpose.msra.mxu0 0.0
    %1644 = vmatprep.subr.mxu0 0.0
    %1645 = vmatpush1.xpose.msra.mxu0 0.0
    %1646 = vmatprep.subr.mxu0 0.0
    %1647 = vmatpush1.xpose.msra.mxu0 0.0
    %1648 = vmatprep.subr.mxu0 0.0
    %1649 = vmatpush1.xpose.msra.mxu0 0.0
    %1650 = vmatprep.subr.mxu0 0.0
    %1651 = vmatpush1.xpose.msra.mxu0 0.0
    %1652 = vmatprep.subr.mxu0 0.0
    %1653 = vmatpush1.xpose.msra.mxu0 0.0
    %1654 = vmatprep.subr.mxu0 0.0
    %1655 = vmatpush1.xpose.msra.mxu0 0.0
    %1656 = vmatprep.subr.mxu0 0.0
    %1657 = vmatpush1.xpose.msra.mxu0 0.0
    %1658 = vmatprep.subr.mxu0 0.0
    %1659 = vmatpush1.xpose.msra.mxu0 0.0
    %1660 = vmatprep.subr.mxu0 0.0
    %1661 = vmatpush1.xpose.msra.mxu0 0.0
    %1662 = vmatprep.subr.mxu0 0.0
    %1663 = vmatpush1.xpose.msra.mxu0 0.0
    %1664 = vmatprep.mubr.f32.mxu0 0.0
    %1665 = vmatmul.mubr.f32.gmra.mrb[0].mxu0 %v1592
    %v1666 = vpop.f32.mrb[0].mxu0
    %v1667 = vadd.f32 0.0, %v1666
    %v1668 = vpop.f32.mrb[0].mxu0
    %1669 = vmatprep.mubr.f32.mxu0 0.0
    %1670 = vmatmul.mubr.f32.gmra.mrb[0].mxu0 %v1594
    %v1671 = vpop.f32.mrb[0].mxu0
    %v1672 = vadd.f32 0.0, %v1671
    %v1673 = vpop.f32.mrb[0].mxu0
    %1674 = vdwg.mxu0
    %v1675 = vmul.f32 %v1576, 0.35355338
    %v1676 = vmul.f32 %v1581, 0.35355338
    %v1677 = vmul.f32 %v1667, 0.35355338
    %v1678 = vmul.f32 %v1672, 0.35355338
    %v1679 = vsel %vm870, %v1675, -inf
    %1680 = vmax.xlane.f32.xlu0 %v1679
    %v1681 = vpop.xlane.xlu0 %1680
    %v1682 = vsel %vm870, %v1676, -inf
    %1683 = vmax.xlane.f32.xlu0 %v1682
    %v1684 = vpop.xlane.xlu0 %1683
    %v1685 = vsel %vm870, %v1677, -inf
    %1686 = vmax.xlane.f32.xlu0 %v1685
    %v1687 = vpop.xlane.xlu0 %1686
    %v1688 = vsel %vm870, %v1678, -inf
    %1689 = vmax.xlane.f32.xlu0 %v1688
    %v1690 = vpop.xlane.xlu0 %1689
    %v1691 = vsub.f32 %v1675, %v1681
    %v1692 = vsub.f32 %v1676, %v1684
    %v1693 = vsub.f32 %v1677, %v1687
    %v1694 = vsub.f32 %v1678, %v1690
    %v1695 = vmul.f32 %v1691, 1.442695
    %v1696 = vpow.pop %v1695
    %v1697 = vmul.f32 %v1692, 1.442695
    %v1698 = vpow.pop %v1697
    %v1699 = vmul.f32 %v1693, 1.442695
    %v1700 = vpow.pop %v1699
    %v1701 = vmul.f32 %v1694, 1.442695
    %v1702 = vpow.pop %v1701
    %v1703 = vsel %vm870, %v1696, 0.0
    %1704 = vadd.xlane.f32.xlu0 %v1703
    %v1705 = vpop.xlane.xlu0 %1704
    %v1706 = vsel %vm870, %v1698, 0.0
    %1707 = vadd.xlane.f32.xlu0 %v1706
    %v1708 = vpop.xlane.xlu0 %1707
    %v1709 = vsel %vm870, %v1700, 0.0
    %1710 = vadd.xlane.f32.xlu0 %v1709
    %v1711 = vpop.xlane.xlu0 %1710
    %v1712 = vsel %vm870, %v1702, 0.0
    %1713 = vadd.xlane.f32.xlu0 %v1712
    %v1714 = vpop.xlane.xlu0 %1713
    %v1715 = vrcp.pop %v1705
    %v1716 = vrcp.pop %v1708
    %v1717 = vrcp.pop %v1711
    %v1718 = vrcp.pop %v1714
    %v1719 = vmul.f32 %v1696, %v1715
    %v1720 = vmul.f32 %v1698, %v1716
    %v1721 = vmul.f32 %v1700, %v1717
    %v1722 = vmul.f32 %v1702, %v1718
    %1723 = vrot.lane.b32.xlu0 %v673, 48
    %v1724 = vpop.permute.xlu0 %1723
    %1725 = vrot.lane.b32.xlu0 %v676, 48
    %v1726 = vpop.permute.xlu0 %1725
    %v1730 = vsel %vm870, %v1719, 0
    %v1733 = vsel %vm870, %v1720, 0
    %1735 = vmatprep.subr.mxu0 0.0
    %1736 = vmatpush1.msra.mxu0 %v1724
    %1737 = vmatprep.subr.mxu0 0.0
    %1738 = vmatpush1.msra.mxu0 %v1726
    %1739 = vmatprep.subr.mxu0 0.0
    %1740 = vmatpush1.msra.mxu0 0.0
    %1741 = vmatprep.subr.mxu0 0.0
    %1742 = vmatpush1.msra.mxu0 0.0
    %1743 = vmatprep.subr.mxu0 0.0
    %1744 = vmatpush1.msra.mxu0 0.0
    %1745 = vmatprep.subr.mxu0 0.0
    %1746 = vmatpush1.msra.mxu0 0.0
    %1747 = vmatprep.subr.mxu0 0.0
    %1748 = vmatpush1.msra.mxu0 0.0
    %1749 = vmatprep.subr.mxu0 0.0
    %1750 = vmatpush1.msra.mxu0 0.0
    %1751 = vmatprep.subr.mxu0 0.0
    %1752 = vmatpush1.msra.mxu0 0.0
    %1753 = vmatprep.subr.mxu0 0.0
    %1754 = vmatpush1.msra.mxu0 0.0
    %1755 = vmatprep.subr.mxu0 0.0
    %1756 = vmatpush1.msra.mxu0 0.0
    %1757 = vmatprep.subr.mxu0 0.0
    %1758 = vmatpush1.msra.mxu0 0.0
    %1759 = vmatprep.subr.mxu0 0.0
    %1760 = vmatpush1.msra.mxu0 0.0
    %1761 = vmatprep.subr.mxu0 0.0
    %1762 = vmatpush1.msra.mxu0 0.0
    %1763 = vmatprep.subr.mxu0 0.0
    %1764 = vmatpush1.msra.mxu0 0.0
    %1765 = vmatprep.subr.mxu0 0.0
    %1766 = vmatpush1.msra.mxu0 0.0
    %1767 = vmatprep.subr.mxu0 0.0
    %1768 = vmatpush1.msra.mxu0 0.0
    %1769 = vmatprep.subr.mxu0 0.0
    %1770 = vmatpush1.msra.mxu0 0.0
    %1771 = vmatprep.subr.mxu0 0.0
    %1772 = vmatpush1.msra.mxu0 0.0
    %1773 = vmatprep.subr.mxu0 0.0
    %1774 = vmatpush1.msra.mxu0 0.0
    %1775 = vmatprep.subr.mxu0 0.0
    %1776 = vmatpush1.msra.mxu0 0.0
    %1777 = vmatprep.subr.mxu0 0.0
    %1778 = vmatpush1.msra.mxu0 0.0
    %1779 = vmatprep.subr.mxu0 0.0
    %1780 = vmatpush1.msra.mxu0 0.0
    %1781 = vmatprep.subr.mxu0 0.0
    %1782 = vmatpush1.msra.mxu0 0.0
    %1783 = vmatprep.subr.mxu0 0.0
    %1784 = vmatpush1.msra.mxu0 0.0
    %1785 = vmatprep.subr.mxu0 0.0
    %1786 = vmatpush1.msra.mxu0 0.0
    %1787 = vmatprep.subr.mxu0 0.0
    %1788 = vmatpush1.msra.mxu0 0.0
    %1789 = vmatprep.subr.mxu0 0.0
    %1790 = vmatpush1.msra.mxu0 0.0
    %1791 = vmatprep.subr.mxu0 0.0
    %1792 = vmatpush1.msra.mxu0 0.0
    %1793 = vmatprep.subr.mxu0 0.0
    %1794 = vmatpush1.msra.mxu0 0.0
    %1795 = vmatprep.subr.mxu0 0.0
    %1796 = vmatpush1.msra.mxu0 0.0
    %1797 = vmatprep.subr.mxu0 0.0
    %1798 = vmatpush1.msra.mxu0 0.0
    %1799 = vmatprep.mubr.f32.mxu0 0.0
    %1800 = vmatmul.mubr.f32.gmra.mrb[0].mxu0 %v1730
    %v1801 = vpop.f32.mrb[0].mxu0
    %v1802 = vadd.f32 0.0, %v1801
    %v1803 = vpop.f32.mrb[0].mxu0
    %1804 = vmatprep.mubr.f32.mxu0 0.0
    %1805 = vmatmul.mubr.f32.gmra.mrb[0].mxu0 %v1733
    %v1806 = vpop.f32.mrb[0].mxu0
    %v1807 = vadd.f32 0.0, %v1806
    %v1808 = vpop.f32.mrb[0].mxu0
    %1809 = vdwg.mxu0
    %1810 = vrot.lane.b32.xlu0 %v681, 48
    %v1811 = vpop.permute.xlu0 %1810
    %1812 = vrot.lane.b32.xlu0 %v684, 48
    %v1813 = vpop.permute.xlu0 %1812
    %v1817 = vsel %vm870, %v1721, 0
    %v1820 = vsel %vm870, %v1722, 0
    %1822 = vmatprep.subr.mxu0 0.0
    %1823 = vmatpush1.msra.mxu0 %v1811
    %1824 = vmatprep.subr.mxu0 0.0
    %1825 = vmatpush1.msra.mxu0 %v1813
    %1826 = vmatprep.subr.mxu0 0.0
    %1827 = vmatpush1.msra.mxu0 0.0
    %1828 = vmatprep.subr.mxu0 0.0
    %1829 = vmatpush1.msra.mxu0 0.0
    %1830 = vmatprep.subr.mxu0 0.0
    %1831 = vmatpush1.msra.mxu0 0.0
    %1832 = vmatprep.subr.mxu0 0.0
    %1833 = vmatpush1.msra.mxu0 0.0
    %1834 = vmatprep.subr.mxu0 0.0
    %1835 = vmatpush1.msra.mxu0 0.0
    %1836 = vmatprep.subr.mxu0 0.0
    %1837 = vmatpush1.msra.mxu0 0.0
    %1838 = vmatprep.subr.mxu0 0.0
    %1839 = vmatpush1.msra.mxu0 0.0
    %1840 = vmatprep.subr.mxu0 0.0
    %1841 = vmatpush1.msra.mxu0 0.0
    %1842 = vmatprep.subr.mxu0 0.0
    %1843 = vmatpush1.msra.mxu0 0.0
    %1844 = vmatprep.subr.mxu0 0.0
    %1845 = vmatpush1.msra.mxu0 0.0
    %1846 = vmatprep.subr.mxu0 0.0
    %1847 = vmatpush1.msra.mxu0 0.0
    %1848 = vmatprep.subr.mxu0 0.0
    %1849 = vmatpush1.msra.mxu0 0.0
    %1850 = vmatprep.subr.mxu0 0.0
    %1851 = vmatpush1.msra.mxu0 0.0
    %1852 = vmatprep.subr.mxu0 0.0
    %1853 = vmatpush1.msra.mxu0 0.0
    %1854 = vmatprep.subr.mxu0 0.0
    %1855 = vmatpush1.msra.mxu0 0.0
    %1856 = vmatprep.subr.mxu0 0.0
    %1857 = vmatpush1.msra.mxu0 0.0
    %1858 = vmatprep.subr.mxu0 0.0
    %1859 = vmatpush1.msra.mxu0 0.0
    %1860 = vmatprep.subr.mxu0 0.0
    %1861 = vmatpush1.msra.mxu0 0.0
    %1862 = vmatprep.subr.mxu0 0.0
    %1863 = vmatpush1.msra.mxu0 0.0
    %1864 = vmatprep.subr.mxu0 0.0
    %1865 = vmatpush1.msra.mxu0 0.0
    %1866 = vmatprep.subr.mxu0 0.0
    %1867 = vmatpush1.msra.mxu0 0.0
    %1868 = vmatprep.subr.mxu0 0.0
    %1869 = vmatpush1.msra.mxu0 0.0
    %1870 = vmatprep.subr.mxu0 0.0
    %1871 = vmatpush1.msra.mxu0 0.0
    %1872 = vmatprep.subr.mxu0 0.0
    %1873 = vmatpush1.msra.mxu0 0.0
    %1874 = vmatprep.subr.mxu0 0.0
    %1875 = vmatpush1.msra.mxu0 0.0
    %1876 = vmatprep.subr.mxu0 0.0
    %1877 = vmatpush1.msra.mxu0 0.0
    %1878 = vmatprep.subr.mxu0 0.0
    %1879 = vmatpush1.msra.mxu0 0.0
    %1880 = vmatprep.subr.mxu0 0.0
    %1881 = vmatpush1.msra.mxu0 0.0
    %1882 = vmatprep.subr.mxu0 0.0
    %1883 = vmatpush1.msra.mxu0 0.0
    %1884 = vmatprep.subr.mxu0 0.0
    %1885 = vmatpush1.msra.mxu0 0.0
    %1886 = vmatprep.mubr.f32.mxu0 0.0
    %1887 = vmatmul.mubr.f32.gmra.mrb[0].mxu0 %v1817
    %v1888 = vpop.f32.mrb[0].mxu0
    %v1889 = vadd.f32 0.0, %v1888
    %v1890 = vpop.f32.mrb[0].mxu0
    %1891 = vmatprep.mubr.f32.mxu0 0.0
    %1892 = vmatmul.mubr.f32.gmra.mrb[0].mxu0 %v1820
    %v1893 = vpop.f32.mrb[0].mxu0
    %v1894 = vadd.f32 0.0, %v1893
    %v1895 = vpop.f32.mrb[0].mxu0
    %1896 = vdwg.mxu0
    %1897 = vrot.lane.b32.xlu0 %v673, 104
    %v1898 = vpop.permute.xlu0 %1897
    %1899 = vrot.lane.b32.xlu0 %v676, 104
    %v1900 = vpop.permute.xlu0 %1899
    %1901 = vrot.lane.b32.xlu0 %v673, 72
    %v1902 = vpop.permute.xlu0 %1901
    %1903 = vrot.lane.b32.xlu0 %v676, 72
    %v1904 = vpop.permute.xlu0 %1903
    %v1905 = vsel %vm693, %v1898, 0
    %v1907 = vsel %vm693, %v1900, 0
    %v1909 = vsel %vm693, %v1902, 0
    %v1911 = vsel %vm693, %v1904, 0
    %1913 = vmatprep.subr.mxu0 0.0
    %1914 = vmatpush1.xpose.msra.mxu0 %v1909
    %1915 = vmatprep.subr.mxu0 0.0
    %1916 = vmatpush1.xpose.msra.mxu0 %v1911
    %1917 = vmatprep.subr.mxu0 0.0
    %1918 = vmatpush1.xpose.msra.mxu0 0.0
    %1919 = vmatprep.subr.mxu0 0.0
    %1920 = vmatpush1.xpose.msra.mxu0 0.0
    %1921 = vmatprep.subr.mxu0 0.0
    %1922 = vmatpush1.xpose.msra.mxu0 0.0
    %1923 = vmatprep.subr.mxu0 0.0
    %1924 = vmatpush1.xpose.msra.mxu0 0.0
    %1925 = vmatprep.subr.mxu0 0.0
    %1926 = vmatpush1.xpose.msra.mxu0 0.0
    %1927 = vmatprep.subr.mxu0 0.0
    %1928 = vmatpush1.xpose.msra.mxu0 0.0
    %1929 = vmatprep.subr.mxu0 0.0
    %1930 = vmatpush1.xpose.msra.mxu0 0.0
    %1931 = vmatprep.subr.mxu0 0.0
    %1932 = vmatpush1.xpose.msra.mxu0 0.0
    %1933 = vmatprep.subr.mxu0 0.0
    %1934 = vmatpush1.xpose.msra.mxu0 0.0
    %1935 = vmatprep.subr.mxu0 0.0
    %1936 = vmatpush1.xpose.msra.mxu0 0.0
    %1937 = vmatprep.subr.mxu0 0.0
    %1938 = vmatpush1.xpose.msra.mxu0 0.0
    %1939 = vmatprep.subr.mxu0 0.0
    %1940 = vmatpush1.xpose.msra.mxu0 0.0
    %1941 = vmatprep.subr.mxu0 0.0
    %1942 = vmatpush1.xpose.msra.mxu0 0.0
    %1943 = vmatprep.subr.mxu0 0.0
    %1944 = vmatpush1.xpose.msra.mxu0 0.0
    %1945 = vmatprep.subr.mxu0 0.0
    %1946 = vmatpush1.xpose.msra.mxu0 0.0
    %1947 = vmatprep.subr.mxu0 0.0
    %1948 = vmatpush1.xpose.msra.mxu0 0.0
    %1949 = vmatprep.subr.mxu0 0.0
    %1950 = vmatpush1.xpose.msra.mxu0 0.0
    %1951 = vmatprep.subr.mxu0 0.0
    %1952 = vmatpush1.xpose.msra.mxu0 0.0
    %1953 = vmatprep.subr.mxu0 0.0
    %1954 = vmatpush1.xpose.msra.mxu0 0.0
    %1955 = vmatprep.subr.mxu0 0.0
    %1956 = vmatpush1.xpose.msra.mxu0 0.0
    %1957 = vmatprep.subr.mxu0 0.0
    %1958 = vmatpush1.xpose.msra.mxu0 0.0
    %1959 = vmatprep.subr.mxu0 0.0
    %1960 = vmatpush1.xpose.msra.mxu0 0.0
    %1961 = vmatprep.subr.mxu0 0.0
    %1962 = vmatpush1.xpose.msra.mxu0 0.0
    %1963 = vmatprep.subr.mxu0 0.0
    %1964 = vmatpush1.xpose.msra.mxu0 0.0
    %1965 = vmatprep.subr.mxu0 0.0
    %1966 = vmatpush1.xpose.msra.mxu0 0.0
    %1967 = vmatprep.subr.mxu0 0.0
    %1968 = vmatpush1.xpose.msra.mxu0 0.0
    %1969 = vmatprep.subr.mxu0 0.0
    %1970 = vmatpush1.xpose.msra.mxu0 0.0
    %1971 = vmatprep.subr.mxu0 0.0
    %1972 = vmatpush1.xpose.msra.mxu0 0.0
    %1973 = vmatprep.subr.mxu0 0.0
    %1974 = vmatpush1.xpose.msra.mxu0 0.0
    %1975 = vmatprep.subr.mxu0 0.0
    %1976 = vmatpush1.xpose.msra.mxu0 0.0
    %1977 = vmatprep.mubr.f32.mxu0 0.0
    %1978 = vmatmul.mubr.f32.gmra.mrb[0].mxu0 %v1905
    %v1979 = vpop.f32.mrb[0].mxu0
    %v1980 = vadd.f32 0.0, %v1979
    %v1981 = vpop.f32.mrb[0].mxu0
    %1982 = vmatprep.mubr.f32.mxu0 0.0
    %1983 = vmatmul.mubr.f32.gmra.mrb[0].mxu0 %v1907
    %v1984 = vpop.f32.mrb[0].mxu0
    %v1985 = vadd.f32 0.0, %v1984
    %v1986 = vpop.f32.mrb[0].mxu0
    %1987 = vdwg.mxu0
    %1988 = vrot.lane.b32.xlu0 %v681, 104
    %v1989 = vpop.permute.xlu0 %1988
    %1990 = vrot.lane.b32.xlu0 %v684, 104
    %v1991 = vpop.permute.xlu0 %1990
    %1992 = vrot.lane.b32.xlu0 %v681, 72
    %v1993 = vpop.permute.xlu0 %1992
    %1994 = vrot.lane.b32.xlu0 %v684, 72
    %v1995 = vpop.permute.xlu0 %1994
    %v1996 = vsel %vm693, %v1989, 0
    %v1998 = vsel %vm693, %v1991, 0
    %v2000 = vsel %vm693, %v1993, 0
    %v2002 = vsel %vm693, %v1995, 0
    %2004 = vmatprep.subr.mxu0 0.0
    %2005 = vmatpush1.xpose.msra.mxu0 %v2000
    %2006 = vmatprep.subr.mxu0 0.0
    %2007 = vmatpush1.xpose.msra.mxu0 %v2002
    %2008 = vmatprep.subr.mxu0 0.0
    %2009 = vmatpush1.xpose.msra.mxu0 0.0
    %2010 = vmatprep.subr.mxu0 0.0
    %2011 = vmatpush1.xpose.msra.mxu0 0.0
    %2012 = vmatprep.subr.mxu0 0.0
    %2013 = vmatpush1.xpose.msra.mxu0 0.0
    %2014 = vmatprep.subr.mxu0 0.0
    %2015 = vmatpush1.xpose.msra.mxu0 0.0
    %2016 = vmatprep.subr.mxu0 0.0
    %2017 = vmatpush1.xpose.msra.mxu0 0.0
    %2018 = vmatprep.subr.mxu0 0.0
    %2019 = vmatpush1.xpose.msra.mxu0 0.0
    %2020 = vmatprep.subr.mxu0 0.0
    %2021 = vmatpush1.xpose.msra.mxu0 0.0
    %2022 = vmatprep.subr.mxu0 0.0
    %2023 = vmatpush1.xpose.msra.mxu0 0.0
    %2024 = vmatprep.subr.mxu0 0.0
    %2025 = vmatpush1.xpose.msra.mxu0 0.0
    %2026 = vmatprep.subr.mxu0 0.0
    %2027 = vmatpush1.xpose.msra.mxu0 0.0
    %2028 = vmatprep.subr.mxu0 0.0
    %2029 = vmatpush1.xpose.msra.mxu0 0.0
    %2030 = vmatprep.subr.mxu0 0.0
    %2031 = vmatpush1.xpose.msra.mxu0 0.0
    %2032 = vmatprep.subr.mxu0 0.0
    %2033 = vmatpush1.xpose.msra.mxu0 0.0
    %2034 = vmatprep.subr.mxu0 0.0
    %2035 = vmatpush1.xpose.msra.mxu0 0.0
    %2036 = vmatprep.subr.mxu0 0.0
    %2037 = vmatpush1.xpose.msra.mxu0 0.0
    %2038 = vmatprep.subr.mxu0 0.0
    %2039 = vmatpush1.xpose.msra.mxu0 0.0
    %2040 = vmatprep.subr.mxu0 0.0
    %2041 = vmatpush1.xpose.msra.mxu0 0.0
    %2042 = vmatprep.subr.mxu0 0.0
    %2043 = vmatpush1.xpose.msra.mxu0 0.0
    %2044 = vmatprep.subr.mxu0 0.0
    %2045 = vmatpush1.xpose.msra.mxu0 0.0
    %2046 = vmatprep.subr.mxu0 0.0
    %2047 = vmatpush1.xpose.msra.mxu0 0.0
    %2048 = vmatprep.subr.mxu0 0.0
    %2049 = vmatpush1.xpose.msra.mxu0 0.0
    %2050 = vmatprep.subr.mxu0 0.0
    %2051 = vmatpush1.xpose.msra.mxu0 0.0
    %2052 = vmatprep.subr.mxu0 0.0
    %2053 = vmatpush1.xpose.msra.mxu0 0.0
    %2054 = vmatprep.subr.mxu0 0.0
    %2055 = vmatpush1.xpose.msra.mxu0 0.0
    %2056 = vmatprep.subr.mxu0 0.0
    %2057 = vmatpush1.xpose.msra.mxu0 0.0
    %2058 = vmatprep.subr.mxu0 0.0
    %2059 = vmatpush1.xpose.msra.mxu0 0.0
    %2060 = vmatprep.subr.mxu0 0.0
    %2061 = vmatpush1.xpose.msra.mxu0 0.0
    %2062 = vmatprep.subr.mxu0 0.0
    %2063 = vmatpush1.xpose.msra.mxu0 0.0
    %2064 = vmatprep.subr.mxu0 0.0
    %2065 = vmatpush1.xpose.msra.mxu0 0.0
    %2066 = vmatprep.subr.mxu0 0.0
    %2067 = vmatpush1.xpose.msra.mxu0 0.0
    %2068 = vmatprep.mubr.f32.mxu0 0.0
    %2069 = vmatmul.mubr.f32.gmra.mrb[0].mxu0 %v1996
    %v2070 = vpop.f32.mrb[0].mxu0
    %v2071 = vadd.f32 0.0, %v2070
    %v2072 = vpop.f32.mrb[0].mxu0
    %2073 = vmatprep.mubr.f32.mxu0 0.0
    %2074 = vmatmul.mubr.f32.gmra.mrb[0].mxu0 %v1998
    %v2075 = vpop.f32.mrb[0].mxu0
    %v2076 = vadd.f32 0.0, %v2075
    %v2077 = vpop.f32.mrb[0].mxu0
    %2078 = vdwg.mxu0
    %v2079 = vmul.f32 %v1980, 0.35355338
    %v2080 = vmul.f32 %v1985, 0.35355338
    %v2081 = vmul.f32 %v2071, 0.35355338
    %v2082 = vmul.f32 %v2076, 0.35355338
    %v2083 = vsel %vm870, %v2079, -inf
    %2084 = vmax.xlane.f32.xlu0 %v2083
    %v2085 = vpop.xlane.xlu0 %2084
    %v2086 = vsel %vm870, %v2080, -inf
    %2087 = vmax.xlane.f32.xlu0 %v2086
    %v2088 = vpop.xlane.xlu0 %2087
    %v2089 = vsel %vm870, %v2081, -inf
    %2090 = vmax.xlane.f32.xlu0 %v2089
    %v2091 = vpop.xlane.xlu0 %2090
    %v2092 = vsel %vm870, %v2082, -inf
    %2093 = vmax.xlane.f32.xlu0 %v2092
    %v2094 = vpop.xlane.xlu0 %2093
    %v2095 = vsub.f32 %v2079, %v2085
    %v2096 = vsub.f32 %v2080, %v2088
    %v2097 = vsub.f32 %v2081, %v2091
    %v2098 = vsub.f32 %v2082, %v2094
    %v2099 = vmul.f32 %v2095, 1.442695
    %v2100 = vpow.pop %v2099
    %v2101 = vmul.f32 %v2096, 1.442695
    %v2102 = vpow.pop %v2101
    %v2103 = vmul.f32 %v2097, 1.442695
    %v2104 = vpow.pop %v2103
    %v2105 = vmul.f32 %v2098, 1.442695
    %v2106 = vpow.pop %v2105
    %v2107 = vsel %vm870, %v2100, 0.0
    %2108 = vadd.xlane.f32.xlu0 %v2107
    %v2109 = vpop.xlane.xlu0 %2108
    %v2110 = vsel %vm870, %v2102, 0.0
    %2111 = vadd.xlane.f32.xlu0 %v2110
    %v2112 = vpop.xlane.xlu0 %2111
    %v2113 = vsel %vm870, %v2104, 0.0
    %2114 = vadd.xlane.f32.xlu0 %v2113
    %v2115 = vpop.xlane.xlu0 %2114
    %v2116 = vsel %vm870, %v2106, 0.0
    %2117 = vadd.xlane.f32.xlu0 %v2116
    %v2118 = vpop.xlane.xlu0 %2117
    %v2119 = vrcp.pop %v2109
    %v2120 = vrcp.pop %v2112
    %v2121 = vrcp.pop %v2115
    %v2122 = vrcp.pop %v2118
    %v2123 = vmul.f32 %v2100, %v2119
    %v2124 = vmul.f32 %v2102, %v2120
    %v2125 = vmul.f32 %v2104, %v2121
    %v2126 = vmul.f32 %v2106, %v2122
    %2127 = vrot.lane.b32.xlu0 %v673, 40
    %v2128 = vpop.permute.xlu0 %2127
    %2129 = vrot.lane.b32.xlu0 %v676, 40
    %v2130 = vpop.permute.xlu0 %2129
    %v2134 = vsel %vm870, %v2123, 0
    %v2137 = vsel %vm870, %v2124, 0
    %2139 = vmatprep.subr.mxu0 0.0
    %2140 = vmatpush1.msra.mxu0 %v2128
    %2141 = vmatprep.subr.mxu0 0.0
    %2142 = vmatpush1.msra.mxu0 %v2130
    %2143 = vmatprep.subr.mxu0 0.0
    %2144 = vmatpush1.msra.mxu0 0.0
    %2145 = vmatprep.subr.mxu0 0.0
    %2146 = vmatpush1.msra.mxu0 0.0
    %2147 = vmatprep.subr.mxu0 0.0
    %2148 = vmatpush1.msra.mxu0 0.0
    %2149 = vmatprep.subr.mxu0 0.0
    %2150 = vmatpush1.msra.mxu0 0.0
    %2151 = vmatprep.subr.mxu0 0.0
    %2152 = vmatpush1.msra.mxu0 0.0
    %2153 = vmatprep.subr.mxu0 0.0
    %2154 = vmatpush1.msra.mxu0 0.0
    %2155 = vmatprep.subr.mxu0 0.0
    %2156 = vmatpush1.msra.mxu0 0.0
    %2157 = vmatprep.subr.mxu0 0.0
    %2158 = vmatpush1.msra.mxu0 0.0
    %2159 = vmatprep.subr.mxu0 0.0
    %2160 = vmatpush1.msra.mxu0 0.0
    %2161 = vmatprep.subr.mxu0 0.0
    %2162 = vmatpush1.msra.mxu0 0.0
    %2163 = vmatprep.subr.mxu0 0.0
    %2164 = vmatpush1.msra.mxu0 0.0
    %2165 = vmatprep.subr.mxu0 0.0
    %2166 = vmatpush1.msra.mxu0 0.0
    %2167 = vmatprep.subr.mxu0 0.0
    %2168 = vmatpush1.msra.mxu0 0.0
    %2169 = vmatprep.subr.mxu0 0.0
    %2170 = vmatpush1.msra.mxu0 0.0
    %2171 = vmatprep.subr.mxu0 0.0
    %2172 = vmatpush1.msra.mxu0 0.0
    %2173 = vmatprep.subr.mxu0 0.0
    %2174 = vmatpush1.msra.mxu0 0.0
    %2175 = vmatprep.subr.mxu0 0.0
    %2176 = vmatpush1.msra.mxu0 0.0
    %2177 = vmatprep.subr.mxu0 0.0
    %2178 = vmatpush1.msra.mxu0 0.0
    %2179 = vmatprep.subr.mxu0 0.0
    %2180 = vmatpush1.msra.mxu0 0.0
    %2181 = vmatprep.subr.mxu0 0.0
    %2182 = vmatpush1.msra.mxu0 0.0
    %2183 = vmatprep.subr.mxu0 0.0
    %2184 = vmatpush1.msra.mxu0 0.0
    %2185 = vmatprep.subr.mxu0 0.0
    %2186 = vmatpush1.msra.mxu0 0.0
    %2187 = vmatprep.subr.mxu0 0.0
    %2188 = vmatpush1.msra.mxu0 0.0
    %2189 = vmatprep.subr.mxu0 0.0
    %2190 = vmatpush1.msra.mxu0 0.0
    %2191 = vmatprep.subr.mxu0 0.0
    %2192 = vmatpush1.msra.mxu0 0.0
    %2193 = vmatprep.subr.mxu0 0.0
    %2194 = vmatpush1.msra.mxu0 0.0
    %2195 = vmatprep.subr.mxu0 0.0
    %2196 = vmatpush1.msra.mxu0 0.0
    %2197 = vmatprep.subr.mxu0 0.0
    %2198 = vmatpush1.msra.mxu0 0.0
    %2199 = vmatprep.subr.mxu0 0.0
    %2200 = vmatpush1.msra.mxu0 0.0
    %2201 = vmatprep.subr.mxu0 0.0
    %2202 = vmatpush1.msra.mxu0 0.0
    %2203 = vmatprep.mubr.f32.mxu0 0.0
    %2204 = vmatmul.mubr.f32.gmra.mrb[0].mxu0 %v2134
    %v2205 = vpop.f32.mrb[0].mxu0
    %v2206 = vadd.f32 0.0, %v2205
    %v2207 = vpop.f32.mrb[0].mxu0
    %2208 = vmatprep.mubr.f32.mxu0 0.0
    %2209 = vmatmul.mubr.f32.gmra.mrb[0].mxu0 %v2137
    %v2210 = vpop.f32.mrb[0].mxu0
    %v2211 = vadd.f32 0.0, %v2210
    %v2212 = vpop.f32.mrb[0].mxu0
    %2213 = vdwg.mxu0
    %2214 = vrot.lane.b32.xlu0 %v681, 40
    %v2215 = vpop.permute.xlu0 %2214
    %2216 = vrot.lane.b32.xlu0 %v684, 40
    %v2217 = vpop.permute.xlu0 %2216
    %v2221 = vsel %vm870, %v2125, 0
    %v2224 = vsel %vm870, %v2126, 0
    %2226 = vmatprep.subr.mxu0 0.0
    %2227 = vmatpush1.msra.mxu0 %v2215
    %2228 = vmatprep.subr.mxu0 0.0
    %2229 = vmatpush1.msra.mxu0 %v2217
    %2230 = vmatprep.subr.mxu0 0.0
    %2231 = vmatpush1.msra.mxu0 0.0
    %2232 = vmatprep.subr.mxu0 0.0
    %2233 = vmatpush1.msra.mxu0 0.0
    %2234 = vmatprep.subr.mxu0 0.0
    %2235 = vmatpush1.msra.mxu0 0.0
    %2236 = vmatprep.subr.mxu0 0.0
    %2237 = vmatpush1.msra.mxu0 0.0
    %2238 = vmatprep.subr.mxu0 0.0
    %2239 = vmatpush1.msra.mxu0 0.0
    %2240 = vmatprep.subr.mxu0 0.0
    %2241 = vmatpush1.msra.mxu0 0.0
    %2242 = vmatprep.subr.mxu0 0.0
    %2243 = vmatpush1.msra.mxu0 0.0
    %2244 = vmatprep.subr.mxu0 0.0
    %2245 = vmatpush1.msra.mxu0 0.0
    %2246 = vmatprep.subr.mxu0 0.0
    %2247 = vmatpush1.msra.mxu0 0.0
    %2248 = vmatprep.subr.mxu0 0.0
    %2249 = vmatpush1.msra.mxu0 0.0
    %2250 = vmatprep.subr.mxu0 0.0
    %2251 = vmatpush1.msra.mxu0 0.0
    %2252 = vmatprep.subr.mxu0 0.0
    %2253 = vmatpush1.msra.mxu0 0.0
    %2254 = vmatprep.subr.mxu0 0.0
    %2255 = vmatpush1.msra.mxu0 0.0
    %2256 = vmatprep.subr.mxu0 0.0
    %2257 = vmatpush1.msra.mxu0 0.0
    %2258 = vmatprep.subr.mxu0 0.0
    %2259 = vmatpush1.msra.mxu0 0.0
    %2260 = vmatprep.subr.mxu0 0.0
    %2261 = vmatpush1.msra.mxu0 0.0
    %2262 = vmatprep.subr.mxu0 0.0
    %2263 = vmatpush1.msra.mxu0 0.0
    %2264 = vmatprep.subr.mxu0 0.0
    %2265 = vmatpush1.msra.mxu0 0.0
    %2266 = vmatprep.subr.mxu0 0.0
    %2267 = vmatpush1.msra.mxu0 0.0
    %2268 = vmatprep.subr.mxu0 0.0
    %2269 = vmatpush1.msra.mxu0 0.0
    %2270 = vmatprep.subr.mxu0 0.0
    %2271 = vmatpush1.msra.mxu0 0.0
    %2272 = vmatprep.subr.mxu0 0.0
    %2273 = vmatpush1.msra.mxu0 0.0
    %2274 = vmatprep.subr.mxu0 0.0
    %2275 = vmatpush1.msra.mxu0 0.0
    %2276 = vmatprep.subr.mxu0 0.0
    %2277 = vmatpush1.msra.mxu0 0.0
    %2278 = vmatprep.subr.mxu0 0.0
    %2279 = vmatpush1.msra.mxu0 0.0
    %2280 = vmatprep.subr.mxu0 0.0
    %2281 = vmatpush1.msra.mxu0 0.0
    %2282 = vmatprep.subr.mxu0 0.0
    %2283 = vmatpush1.msra.mxu0 0.0
    %2284 = vmatprep.subr.mxu0 0.0
    %2285 = vmatpush1.msra.mxu0 0.0
    %2286 = vmatprep.subr.mxu0 0.0
    %2287 = vmatpush1.msra.mxu0 0.0
    %2288 = vmatprep.subr.mxu0 0.0
    %2289 = vmatpush1.msra.mxu0 0.0
    %2290 = vmatprep.mubr.f32.mxu0 0.0
    %2291 = vmatmul.mubr.f32.gmra.mrb[0].mxu0 %v2221
    %v2292 = vpop.f32.mrb[0].mxu0
    %v2293 = vadd.f32 0.0, %v2292
    %v2294 = vpop.f32.mrb[0].mxu0
    %2295 = vmatprep.mubr.f32.mxu0 0.0
    %2296 = vmatmul.mubr.f32.gmra.mrb[0].mxu0 %v2224
    %v2297 = vpop.f32.mrb[0].mxu0
    %v2298 = vadd.f32 0.0, %v2297
    %v2299 = vpop.f32.mrb[0].mxu0
    %2300 = vdwg.mxu0
    %2305 = vrot.lane.b32.xlu0 %v1398, 8
    %v2306 = vpop.permute.xlu0 %2305
    %2307 = vrot.lane.b32.xlu0 %v1403, 8
    %v2308 = vpop.permute.xlu0 %2307
    %2309 = vrot.lane.b32.xlu0 %v1485, 8
    %v2310 = vpop.permute.xlu0 %2309
    %2311 = vrot.lane.b32.xlu0 %v1490, 8
    %v2312 = vpop.permute.xlu0 %2311
    %2321 = vrot.lane.b32.xlu0 %v1802, 16
    %v2322 = vpop.permute.xlu0 %2321
    %2323 = vrot.lane.b32.xlu0 %v1807, 16
    %v2324 = vpop.permute.xlu0 %2323
    %2325 = vrot.lane.b32.xlu0 %v1889, 16
    %v2326 = vpop.permute.xlu0 %2325
    %2327 = vrot.lane.b32.xlu0 %v1894, 16
    %v2328 = vpop.permute.xlu0 %2327
    %2337 = vrot.lane.b32.xlu0 %v2206, 24
    %v2338 = vpop.permute.xlu0 %2337
    %2339 = vrot.lane.b32.xlu0 %v2211, 24
    %v2340 = vpop.permute.xlu0 %2339
    %2341 = vrot.lane.b32.xlu0 %v2293, 24
    %v2342 = vpop.permute.xlu0 %2341
    %2343 = vrot.lane.b32.xlu0 %v2298, 24
    %v2344 = vpop.permute.xlu0 %2343
    %v2349 = vsel %vm693, %v994, %v2306
    %v2350 = vsel %vm693, %v999, %v2308
    %v2351 = vsel %vm693, %v1081, %v2310
    %v2352 = vsel %vm693, %v1086, %v2312
    %v2353 = vsel %vm870, %v2349, %v2322
    %v2354 = vsel %vm870, %v2350, %v2324
    %v2355 = vsel %vm870, %v2351, %v2326
    %v2356 = vsel %vm870, %v2352, %v2328
    %vm2357 = vcmask 195584
    %v2358 = vsel %vm2357, %v2353, %v2338
    %v2359 = vsel %vm2357, %v2354, %v2340
    %v2360 = vsel %vm2357, %v2355, %v2342
    %v2361 = vsel %vm2357, %v2356, %v2344
    %v2362 = vpack.c.bf16 %v2359, %v2358
    %v2363 = vpack.c.bf16 %v2361, %v2360
    %v2364 = vld [vmem:[%s14] sm:$0xf]
    %v2365 = vld [vmem:[%s14 + $0x4] sm:$0xf]
    %v2366 = vld [vmem:[%s14 + $0x8] sm:$0xf]
    %v2367 = vld [vmem:[%s14 + $0xc] sm:$0xf]
    %v2372 = vunpack.c.l.b16 %v2364
    %v2373 = vunpack.c.l.b16 %v2365
    %v2374 = vunpack.c.l.b16 %v2366
    %v2375 = vunpack.c.l.b16 %v2367
    %v2376 = vpack.c.b16 %v2373, %v2372
    %v2377 = vpack.c.b16 %v2375, %v2374
    %v2381 = vsel %vm200, %v2362, 0
    %v2384 = vsel %vm200, %v2363, 0
    %2386 = vmatprep.subr.bf16.mxu0 0
    %2387 = vmatpush1.bf16.msra.mxu0 %v2376
    %2388 = vmatprep.subr.bf16.mxu0 0
    %2389 = vmatpush1.bf16.msra.mxu0 %v2377
    %2390 = vmatprep.subr.bf16.mxu0 0
    %2391 = vmatpush1.bf16.msra.mxu0 0
    %2392 = vmatprep.subr.bf16.mxu0 0
    %2393 = vmatpush1.bf16.msra.mxu0 0
    %2394 = vmatprep.subr.bf16.mxu0 0
    %2395 = vmatpush1.bf16.msra.mxu0 0
    %2396 = vmatprep.subr.bf16.mxu0 0
    %2397 = vmatpush1.bf16.msra.mxu0 0
    %2398 = vmatprep.subr.bf16.mxu0 0
    %2399 = vmatpush1.bf16.msra.mxu0 0
    %2400 = vmatprep.subr.bf16.mxu0 0
    %2401 = vmatpush1.bf16.msra.mxu0 0
    %2402 = vmatprep.subr.bf16.mxu0 0
    %2403 = vmatpush1.bf16.msra.mxu0 0
    %2404 = vmatprep.subr.bf16.mxu0 0
    %2405 = vmatpush1.bf16.msra.mxu0 0
    %2406 = vmatprep.subr.bf16.mxu0 0
    %2407 = vmatpush1.bf16.msra.mxu0 0
    %2408 = vmatprep.subr.bf16.mxu0 0
    %2409 = vmatpush1.bf16.msra.mxu0 0
    %2410 = vmatprep.subr.bf16.mxu0 0
    %2411 = vmatpush1.bf16.msra.mxu0 0
    %2412 = vmatprep.subr.bf16.mxu0 0
    %2413 = vmatpush1.bf16.msra.mxu0 0
    %2414 = vmatprep.subr.bf16.mxu0 0
    %2415 = vmatpush1.bf16.msra.mxu0 0
    %2416 = vmatprep.subr.bf16.mxu0 0
    %2417 = vmatpush1.bf16.msra.mxu0 0
    %2418 = vmatprep.mubr.bf16.mxu0 0
    %2419 = vmatmul.mubr.bf16.gmra.mrb[0].mxu0 %v2381
    %v2420 = vpop.f32.mrb[0].mxu0
    %v2421 = vadd.f32 0.0, %v2420
    %v2422 = vpop.f32.mrb[0].mxu0
    %v2423 = vpop.f32.mrb[0].mxu0
    %v2424 = vadd.f32 0.0, %v2423
    %v2425 = vpop.f32.mrb[0].mxu0
    %2426 = vmatprep.mubr.bf16.mxu0 0
    %2427 = vmatmul.mubr.bf16.gmra.mrb[0].mxu0 %v2384
    %v2428 = vpop.f32.mrb[0].mxu0
    %v2429 = vadd.f32 0.0, %v2428
    %v2430 = vpop.f32.mrb[0].mxu0
    %v2431 = vpop.f32.mrb[0].mxu0
    %v2432 = vadd.f32 0.0, %v2431
    %v2433 = vpop.f32.mrb[0].mxu0
    %2434 = vdwg.mxu0
    %v2435 = vadd.f32 %v518, %v2421
    %v2436 = vadd.f32 %v521, %v2424
    %v2437 = vadd.f32 %v526, %v2429
    %v2438 = vadd.f32 %v529, %v2432
    %v2439 = vld [vmem:[%s15] sm:$0x1]
    %v2441 = vlaneseq
    %v2442 = vshrl.u32 %v2441, 7
    %v2443 = vsub.s32 0, %v2442
    %v2444 = vrot.slane %v2439, %v2443
    %v2446 = vadd.f32 %v2435, %v2444
    %v2447 = vadd.f32 %v2436, %v2444
    %v2448 = vadd.f32 %v2437, %v2444
    %v2449 = vadd.f32 %v2438, %v2444
    %v2450 = vld [vmem:[%s10] sm:$0x1]
    %v2451 = vld [vmem:[%s11] sm:$0x1]
    %v2452 = vsel %vm200, %v2446, 0.0
    %2453 = vadd.xlane.f32.xlu0 %v2452
    %v2454 = vpop.xlane.xlu0 %2453
    %v2455 = vsel %vm200, %v2447, 0.0
    %2456 = vadd.xlane.f32.xlu0 %v2455
    %v2457 = vpop.xlane.xlu0 %2456
    %v2458 = vsel %vm200, %v2448, 0.0
    %2459 = vadd.xlane.f32.xlu0 %v2458
    %v2460 = vpop.xlane.xlu0 %2459
    %v2461 = vsel %vm200, %v2449, 0.0
    %2462 = vadd.xlane.f32.xlu0 %v2461
    %v2463 = vpop.xlane.xlu0 %2462
    %v2464 = vmul.f32 %v2454, %v546
    %v2465 = vmul.f32 %v2457, %v546
    %v2466 = vmul.f32 %v2460, %v546
    %v2467 = vmul.f32 %v2463, %v546
    %v2468 = vsub.f32 %v2446, %v2464
    %v2469 = vsub.f32 %v2447, %v2465
    %v2470 = vsub.f32 %v2448, %v2466
    %v2471 = vsub.f32 %v2449, %v2467
    %v2472 = vmul.f32 %v2468, %v2468
    %v2473 = vmul.f32 %v2469, %v2469
    %v2474 = vmul.f32 %v2470, %v2470
    %v2475 = vmul.f32 %v2471, %v2471
    %v2476 = vsel %vm200, %v2472, 0.0
    %2477 = vadd.xlane.f32.xlu0 %v2476
    %v2478 = vpop.xlane.xlu0 %2477
    %v2479 = vsel %vm200, %v2473, 0.0
    %2480 = vadd.xlane.f32.xlu0 %v2479
    %v2481 = vpop.xlane.xlu0 %2480
    %v2482 = vsel %vm200, %v2474, 0.0
    %2483 = vadd.xlane.f32.xlu0 %v2482
    %v2484 = vpop.xlane.xlu0 %2483
    %v2485 = vsel %vm200, %v2475, 0.0
    %2486 = vadd.xlane.f32.xlu0 %v2485
    %v2487 = vpop.xlane.xlu0 %2486
    %v2488 = vmul.f32 %v2478, %v546
    %v2489 = vmul.f32 %v2481, %v546
    %v2490 = vmul.f32 %v2484, %v546
    %v2491 = vmul.f32 %v2487, %v546
    %v2492 = vadd.f32 %v2488, 1e-05
    %v2493 = vadd.f32 %v2489, 1e-05
    %v2494 = vadd.f32 %v2490, 1e-05
    %v2495 = vadd.f32 %v2491, 1e-05
    %v2496 = vrsqrt.pop %v2492
    %v2497 = vrsqrt.pop %v2493
    %v2498 = vrsqrt.pop %v2494
    %v2499 = vrsqrt.pop %v2495
    %v2500 = vmul.f32 %v2468, %v2496
    %v2501 = vmul.f32 %v2469, %v2497
    %v2502 = vmul.f32 %v2470, %v2498
    %v2503 = vmul.f32 %v2471, %v2499
    %v2505 = vlaneseq
    %v2506 = vshrl.u32 %v2505, 7
    %v2507 = vsub.s32 0, %v2506
    %v2508 = vrot.slane %v2450, %v2507
    %v2510 = vmul.f32 %v2500, %v2508
    %v2511 = vmul.f32 %v2501, %v2508
    %v2512 = vmul.f32 %v2502, %v2508
    %v2513 = vmul.f32 %v2503, %v2508
    %v2515 = vlaneseq
    %v2516 = vshrl.u32 %v2515, 7
    %v2517 = vsub.s32 0, %v2516
    %v2518 = vrot.slane %v2451, %v2517
    %v2520 = vadd.f32 %v2510, %v2518
    %v2521 = vadd.f32 %v2511, %v2518
    %v2522 = vadd.f32 %v2512, %v2518
    %v2523 = vadd.f32 %v2513, %v2518
    %v2524 = vpack.c.bf16 %v2521, %v2520
    %v2525 = vpack.c.bf16 %v2523, %v2522
    %v2526 = vld [vmem:[%s16] sm:$0xf]
    %v2527 = vld [vmem:[%s16 + $0x4] sm:$0xf]
    %v2528 = vld [vmem:[%s16 + $0x8] sm:$0xf]
    %v2529 = vld [vmem:[%s16 + $0xc] sm:$0xf]
    %v2530 = vld [vmem:[%s17] sm:$0x1]
    %v2532 = vlaneseq
    %v2533 = vshrl.u32 %v2532, 7
    %v2534 = vsub.s32 0, %v2533
    %v2535 = vrot.slane %v2530, %v2534
    %v2541 = vunpack.c.l.b16 %v2526
    %v2542 = vunpack.c.l.b16 %v2527
    %v2543 = vunpack.c.l.b16 %v2528
    %v2544 = vunpack.c.l.b16 %v2529
    %v2545 = vpack.c.b16 %v2542, %v2541
    %v2546 = vpack.c.b16 %v2544, %v2543
    %v2550 = vsel %vm200, %v2524, 0
    %v2553 = vsel %vm200, %v2525, 0
    %2555 = vmatprep.subr.bf16.mxu0 0
    %2556 = vmatpush1.bf16.msra.mxu0 %v2545
    %2557 = vmatprep.subr.bf16.mxu0 0
    %2558 = vmatpush1.bf16.msra.mxu0 %v2546
    %2559 = vmatprep.subr.bf16.mxu0 0
    %2560 = vmatpush1.bf16.msra.mxu0 0
    %2561 = vmatprep.subr.bf16.mxu0 0
    %2562 = vmatpush1.bf16.msra.mxu0 0
    %2563 = vmatprep.subr.bf16.mxu0 0
    %2564 = vmatpush1.bf16.msra.mxu0 0
    %2565 = vmatprep.subr.bf16.mxu0 0
    %2566 = vmatpush1.bf16.msra.mxu0 0
    %2567 = vmatprep.subr.bf16.mxu0 0
    %2568 = vmatpush1.bf16.msra.mxu0 0
    %2569 = vmatprep.subr.bf16.mxu0 0
    %2570 = vmatpush1.bf16.msra.mxu0 0
    %2571 = vmatprep.subr.bf16.mxu0 0
    %2572 = vmatpush1.bf16.msra.mxu0 0
    %2573 = vmatprep.subr.bf16.mxu0 0
    %2574 = vmatpush1.bf16.msra.mxu0 0
    %2575 = vmatprep.subr.bf16.mxu0 0
    %2576 = vmatpush1.bf16.msra.mxu0 0
    %2577 = vmatprep.subr.bf16.mxu0 0
    %2578 = vmatpush1.bf16.msra.mxu0 0
    %2579 = vmatprep.subr.bf16.mxu0 0
    %2580 = vmatpush1.bf16.msra.mxu0 0
    %2581 = vmatprep.subr.bf16.mxu0 0
    %2582 = vmatpush1.bf16.msra.mxu0 0
    %2583 = vmatprep.subr.bf16.mxu0 0
    %2584 = vmatpush1.bf16.msra.mxu0 0
    %2585 = vmatprep.subr.bf16.mxu0 0
    %2586 = vmatpush1.bf16.msra.mxu0 0
    %2587 = vmatprep.mubr.bf16.mxu0 0
    %2588 = vmatmul.mubr.bf16.gmra.mrb[0].mxu0 %v2550
    %v2589 = vpop.f32.mrb[0].mxu0
    %v2590 = vadd.f32 %v2535, %v2589
    %v2591 = vpop.f32.mrb[0].mxu0
    %v2592 = vpop.f32.mrb[0].mxu0
    %v2593 = vadd.f32 %v2535, %v2592
    %v2594 = vpop.f32.mrb[0].mxu0
    %2595 = vmatprep.mubr.bf16.mxu0 0
    %2596 = vmatmul.mubr.bf16.gmra.mrb[0].mxu0 %v2553
    %v2597 = vpop.f32.mrb[0].mxu0
    %v2598 = vadd.f32 %v2535, %v2597
    %v2599 = vpop.f32.mrb[0].mxu0
    %v2600 = vpop.f32.mrb[0].mxu0
    %v2601 = vadd.f32 %v2535, %v2600
    %v2602 = vpop.f32.mrb[0].mxu0
    %2603 = vdwg.mxu0
    %v2604 = vmul.f32 %v2590, 0.5
    %v2605 = vmul.f32 %v2593, 0.5
    %v2606 = vmul.f32 %v2598, 0.5
    %v2607 = vmul.f32 %v2601, 0.5
    %v2608 = vmul.f32 %v2590, 0.044715
    %v2609 = vmul.f32 %v2593, 0.044715
    %v2610 = vmul.f32 %v2598, 0.044715
    %v2611 = vmul.f32 %v2601, 0.044715
    %v2612 = vmul.f32 %v2608, %v2590
    %v2613 = vmul.f32 %v2609, %v2593
    %v2614 = vmul.f32 %v2610, %v2598
    %v2615 = vmul.f32 %v2611, %v2601
    %v2616 = vmul.f32 %v2612, %v2590
    %v2617 = vmul.f32 %v2613, %v2593
    %v2618 = vmul.f32 %v2614, %v2598
    %v2619 = vmul.f32 %v2615, %v2601
    %v2620 = vadd.f32 %v2590, %v2616
    %v2621 = vadd.f32 %v2593, %v2617
    %v2622 = vadd.f32 %v2598, %v2618
    %v2623 = vadd.f32 %v2601, %v2619
    %v2624 = vmul.f32 %v2620, 0.7978846
    %v2625 = vmul.f32 %v2621, 0.7978846
    %v2626 = vmul.f32 %v2622, 0.7978846
    %v2627 = vmul.f32 %v2623, 0.7978846
    %v2628 = vtanh.pop %v2624
    %v2629 = vtanh.pop %v2625
    %v2630 = vtanh.pop %v2626
    %v2631 = vtanh.pop %v2627
    %v2632 = vadd.f32 %v2628, 1.0
    %v2633 = vadd.f32 %v2629, 1.0
    %v2634 = vadd.f32 %v2630, 1.0
    %v2635 = vadd.f32 %v2631, 1.0
    %v2636 = vmul.f32 %v2604, %v2632
    %v2637 = vmul.f32 %v2605, %v2633
    %v2638 = vmul.f32 %v2606, %v2634
    %v2639 = vmul.f32 %v2607, %v2635
    %v2640 = vpack.c.bf16 %v2637, %v2636
    %v2641 = vpack.c.bf16 %v2639, %v2638
    %v2642 = vld [vmem:[%s18] sm:$0xf]
    %v2643 = vld [vmem:[%s18 + $0x4] sm:$0xf]
    %v2644 = vld [vmem:[%s18 + $0x8] sm:$0xf]
    %v2645 = vld [vmem:[%s18 + $0xc] sm:$0xf]
    %v2646 = vld [vmem:[%s18 + $0x10] sm:$0xf]
    %v2647 = vld [vmem:[%s18 + $0x14] sm:$0xf]
    %v2648 = vld [vmem:[%s18 + $0x18] sm:$0xf]
    %v2649 = vld [vmem:[%s18 + $0x1c] sm:$0xf]
    %v2650 = vld [vmem:[%s18 + $0x20] sm:$0xf]
    %v2651 = vld [vmem:[%s18 + $0x24] sm:$0xf]
    %v2652 = vld [vmem:[%s18 + $0x28] sm:$0xf]
    %v2653 = vld [vmem:[%s18 + $0x2c] sm:$0xf]
    %v2654 = vld [vmem:[%s18 + $0x30] sm:$0xf]
    %v2655 = vld [vmem:[%s18 + $0x34] sm:$0xf]
    %v2656 = vld [vmem:[%s18 + $0x38] sm:$0xf]
    %v2657 = vld [vmem:[%s18 + $0x3c] sm:$0xf]
    %v2674 = vunpack.c.l.b16 %v2642
    %v2675 = vunpack.c.l.b16 %v2643
    %v2676 = vunpack.c.l.b16 %v2644
    %v2677 = vunpack.c.l.b16 %v2645
    %v2678 = vunpack.c.l.b16 %v2646
    %v2679 = vunpack.c.l.b16 %v2647
    %v2680 = vunpack.c.l.b16 %v2648
    %v2681 = vunpack.c.l.b16 %v2649
    %v2682 = vunpack.c.l.b16 %v2650
    %v2683 = vunpack.c.l.b16 %v2651
    %v2684 = vunpack.c.l.b16 %v2652
    %v2685 = vunpack.c.l.b16 %v2653
    %v2686 = vunpack.c.l.b16 %v2654
    %v2687 = vunpack.c.l.b16 %v2655
    %v2688 = vunpack.c.l.b16 %v2656
    %v2689 = vunpack.c.l.b16 %v2657
    %v2690 = vpack.c.b16 %v2675, %v2674
    %v2691 = vpack.c.b16 %v2677, %v2676
    %v2692 = vpack.c.b16 %v2679, %v2678
    %v2693 = vpack.c.b16 %v2681, %v2680
    %v2694 = vpack.c.b16 %v2683, %v2682
    %v2695 = vpack.c.b16 %v2685, %v2684
    %v2696 = vpack.c.b16 %v2687, %v2686
    %v2697 = vpack.c.b16 %v2689, %v2688
    %2706 = vmatprep.subr.bf16.mxu0 0
    %2707 = vmatpush1.bf16.msra.mxu0 %v2690
    %2708 = vmatprep.subr.bf16.mxu0 0
    %2709 = vmatpush1.bf16.msra.mxu0 %v2691
    %2710 = vmatprep.subr.bf16.mxu0 0
    %2711 = vmatpush1.bf16.msra.mxu0 %v2692
    %2712 = vmatprep.subr.bf16.mxu0 0
    %2713 = vmatpush1.bf16.msra.mxu0 %v2693
    %2714 = vmatprep.subr.bf16.mxu0 0
    %2715 = vmatpush1.bf16.msra.mxu0 %v2694
    %2716 = vmatprep.subr.bf16.mxu0 0
    %2717 = vmatpush1.bf16.msra.mxu0 %v2695
    %2718 = vmatprep.subr.bf16.mxu0 0
    %2719 = vmatpush1.bf16.msra.mxu0 %v2696
    %2720 = vmatprep.subr.bf16.mxu0 0
    %2721 = vmatpush1.bf16.msra.mxu0 %v2697
    %2722 = vmatprep.subr.bf16.mxu0 0
    %2723 = vmatpush1.bf16.msra.mxu0 0
    %2724 = vmatprep.subr.bf16.mxu0 0
    %2725 = vmatpush1.bf16.msra.mxu0 0
    %2726 = vmatprep.subr.bf16.mxu0 0
    %2727 = vmatpush1.bf16.msra.mxu0 0
    %2728 = vmatprep.subr.bf16.mxu0 0
    %2729 = vmatpush1.bf16.msra.mxu0 0
    %2730 = vmatprep.subr.bf16.mxu0 0
    %2731 = vmatpush1.bf16.msra.mxu0 0
    %2732 = vmatprep.subr.bf16.mxu0 0
    %2733 = vmatpush1.bf16.msra.mxu0 0
    %2734 = vmatprep.subr.bf16.mxu0 0
    %2735 = vmatpush1.bf16.msra.mxu0 0
    %2736 = vmatprep.subr.bf16.mxu0 0
    %2737 = vmatpush1.bf16.msra.mxu0 0
    %2738 = vmatprep.mubr.bf16.mxu0 0
    %2739 = vmatmul.mubr.bf16.gmra.mrb[0].mxu0 %v2640
    %v2740 = vpop.f32.mrb[0].mxu0
    %v2741 = vadd.f32 0.0, %v2740
    %v2742 = vpop.f32.mrb[0].mxu0
    %v2743 = vpop.f32.mrb[0].mxu0
    %v2744 = vadd.f32 0.0, %v2743
    %v2745 = vpop.f32.mrb[0].mxu0
    %2746 = vmatprep.mubr.bf16.mxu0 0
    %2747 = vmatmul.mubr.bf16.gmra.mrb[0].mxu0 %v2641
    %v2748 = vpop.f32.mrb[0].mxu0
    %v2749 = vadd.f32 0.0, %v2748
    %v2750 = vpop.f32.mrb[0].mxu0
    %v2751 = vpop.f32.mrb[0].mxu0
    %v2752 = vadd.f32 0.0, %v2751
    %v2753 = vpop.f32.mrb[0].mxu0
    %2754 = vdwg.mxu0
    %v2755 = vadd.f32 %v2446, %v2741
    %v2756 = vadd.f32 %v2447, %v2744
    %v2757 = vadd.f32 %v2448, %v2749
    %v2758 = vadd.f32 %v2449, %v2752
    %v2759 = vld [vmem:[%s19] sm:$0x1]
    %v2761 = vlaneseq
    %v2762 = vshrl.u32 %v2761, 7
    %v2763 = vsub.s32 0, %v2762
    %v2764 = vrot.slane %v2759, %v2763
    %v2766 = vadd.f32 %v2755, %v2764
    %v2767 = vadd.f32 %v2756, %v2764
    %v2768 = vadd.f32 %v2757, %v2764
    %v2769 = vadd.f32 %v2758, %v2764
    %s2770 = scalar_lea.vmem %s8, 1
    %v2771 = vld [vmem:[%s2770] sm:$0x1]
    %s2772 = scalar_lea.vmem %s9, 1
    %v2773 = vld [vmem:[%s2772] sm:$0x1]
    %v2774 = vsel %vm200, %v2766, 0.0
    %2775 = vadd.xlane.f32.xlu0 %v2774
    %v2776 = vpop.xlane.xlu0 %2775
    %v2777 = vsel %vm200, %v2767, 0.0
    %2778 = vadd.xlane.f32.xlu0 %v2777
    %v2779 = vpop.xlane.xlu0 %2778
    %v2780 = vsel %vm200, %v2768, 0.0
    %2781 = vadd.xlane.f32.xlu0 %v2780
    %v2782 = vpop.xlane.xlu0 %2781
    %v2783 = vsel %vm200, %v2769, 0.0
    %2784 = vadd.xlane.f32.xlu0 %v2783
    %v2785 = vpop.xlane.xlu0 %2784
    %v2786 = vmul.f32 %v2776, %v546
    %v2787 = vmul.f32 %v2779, %v546
    %v2788 = vmul.f32 %v2782, %v546
    %v2789 = vmul.f32 %v2785, %v546
    %v2790 = vsub.f32 %v2766, %v2786
    %v2791 = vsub.f32 %v2767, %v2787
    %v2792 = vsub.f32 %v2768, %v2788
    %v2793 = vsub.f32 %v2769, %v2789
    %v2794 = vmul.f32 %v2790, %v2790
    %v2795 = vmul.f32 %v2791, %v2791
    %v2796 = vmul.f32 %v2792, %v2792
    %v2797 = vmul.f32 %v2793, %v2793
    %v2798 = vsel %vm200, %v2794, 0.0
    %2799 = vadd.xlane.f32.xlu0 %v2798
    %v2800 = vpop.xlane.xlu0 %2799
    %v2801 = vsel %vm200, %v2795, 0.0
    %2802 = vadd.xlane.f32.xlu0 %v2801
    %v2803 = vpop.xlane.xlu0 %2802
    %v2804 = vsel %vm200, %v2796, 0.0
    %2805 = vadd.xlane.f32.xlu0 %v2804
    %v2806 = vpop.xlane.xlu0 %2805
    %v2807 = vsel %vm200, %v2797, 0.0
    %2808 = vadd.xlane.f32.xlu0 %v2807
    %v2809 = vpop.xlane.xlu0 %2808
    %v2810 = vmul.f32 %v2800, %v546
    %v2811 = vmul.f32 %v2803, %v546
    %v2812 = vmul.f32 %v2806, %v546
    %v2813 = vmul.f32 %v2809, %v546
    %v2814 = vadd.f32 %v2810, 1e-05
    %v2815 = vadd.f32 %v2811, 1e-05
    %v2816 = vadd.f32 %v2812, 1e-05
    %v2817 = vadd.f32 %v2813, 1e-05
    %v2818 = vrsqrt.pop %v2814
    %v2819 = vrsqrt.pop %v2815
    %v2820 = vrsqrt.pop %v2816
    %v2821 = vrsqrt.pop %v2817
    %v2822 = vmul.f32 %v2790, %v2818
    %v2823 = vmul.f32 %v2791, %v2819
    %v2824 = vmul.f32 %v2792, %v2820
    %v2825 = vmul.f32 %v2793, %v2821
    %v2827 = vlaneseq
    %v2828 = vshrl.u32 %v2827, 7
    %v2829 = vsub.s32 0, %v2828
    %v2830 = vrot.slane %v2771, %v2829
    %v2832 = vmul.f32 %v2822, %v2830
    %v2833 = vmul.f32 %v2823, %v2830
    %v2834 = vmul.f32 %v2824, %v2830
    %v2835 = vmul.f32 %v2825, %v2830
    %v2837 = vlaneseq
    %v2838 = vshrl.u32 %v2837, 7
    %v2839 = vsub.s32 0, %v2838
    %v2840 = vrot.slane %v2773, %v2839
    %v2842 = vadd.f32 %v2832, %v2840
    %v2843 = vadd.f32 %v2833, %v2840
    %v2844 = vadd.f32 %v2834, %v2840
    %v2845 = vadd.f32 %v2835, %v2840
    %v2846 = vpack.c.bf16 %v2843, %v2842
    %v2847 = vpack.c.bf16 %v2845, %v2844
    %s2848 = scalar_lea.vmem %s12, 16
    %v2849 = vld [vmem:[%s2848] sm:$0xf]
    %v2850 = vld [vmem:[%s2848 + $0x4] sm:$0xf]
    %v2851 = vld [vmem:[%s2848 + $0x8] sm:$0xf]
    %v2852 = vld [vmem:[%s2848 + $0xc] sm:$0xf]
    %s2853 = scalar_lea.vmem %s13, 1
    %v2854 = vld [vmem:[%s2853] sm:$0x1]
    %v2856 = vlaneseq
    %v2857 = vshrl.u32 %v2856, 7
    %v2858 = vsub.s32 0, %v2857
    %v2859 = vrot.slane %v2854, %v2858
    %v2865 = vunpack.c.l.b16 %v2849
    %v2866 = vunpack.c.l.b16 %v2850
    %v2867 = vunpack.c.l.b16 %v2851
    %v2868 = vunpack.c.l.b16 %v2852
    %v2869 = vpack.c.b16 %v2866, %v2865
    %v2870 = vpack.c.b16 %v2868, %v2867
    %v2874 = vsel %vm200, %v2846, 0
    %v2877 = vsel %vm200, %v2847, 0
    %2879 = vmatprep.subr.bf16.mxu0 0
    %2880 = vmatpush1.bf16.msra.mxu0 %v2869
    %2881 = vmatprep.subr.bf16.mxu0 0
    %2882 = vmatpush1.bf16.msra.mxu0 %v2870
    %2883 = vmatprep.subr.bf16.mxu0 0
    %2884 = vmatpush1.bf16.msra.mxu0 0
    %2885 = vmatprep.subr.bf16.mxu0 0
    %2886 = vmatpush1.bf16.msra.mxu0 0
    %2887 = vmatprep.subr.bf16.mxu0 0
    %2888 = vmatpush1.bf16.msra.mxu0 0
    %2889 = vmatprep.subr.bf16.mxu0 0
    %2890 = vmatpush1.bf16.msra.mxu0 0
    %2891 = vmatprep.subr.bf16.mxu0 0
    %2892 = vmatpush1.bf16.msra.mxu0 0
    %2893 = vmatprep.subr.bf16.mxu0 0
    %2894 = vmatpush1.bf16.msra.mxu0 0
    %2895 = vmatprep.subr.bf16.mxu0 0
    %2896 = vmatpush1.bf16.msra.mxu0 0
    %2897 = vmatprep.subr.bf16.mxu0 0
    %2898 = vmatpush1.bf16.msra.mxu0 0
    %2899 = vmatprep.subr.bf16.mxu0 0
    %2900 = vmatpush1.bf16.msra.mxu0 0
    %2901 = vmatprep.subr.bf16.mxu0 0
    %2902 = vmatpush1.bf16.msra.mxu0 0
    %2903 = vmatprep.subr.bf16.mxu0 0
    %2904 = vmatpush1.bf16.msra.mxu0 0
    %2905 = vmatprep.subr.bf16.mxu0 0
    %2906 = vmatpush1.bf16.msra.mxu0 0
    %2907 = vmatprep.subr.bf16.mxu0 0
    %2908 = vmatpush1.bf16.msra.mxu0 0
    %2909 = vmatprep.subr.bf16.mxu0 0
    %2910 = vmatpush1.bf16.msra.mxu0 0
    %2911 = vmatprep.mubr.bf16.mxu0 0
    %2912 = vmatmul.mubr.bf16.gmra.mrb[0].mxu0 %v2874
    %v2913 = vpop.f32.mrb[0].mxu0
    %v2914 = vadd.f32 %v2859, %v2913
    %v2915 = vpop.f32.mrb[0].mxu0
    %v2916 = vpop.f32.mrb[0].mxu0
    %v2917 = vadd.f32 %v2859, %v2916
    %v2918 = vpop.f32.mrb[0].mxu0
    %2919 = vmatprep.mubr.bf16.mxu0 0
    %2920 = vmatmul.mubr.bf16.gmra.mrb[0].mxu0 %v2877
    %v2921 = vpop.f32.mrb[0].mxu0
    %v2922 = vadd.f32 %v2859, %v2921
    %v2923 = vpop.f32.mrb[0].mxu0
    %v2924 = vpop.f32.mrb[0].mxu0
    %v2925 = vadd.f32 %v2859, %v2924
    %v2926 = vpop.f32.mrb[0].mxu0
    %2927 = vdwg.mxu0
    %2930 = vrot.lane.b32.xlu0 %v2914, 96
    %v2931 = vpop.permute.xlu0 %2930
    %2932 = vrot.lane.b32.xlu0 %v2917, 96
    %v2933 = vpop.permute.xlu0 %2932
    %v2934 = vsel %vm693, %v2914, 0
    %v2936 = vsel %vm693, %v2917, 0
    %v2938 = vsel %vm693, %v2931, 0
    %v2940 = vsel %vm693, %v2933, 0
    %2942 = vmatprep.subr.mxu0 0.0
    %2943 = vmatpush1.xpose.msra.mxu0 %v2938
    %2944 = vmatprep.subr.mxu0 0.0
    %2945 = vmatpush1.xpose.msra.mxu0 %v2940
    %2946 = vmatprep.subr.mxu0 0.0
    %2947 = vmatpush1.xpose.msra.mxu0 0.0
    %2948 = vmatprep.subr.mxu0 0.0
    %2949 = vmatpush1.xpose.msra.mxu0 0.0
    %2950 = vmatprep.subr.mxu0 0.0
    %2951 = vmatpush1.xpose.msra.mxu0 0.0
    %2952 = vmatprep.subr.mxu0 0.0
    %2953 = vmatpush1.xpose.msra.mxu0 0.0
    %2954 = vmatprep.subr.mxu0 0.0
    %2955 = vmatpush1.xpose.msra.mxu0 0.0
    %2956 = vmatprep.subr.mxu0 0.0
    %2957 = vmatpush1.xpose.msra.mxu0 0.0
    %2958 = vmatprep.subr.mxu0 0.0
    %2959 = vmatpush1.xpose.msra.mxu0 0.0
    %2960 = vmatprep.subr.mxu0 0.0
    %2961 = vmatpush1.xpose.msra.mxu0 0.0
    %2962 = vmatprep.subr.mxu0 0.0
    %2963 = vmatpush1.xpose.msra.mxu0 0.0
    %2964 = vmatprep.subr.mxu0 0.0
    %2965 = vmatpush1.xpose.msra.mxu0 0.0
    %2966 = vmatprep.subr.mxu0 0.0
    %2967 = vmatpush1.xpose.msra.mxu0 0.0
    %2968 = vmatprep.subr.mxu0 0.0
    %2969 = vmatpush1.xpose.msra.mxu0 0.0
    %2970 = vmatprep.subr.mxu0 0.0
    %2971 = vmatpush1.xpose.msra.mxu0 0.0
    %2972 = vmatprep.subr.mxu0 0.0
    %2973 = vmatpush1.xpose.msra.mxu0 0.0
    %2974 = vmatprep.subr.mxu0 0.0
    %2975 = vmatpush1.xpose.msra.mxu0 0.0
    %2976 = vmatprep.subr.mxu0 0.0
    %2977 = vmatpush1.xpose.msra.mxu0 0.0
    %2978 = vmatprep.subr.mxu0 0.0
    %2979 = vmatpush1.xpose.msra.mxu0 0.0
    %2980 = vmatprep.subr.mxu0 0.0
    %2981 = vmatpush1.xpose.msra.mxu0 0.0
    %2982 = vmatprep.subr.mxu0 0.0
    %2983 = vmatpush1.xpose.msra.mxu0 0.0
    %2984 = vmatprep.subr.mxu0 0.0
    %2985 = vmatpush1.xpose.msra.mxu0 0.0
    %2986 = vmatprep.subr.mxu0 0.0
    %2987 = vmatpush1.xpose.msra.mxu0 0.0
    %2988 = vmatprep.subr.mxu0 0.0
    %2989 = vmatpush1.xpose.msra.mxu0 0.0
    %2990 = vmatprep.subr.mxu0 0.0
    %2991 = vmatpush1.xpose.msra.mxu0 0.0
    %2992 = vmatprep.subr.mxu0 0.0
    %2993 = vmatpush1.xpose.msra.mxu0 0.0
    %2994 = vmatprep.subr.mxu0 0.0
    %2995 = vmatpush1.xpose.msra.mxu0 0.0
    %2996 = vmatprep.subr.mxu0 0.0
    %2997 = vmatpush1.xpose.msra.mxu0 0.0
    %2998 = vmatprep.subr.mxu0 0.0
    %2999 = vmatpush1.xpose.msra.mxu0 0.0
    %3000 = vmatprep.subr.mxu0 0.0
    %3001 = vmatpush1.xpose.msra.mxu0 0.0
    %3002 = vmatprep.subr.mxu0 0.0
    %3003 = vmatpush1.xpose.msra.mxu0 0.0
    %3004 = vmatprep.subr.mxu0 0.0
    %3005 = vmatpush1.xpose.msra.mxu0 0.0
    %3006 = vmatprep.mubr.f32.mxu0 0.0
    %3007 = vmatmul.mubr.f32.gmra.mrb[0].mxu0 %v2934
    %v3008 = vpop.f32.mrb[0].mxu0
    %v3009 = vadd.f32 0.0, %v3008
    %v3010 = vpop.f32.mrb[0].mxu0
    %3011 = vmatprep.mubr.f32.mxu0 0.0
    %3012 = vmatmul.mubr.f32.gmra.mrb[0].mxu0 %v2936
    %v3013 = vpop.f32.mrb[0].mxu0
    %v3014 = vadd.f32 0.0, %v3013
    %v3015 = vpop.f32.mrb[0].mxu0
    %3016 = vdwg.mxu0
    %3019 = vrot.lane.b32.xlu0 %v2922, 96
    %v3020 = vpop.permute.xlu0 %3019
    %3021 = vrot.lane.b32.xlu0 %v2925, 96
    %v3022 = vpop.permute.xlu0 %3021
    %v3023 = vsel %vm693, %v2922, 0
    %v3025 = vsel %vm693, %v2925, 0
    %v3027 = vsel %vm693, %v3020, 0
    %v3029 = vsel %vm693, %v3022, 0
    %3031 = vmatprep.subr.mxu0 0.0
    %3032 = vmatpush1.xpose.msra.mxu0 %v3027
    %3033 = vmatprep.subr.mxu0 0.0
    %3034 = vmatpush1.xpose.msra.mxu0 %v3029
    %3035 = vmatprep.subr.mxu0 0.0
    %3036 = vmatpush1.xpose.msra.mxu0 0.0
    %3037 = vmatprep.subr.mxu0 0.0
    %3038 = vmatpush1.xpose.msra.mxu0 0.0
    %3039 = vmatprep.subr.mxu0 0.0
    %3040 = vmatpush1.xpose.msra.mxu0 0.0
    %3041 = vmatprep.subr.mxu0 0.0
    %3042 = vmatpush1.xpose.msra.mxu0 0.0
    %3043 = vmatprep.subr.mxu0 0.0
    %3044 = vmatpush1.xpose.msra.mxu0 0.0
    %3045 = vmatprep.subr.mxu0 0.0
    %3046 = vmatpush1.xpose.msra.mxu0 0.0
    %3047 = vmatprep.subr.mxu0 0.0
    %3048 = vmatpush1.xpose.msra.mxu0 0.0
    %3049 = vmatprep.subr.mxu0 0.0
    %3050 = vmatpush1.xpose.msra.mxu0 0.0
    %3051 = vmatprep.subr.mxu0 0.0
    %3052 = vmatpush1.xpose.msra.mxu0 0.0
    %3053 = vmatprep.subr.mxu0 0.0
    %3054 = vmatpush1.xpose.msra.mxu0 0.0
    %3055 = vmatprep.subr.mxu0 0.0
    %3056 = vmatpush1.xpose.msra.mxu0 0.0
    %3057 = vmatprep.subr.mxu0 0.0
    %3058 = vmatpush1.xpose.msra.mxu0 0.0
    %3059 = vmatprep.subr.mxu0 0.0
    %3060 = vmatpush1.xpose.msra.mxu0 0.0
    %3061 = vmatprep.subr.mxu0 0.0
    %3062 = vmatpush1.xpose.msra.mxu0 0.0
    %3063 = vmatprep.subr.mxu0 0.0
    %3064 = vmatpush1.xpose.msra.mxu0 0.0
    %3065 = vmatprep.subr.mxu0 0.0
    %3066 = vmatpush1.xpose.msra.mxu0 0.0
    %3067 = vmatprep.subr.mxu0 0.0
    %3068 = vmatpush1.xpose.msra.mxu0 0.0
    %3069 = vmatprep.subr.mxu0 0.0
    %3070 = vmatpush1.xpose.msra.mxu0 0.0
    %3071 = vmatprep.subr.mxu0 0.0
    %3072 = vmatpush1.xpose.msra.mxu0 0.0
    %3073 = vmatprep.subr.mxu0 0.0
    %3074 = vmatpush1.xpose.msra.mxu0 0.0
    %3075 = vmatprep.subr.mxu0 0.0
    %3076 = vmatpush1.xpose.msra.mxu0 0.0
    %3077 = vmatprep.subr.mxu0 0.0
    %3078 = vmatpush1.xpose.msra.mxu0 0.0
    %3079 = vmatprep.subr.mxu0 0.0
    %3080 = vmatpush1.xpose.msra.mxu0 0.0
    %3081 = vmatprep.subr.mxu0 0.0
    %3082 = vmatpush1.xpose.msra.mxu0 0.0
    %3083 = vmatprep.subr.mxu0 0.0
    %3084 = vmatpush1.xpose.msra.mxu0 0.0
    %3085 = vmatprep.subr.mxu0 0.0
    %3086 = vmatpush1.xpose.msra.mxu0 0.0
    %3087 = vmatprep.subr.mxu0 0.0
    %3088 = vmatpush1.xpose.msra.mxu0 0.0
    %3089 = vmatprep.subr.mxu0 0.0
    %3090 = vmatpush1.xpose.msra.mxu0 0.0
    %3091 = vmatprep.subr.mxu0 0.0
    %3092 = vmatpush1.xpose.msra.mxu0 0.0
    %3093 = vmatprep.subr.mxu0 0.0
    %3094 = vmatpush1.xpose.msra.mxu0 0.0
    %3095 = vmatprep.mubr.f32.mxu0 0.0
    %3096 = vmatmul.mubr.f32.gmra.mrb[0].mxu0 %v3023
    %v3097 = vpop.f32.mrb[0].mxu0
    %v3098 = vadd.f32 0.0, %v3097
    %v3099 = vpop.f32.mrb[0].mxu0
    %3100 = vmatprep.mubr.f32.mxu0 0.0
    %3101 = vmatmul.mubr.f32.gmra.mrb[0].mxu0 %v3025
    %v3102 = vpop.f32.mrb[0].mxu0
    %v3103 = vadd.f32 0.0, %v3102
    %v3104 = vpop.f32.mrb[0].mxu0
    %3105 = vdwg.mxu0
    %v3106 = vmul.f32 %v3009, 0.35355338
    %v3107 = vmul.f32 %v3014, 0.35355338
    %v3108 = vmul.f32 %v3098, 0.35355338
    %v3109 = vmul.f32 %v3103, 0.35355338
    %v3110 = vsel %vm870, %v3106, -inf
    %3111 = vmax.xlane.f32.xlu0 %v3110
    %v3112 = vpop.xlane.xlu0 %3111
    %v3113 = vsel %vm870, %v3107, -inf
    %3114 = vmax.xlane.f32.xlu0 %v3113
    %v3115 = vpop.xlane.xlu0 %3114
    %v3116 = vsel %vm870, %v3108, -inf
    %3117 = vmax.xlane.f32.xlu0 %v3116
    %v3118 = vpop.xlane.xlu0 %3117
    %v3119 = vsel %vm870, %v3109, -inf
    %3120 = vmax.xlane.f32.xlu0 %v3119
    %v3121 = vpop.xlane.xlu0 %3120
    %v3122 = vsub.f32 %v3106, %v3112
    %v3123 = vsub.f32 %v3107, %v3115
    %v3124 = vsub.f32 %v3108, %v3118
    %v3125 = vsub.f32 %v3109, %v3121
    %v3126 = vmul.f32 %v3122, 1.442695
    %v3127 = vpow.pop %v3126
    %v3128 = vmul.f32 %v3123, 1.442695
    %v3129 = vpow.pop %v3128
    %v3130 = vmul.f32 %v3124, 1.442695
    %v3131 = vpow.pop %v3130
    %v3132 = vmul.f32 %v3125, 1.442695
    %v3133 = vpow.pop %v3132
    %v3134 = vsel %vm870, %v3127, 0.0
    %3135 = vadd.xlane.f32.xlu0 %v3134
    %v3136 = vpop.xlane.xlu0 %3135
    %v3137 = vsel %vm870, %v3129, 0.0
    %3138 = vadd.xlane.f32.xlu0 %v3137
    %v3139 = vpop.xlane.xlu0 %3138
    %v3140 = vsel %vm870, %v3131, 0.0
    %3141 = vadd.xlane.f32.xlu0 %v3140
    %v3142 = vpop.xlane.xlu0 %3141
    %v3143 = vsel %vm870, %v3133, 0.0
    %3144 = vadd.xlane.f32.xlu0 %v3143
    %v3145 = vpop.xlane.xlu0 %3144
    %v3146 = vrcp.pop %v3136
    %v3147 = vrcp.pop %v3139
    %v3148 = vrcp.pop %v3142
    %v3149 = vrcp.pop %v3145
    %v3150 = vmul.f32 %v3127, %v3146
    %v3151 = vmul.f32 %v3129, %v3147
    %v3152 = vmul.f32 %v3131, %v3148
    %v3153 = vmul.f32 %v3133, %v3149
    %3154 = vrot.lane.b32.xlu0 %v2914, 64
    %v3155 = vpop.permute.xlu0 %3154
    %3156 = vrot.lane.b32.xlu0 %v2917, 64
    %v3157 = vpop.permute.xlu0 %3156
    %v3161 = vsel %vm870, %v3150, 0
    %v3164 = vsel %vm870, %v3151, 0
    %3166 = vmatprep.subr.mxu0 0.0
    %3167 = vmatpush1.msra.mxu0 %v3155
    %3168 = vmatprep.subr.mxu0 0.0
    %3169 = vmatpush1.msra.mxu0 %v3157
    %3170 = vmatprep.subr.mxu0 0.0
    %3171 = vmatpush1.msra.mxu0 0.0
    %3172 = vmatprep.subr.mxu0 0.0
    %3173 = vmatpush1.msra.mxu0 0.0
    %3174 = vmatprep.subr.mxu0 0.0
    %3175 = vmatpush1.msra.mxu0 0.0
    %3176 = vmatprep.subr.mxu0 0.0
    %3177 = vmatpush1.msra.mxu0 0.0
    %3178 = vmatprep.subr.mxu0 0.0
    %3179 = vmatpush1.msra.mxu0 0.0
    %3180 = vmatprep.subr.mxu0 0.0
    %3181 = vmatpush1.msra.mxu0 0.0
    %3182 = vmatprep.subr.mxu0 0.0
    %3183 = vmatpush1.msra.mxu0 0.0
    %3184 = vmatprep.subr.mxu0 0.0
    %3185 = vmatpush1.msra.mxu0 0.0
    %3186 = vmatprep.subr.mxu0 0.0
    %3187 = vmatpush1.msra.mxu0 0.0
    %3188 = vmatprep.subr.mxu0 0.0
    %3189 = vmatpush1.msra.mxu0 0.0
    %3190 = vmatprep.subr.mxu0 0.0
    %3191 = vmatpush1.msra.mxu0 0.0
    %3192 = vmatprep.subr.mxu0 0.0
    %3193 = vmatpush1.msra.mxu0 0.0
    %3194 = vmatprep.subr.mxu0 0.0
    %3195 = vmatpush1.msra.mxu0 0.0
    %3196 = vmatprep.subr.mxu0 0.0
    %3197 = vmatpush1.msra.mxu0 0.0
    %3198 = vmatprep.subr.mxu0 0.0
    %3199 = vmatpush1.msra.mxu0 0.0
    %3200 = vmatprep.subr.mxu0 0.0
    %3201 = vmatpush1.msra.mxu0 0.0
    %3202 = vmatprep.subr.mxu0 0.0
    %3203 = vmatpush1.msra.mxu0 0.0
    %3204 = vmatprep.subr.mxu0 0.0
    %3205 = vmatpush1.msra.mxu0 0.0
    %3206 = vmatprep.subr.mxu0 0.0
    %3207 = vmatpush1.msra.mxu0 0.0
    %3208 = vmatprep.subr.mxu0 0.0
    %3209 = vmatpush1.msra.mxu0 0.0
    %3210 = vmatprep.subr.mxu0 0.0
    %3211 = vmatpush1.msra.mxu0 0.0
    %3212 = vmatprep.subr.mxu0 0.0
    %3213 = vmatpush1.msra.mxu0 0.0
    %3214 = vmatprep.subr.mxu0 0.0
    %3215 = vmatpush1.msra.mxu0 0.0
    %3216 = vmatprep.subr.mxu0 0.0
    %3217 = vmatpush1.msra.mxu0 0.0
    %3218 = vmatprep.subr.mxu0 0.0
    %3219 = vmatpush1.msra.mxu0 0.0
    %3220 = vmatprep.subr.mxu0 0.0
    %3221 = vmatpush1.msra.mxu0 0.0
    %3222 = vmatprep.subr.mxu0 0.0
    %3223 = vmatpush1.msra.mxu0 0.0
    %3224 = vmatprep.subr.mxu0 0.0
    %3225 = vmatpush1.msra.mxu0 0.0
    %3226 = vmatprep.subr.mxu0 0.0
    %3227 = vmatpush1.msra.mxu0 0.0
    %3228 = vmatprep.subr.mxu0 0.0
    %3229 = vmatpush1.msra.mxu0 0.0
    %3230 = vmatprep.mubr.f32.mxu0 0.0
    %3231 = vmatmul.mubr.f32.gmra.mrb[0].mxu0 %v3161
    %v3232 = vpop.f32.mrb[0].mxu0
    %v3233 = vadd.f32 0.0, %v3232
    %v3234 = vpop.f32.mrb[0].mxu0
    %3235 = vmatprep.mubr.f32.mxu0 0.0
    %3236 = vmatmul.mubr.f32.gmra.mrb[0].mxu0 %v3164
    %v3237 = vpop.f32.mrb[0].mxu0
    %v3238 = vadd.f32 0.0, %v3237
    %v3239 = vpop.f32.mrb[0].mxu0
    %3240 = vdwg.mxu0
    %3241 = vrot.lane.b32.xlu0 %v2922, 64
    %v3242 = vpop.permute.xlu0 %3241
    %3243 = vrot.lane.b32.xlu0 %v2925, 64
    %v3244 = vpop.permute.xlu0 %3243
    %v3248 = vsel %vm870, %v3152, 0
    %v3251 = vsel %vm870, %v3153, 0
    %3253 = vmatprep.subr.mxu0 0.0
    %3254 = vmatpush1.msra.mxu0 %v3242
    %3255 = vmatprep.subr.mxu0 0.0
    %3256 = vmatpush1.msra.mxu0 %v3244
    %3257 = vmatprep.subr.mxu0 0.0
    %3258 = vmatpush1.msra.mxu0 0.0
    %3259 = vmatprep.subr.mxu0 0.0
    %3260 = vmatpush1.msra.mxu0 0.0
    %3261 = vmatprep.subr.mxu0 0.0
    %3262 = vmatpush1.msra.mxu0 0.0
    %3263 = vmatprep.subr.mxu0 0.0
    %3264 = vmatpush1.msra.mxu0 0.0
    %3265 = vmatprep.subr.mxu0 0.0
    %3266 = vmatpush1.msra.mxu0 0.0
    %3267 = vmatprep.subr.mxu0 0.0
    %3268 = vmatpush1.msra.mxu0 0.0
    %3269 = vmatprep.subr.mxu0 0.0
    %3270 = vmatpush1.msra.mxu0 0.0
    %3271 = vmatprep.subr.mxu0 0.0
    %3272 = vmatpush1.msra.mxu0 0.0
    %3273 = vmatprep.subr.mxu0 0.0
    %3274 = vmatpush1.msra.mxu0 0.0
    %3275 = vmatprep.subr.mxu0 0.0
    %3276 = vmatpush1.msra.mxu0 0.0
    %3277 = vmatprep.subr.mxu0 0.0
    %3278 = vmatpush1.msra.mxu0 0.0
    %3279 = vmatprep.subr.mxu0 0.0
    %3280 = vmatpush1.msra.mxu0 0.0
    %3281 = vmatprep.subr.mxu0 0.0
    %3282 = vmatpush1.msra.mxu0 0.0
    %3283 = vmatprep.subr.mxu0 0.0
    %3284 = vmatpush1.msra.mxu0 0.0
    %3285 = vmatprep.subr.mxu0 0.0
    %3286 = vmatpush1.msra.mxu0 0.0
    %3287 = vmatprep.subr.mxu0 0.0
    %3288 = vmatpush1.msra.mxu0 0.0
    %3289 = vmatprep.subr.mxu0 0.0
    %3290 = vmatpush1.msra.mxu0 0.0
    %3291 = vmatprep.subr.mxu0 0.0
    %3292 = vmatpush1.msra.mxu0 0.0
    %3293 = vmatprep.subr.mxu0 0.0
    %3294 = vmatpush1.msra.mxu0 0.0
    %3295 = vmatprep.subr.mxu0 0.0
    %3296 = vmatpush1.msra.mxu0 0.0
    %3297 = vmatprep.subr.mxu0 0.0
    %3298 = vmatpush1.msra.mxu0 0.0
    %3299 = vmatprep.subr.mxu0 0.0
    %3300 = vmatpush1.msra.mxu0 0.0
    %3301 = vmatprep.subr.mxu0 0.0
    %3302 = vmatpush1.msra.mxu0 0.0
    %3303 = vmatprep.subr.mxu0 0.0
    %3304 = vmatpush1.msra.mxu0 0.0
    %3305 = vmatprep.subr.mxu0 0.0
    %3306 = vmatpush1.msra.mxu0 0.0
    %3307 = vmatprep.subr.mxu0 0.0
    %3308 = vmatpush1.msra.mxu0 0.0
    %3309 = vmatprep.subr.mxu0 0.0
    %3310 = vmatpush1.msra.mxu0 0.0
    %3311 = vmatprep.subr.mxu0 0.0
    %3312 = vmatpush1.msra.mxu0 0.0
    %3313 = vmatprep.subr.mxu0 0.0
    %3314 = vmatpush1.msra.mxu0 0.0
    %3315 = vmatprep.subr.mxu0 0.0
    %3316 = vmatpush1.msra.mxu0 0.0
    %3317 = vmatprep.mubr.f32.mxu0 0.0
    %3318 = vmatmul.mubr.f32.gmra.mrb[0].mxu0 %v3248
    %v3319 = vpop.f32.mrb[0].mxu0
    %v3320 = vadd.f32 0.0, %v3319
    %v3321 = vpop.f32.mrb[0].mxu0
    %3322 = vmatprep.mubr.f32.mxu0 0.0
    %3323 = vmatmul.mubr.f32.gmra.mrb[0].mxu0 %v3251
    %v3324 = vpop.f32.mrb[0].mxu0
    %v3325 = vadd.f32 0.0, %v3324
    %v3326 = vpop.f32.mrb[0].mxu0
    %3327 = vdwg.mxu0
    %3328 = vrot.lane.b32.xlu0 %v2914, 120
    %v3329 = vpop.permute.xlu0 %3328
    %3330 = vrot.lane.b32.xlu0 %v2917, 120
    %v3331 = vpop.permute.xlu0 %3330
    %3332 = vrot.lane.b32.xlu0 %v2914, 88
    %v3333 = vpop.permute.xlu0 %3332
    %3334 = vrot.lane.b32.xlu0 %v2917, 88
    %v3335 = vpop.permute.xlu0 %3334
    %v3336 = vsel %vm693, %v3329, 0
    %v3338 = vsel %vm693, %v3331, 0
    %v3340 = vsel %vm693, %v3333, 0
    %v3342 = vsel %vm693, %v3335, 0
    %3344 = vmatprep.subr.mxu0 0.0
    %3345 = vmatpush1.xpose.msra.mxu0 %v3340
    %3346 = vmatprep.subr.mxu0 0.0
    %3347 = vmatpush1.xpose.msra.mxu0 %v3342
    %3348 = vmatprep.subr.mxu0 0.0
    %3349 = vmatpush1.xpose.msra.mxu0 0.0
    %3350 = vmatprep.subr.mxu0 0.0
    %3351 = vmatpush1.xpose.msra.mxu0 0.0
    %3352 = vmatprep.subr.mxu0 0.0
    %3353 = vmatpush1.xpose.msra.mxu0 0.0
    %3354 = vmatprep.subr.mxu0 0.0
    %3355 = vmatpush1.xpose.msra.mxu0 0.0
    %3356 = vmatprep.subr.mxu0 0.0
    %3357 = vmatpush1.xpose.msra.mxu0 0.0
    %3358 = vmatprep.subr.mxu0 0.0
    %3359 = vmatpush1.xpose.msra.mxu0 0.0
    %3360 = vmatprep.subr.mxu0 0.0
    %3361 = vmatpush1.xpose.msra.mxu0 0.0
    %3362 = vmatprep.subr.mxu0 0.0
    %3363 = vmatpush1.xpose.msra.mxu0 0.0
    %3364 = vmatprep.subr.mxu0 0.0
    %3365 = vmatpush1.xpose.msra.mxu0 0.0
    %3366 = vmatprep.subr.mxu0 0.0
    %3367 = vmatpush1.xpose.msra.mxu0 0.0
    %3368 = vmatprep.subr.mxu0 0.0
    %3369 = vmatpush1.xpose.msra.mxu0 0.0
    %3370 = vmatprep.subr.mxu0 0.0
    %3371 = vmatpush1.xpose.msra.mxu0 0.0
    %3372 = vmatprep.subr.mxu0 0.0
    %3373 = vmatpush1.xpose.msra.mxu0 0.0
    %3374 = vmatprep.subr.mxu0 0.0
    %3375 = vmatpush1.xpose.msra.mxu0 0.0
    %3376 = vmatprep.subr.mxu0 0.0
    %3377 = vmatpush1.xpose.msra.mxu0 0.0
    %3378 = vmatprep.subr.mxu0 0.0
    %3379 = vmatpush1.xpose.msra.mxu0 0.0
    %3380 = vmatprep.subr.mxu0 0.0
    %3381 = vmatpush1.xpose.msra.mxu0 0.0
    %3382 = vmatprep.subr.mxu0 0.0
    %3383 = vmatpush1.xpose.msra.mxu0 0.0
    %3384 = vmatprep.subr.mxu0 0.0
    %3385 = vmatpush1.xpose.msra.mxu0 0.0
    %3386 = vmatprep.subr.mxu0 0.0
    %3387 = vmatpush1.xpose.msra.mxu0 0.0
    %3388 = vmatprep.subr.mxu0 0.0
    %3389 = vmatpush1.xpose.msra.mxu0 0.0
    %3390 = vmatprep.subr.mxu0 0.0
    %3391 = vmatpush1.xpose.msra.mxu0 0.0
    %3392 = vmatprep.subr.mxu0 0.0
    %3393 = vmatpush1.xpose.msra.mxu0 0.0
    %3394 = vmatprep.subr.mxu0 0.0
    %3395 = vmatpush1.xpose.msra.mxu0 0.0
    %3396 = vmatprep.subr.mxu0 0.0
    %3397 = vmatpush1.xpose.msra.mxu0 0.0
    %3398 = vmatprep.subr.mxu0 0.0
    %3399 = vmatpush1.xpose.msra.mxu0 0.0
    %3400 = vmatprep.subr.mxu0 0.0
    %3401 = vmatpush1.xpose.msra.mxu0 0.0
    %3402 = vmatprep.subr.mxu0 0.0
    %3403 = vmatpush1.xpose.msra.mxu0 0.0
    %3404 = vmatprep.subr.mxu0 0.0
    %3405 = vmatpush1.xpose.msra.mxu0 0.0
    %3406 = vmatprep.subr.mxu0 0.0
    %3407 = vmatpush1.xpose.msra.mxu0 0.0
    %3408 = vmatprep.mubr.f32.mxu0 0.0
    %3409 = vmatmul.mubr.f32.gmra.mrb[0].mxu0 %v3336
    %v3410 = vpop.f32.mrb[0].mxu0
    %v3411 = vadd.f32 0.0, %v3410
    %v3412 = vpop.f32.mrb[0].mxu0
    %3413 = vmatprep.mubr.f32.mxu0 0.0
    %3414 = vmatmul.mubr.f32.gmra.mrb[0].mxu0 %v3338
    %v3415 = vpop.f32.mrb[0].mxu0
    %v3416 = vadd.f32 0.0, %v3415
    %v3417 = vpop.f32.mrb[0].mxu0
    %3418 = vdwg.mxu0
    %3419 = vrot.lane.b32.xlu0 %v2922, 120
    %v3420 = vpop.permute.xlu0 %3419
    %3421 = vrot.lane.b32.xlu0 %v2925, 120
    %v3422 = vpop.permute.xlu0 %3421
    %3423 = vrot.lane.b32.xlu0 %v2922, 88
    %v3424 = vpop.permute.xlu0 %3423
    %3425 = vrot.lane.b32.xlu0 %v2925, 88
    %v3426 = vpop.permute.xlu0 %3425
    %v3427 = vsel %vm693, %v3420, 0
    %v3429 = vsel %vm693, %v3422, 0
    %v3431 = vsel %vm693, %v3424, 0
    %v3433 = vsel %vm693, %v3426, 0
    %3435 = vmatprep.subr.mxu0 0.0
    %3436 = vmatpush1.xpose.msra.mxu0 %v3431
    %3437 = vmatprep.subr.mxu0 0.0
    %3438 = vmatpush1.xpose.msra.mxu0 %v3433
    %3439 = vmatprep.subr.mxu0 0.0
    %3440 = vmatpush1.xpose.msra.mxu0 0.0
    %3441 = vmatprep.subr.mxu0 0.0
    %3442 = vmatpush1.xpose.msra.mxu0 0.0
    %3443 = vmatprep.subr.mxu0 0.0
    %3444 = vmatpush1.xpose.msra.mxu0 0.0
    %3445 = vmatprep.subr.mxu0 0.0
    %3446 = vmatpush1.xpose.msra.mxu0 0.0
    %3447 = vmatprep.subr.mxu0 0.0
    %3448 = vmatpush1.xpose.msra.mxu0 0.0
    %3449 = vmatprep.subr.mxu0 0.0
    %3450 = vmatpush1.xpose.msra.mxu0 0.0
    %3451 = vmatprep.subr.mxu0 0.0
    %3452 = vmatpush1.xpose.msra.mxu0 0.0
    %3453 = vmatprep.subr.mxu0 0.0
    %3454 = vmatpush1.xpose.msra.mxu0 0.0
    %3455 = vmatprep.subr.mxu0 0.0
    %3456 = vmatpush1.xpose.msra.mxu0 0.0
    %3457 = vmatprep.subr.mxu0 0.0
    %3458 = vmatpush1.xpose.msra.mxu0 0.0
    %3459 = vmatprep.subr.mxu0 0.0
    %3460 = vmatpush1.xpose.msra.mxu0 0.0
    %3461 = vmatprep.subr.mxu0 0.0
    %3462 = vmatpush1.xpose.msra.mxu0 0.0
    %3463 = vmatprep.subr.mxu0 0.0
    %3464 = vmatpush1.xpose.msra.mxu0 0.0
    %3465 = vmatprep.subr.mxu0 0.0
    %3466 = vmatpush1.xpose.msra.mxu0 0.0
    %3467 = vmatprep.subr.mxu0 0.0
    %3468 = vmatpush1.xpose.msra.mxu0 0.0
    %3469 = vmatprep.subr.mxu0 0.0
    %3470 = vmatpush1.xpose.msra.mxu0 0.0
    %3471 = vmatprep.subr.mxu0 0.0
    %3472 = vmatpush1.xpose.msra.mxu0 0.0
    %3473 = vmatprep.subr.mxu0 0.0
    %3474 = vmatpush1.xpose.msra.mxu0 0.0
    %3475 = vmatprep.subr.mxu0 0.0
    %3476 = vmatpush1.xpose.msra.mxu0 0.0
    %3477 = vmatprep.subr.mxu0 0.0
    %3478 = vmatpush1.xpose.msra.mxu0 0.0
    %3479 = vmatprep.subr.mxu0 0.0
    %3480 = vmatpush1.xpose.msra.mxu0 0.0
    %3481 = vmatprep.subr.mxu0 0.0
    %3482 = vmatpush1.xpose.msra.mxu0 0.0
    %3483 = vmatprep.subr.mxu0 0.0
    %3484 = vmatpush1.xpose.msra.mxu0 0.0
    %3485 = vmatprep.subr.mxu0 0.0
    %3486 = vmatpush1.xpose.msra.mxu0 0.0
    %3487 = vmatprep.subr.mxu0 0.0
    %3488 = vmatpush1.xpose.msra.mxu0 0.0
    %3489 = vmatprep.subr.mxu0 0.0
    %3490 = vmatpush1.xpose.msra.mxu0 0.0
    %3491 = vmatprep.subr.mxu0 0.0
    %3492 = vmatpush1.xpose.msra.mxu0 0.0
    %3493 = vmatprep.subr.mxu0 0.0
    %3494 = vmatpush1.xpose.msra.mxu0 0.0
    %3495 = vmatprep.subr.mxu0 0.0
    %3496 = vmatpush1.xpose.msra.mxu0 0.0
    %3497 = vmatprep.subr.mxu0 0.0
    %3498 = vmatpush1.xpose.msra.mxu0 0.0
    %3499 = vmatprep.mubr.f32.mxu0 0.0
    %3500 = vmatmul.mubr.f32.gmra.mrb[0].mxu0 %v3427
    %v3501 = vpop.f32.mrb[0].mxu0
    %v3502 = vadd.f32 0.0, %v3501
    %v3503 = vpop.f32.mrb[0].mxu0
    %3504 = vmatprep.mubr.f32.mxu0 0.0
    %3505 = vmatmul.mubr.f32.gmra.mrb[0].mxu0 %v3429
    %v3506 = vpop.f32.mrb[0].mxu0
    %v3507 = vadd.f32 0.0, %v3506
    %v3508 = vpop.f32.mrb[0].mxu0
    %3509 = vdwg.mxu0
    %v3510 = vmul.f32 %v3411, 0.35355338
    %v3511 = vmul.f32 %v3416, 0.35355338
    %v3512 = vmul.f32 %v3502, 0.35355338
    %v3513 = vmul.f32 %v3507, 0.35355338
    %v3514 = vsel %vm870, %v3510, -inf
    %3515 = vmax.xlane.f32.xlu0 %v3514
    %v3516 = vpop.xlane.xlu0 %3515
    %v3517 = vsel %vm870, %v3511, -inf
    %3518 = vmax.xlane.f32.xlu0 %v3517
    %v3519 = vpop.xlane.xlu0 %3518
    %v3520 = vsel %vm870, %v3512, -inf
    %3521 = vmax.xlane.f32.xlu0 %v3520
    %v3522 = vpop.xlane.xlu0 %3521
    %v3523 = vsel %vm870, %v3513, -inf
    %3524 = vmax.xlane.f32.xlu0 %v3523
    %v3525 = vpop.xlane.xlu0 %3524
    %v3526 = vsub.f32 %v3510, %v3516
    %v3527 = vsub.f32 %v3511, %v3519
    %v3528 = vsub.f32 %v3512, %v3522
    %v3529 = vsub.f32 %v3513, %v3525
    %v3530 = vmul.f32 %v3526, 1.442695
    %v3531 = vpow.pop %v3530
    %v3532 = vmul.f32 %v3527, 1.442695
    %v3533 = vpow.pop %v3532
    %v3534 = vmul.f32 %v3528, 1.442695
    %v3535 = vpow.pop %v3534
    %v3536 = vmul.f32 %v3529, 1.442695
    %v3537 = vpow.pop %v3536
    %v3538 = vsel %vm870, %v3531, 0.0
    %3539 = vadd.xlane.f32.xlu0 %v3538
    %v3540 = vpop.xlane.xlu0 %3539
    %v3541 = vsel %vm870, %v3533, 0.0
    %3542 = vadd.xlane.f32.xlu0 %v3541
    %v3543 = vpop.xlane.xlu0 %3542
    %v3544 = vsel %vm870, %v3535, 0.0
    %3545 = vadd.xlane.f32.xlu0 %v3544
    %v3546 = vpop.xlane.xlu0 %3545
    %v3547 = vsel %vm870, %v3537, 0.0
    %3548 = vadd.xlane.f32.xlu0 %v3547
    %v3549 = vpop.xlane.xlu0 %3548
    %v3550 = vrcp.pop %v3540
    %v3551 = vrcp.pop %v3543
    %v3552 = vrcp.pop %v3546
    %v3553 = vrcp.pop %v3549
    %v3554 = vmul.f32 %v3531, %v3550
    %v3555 = vmul.f32 %v3533, %v3551
    %v3556 = vmul.f32 %v3535, %v3552
    %v3557 = vmul.f32 %v3537, %v3553
    %3558 = vrot.lane.b32.xlu0 %v2914, 56
    %v3559 = vpop.permute.xlu0 %3558
    %3560 = vrot.lane.b32.xlu0 %v2917, 56
    %v3561 = vpop.permute.xlu0 %3560
    %v3565 = vsel %vm870, %v3554, 0
    %v3568 = vsel %vm870, %v3555, 0
    %3570 = vmatprep.subr.mxu0 0.0
    %3571 = vmatpush1.msra.mxu0 %v3559
    %3572 = vmatprep.subr.mxu0 0.0
    %3573 = vmatpush1.msra.mxu0 %v3561
    %3574 = vmatprep.subr.mxu0 0.0
    %3575 = vmatpush1.msra.mxu0 0.0
    %3576 = vmatprep.subr.mxu0 0.0
    %3577 = vmatpush1.msra.mxu0 0.0
    %3578 = vmatprep.subr.mxu0 0.0
    %3579 = vmatpush1.msra.mxu0 0.0
    %3580 = vmatprep.subr.mxu0 0.0
    %3581 = vmatpush1.msra.mxu0 0.0
    %3582 = vmatprep.subr.mxu0 0.0
    %3583 = vmatpush1.msra.mxu0 0.0
    %3584 = vmatprep.subr.mxu0 0.0
    %3585 = vmatpush1.msra.mxu0 0.0
    %3586 = vmatprep.subr.mxu0 0.0
    %3587 = vmatpush1.msra.mxu0 0.0
    %3588 = vmatprep.subr.mxu0 0.0
    %3589 = vmatpush1.msra.mxu0 0.0
    %3590 = vmatprep.subr.mxu0 0.0
    %3591 = vmatpush1.msra.mxu0 0.0
    %3592 = vmatprep.subr.mxu0 0.0
    %3593 = vmatpush1.msra.mxu0 0.0
    %3594 = vmatprep.subr.mxu0 0.0
    %3595 = vmatpush1.msra.mxu0 0.0
    %3596 = vmatprep.subr.mxu0 0.0
    %3597 = vmatpush1.msra.mxu0 0.0
    %3598 = vmatprep.subr.mxu0 0.0
    %3599 = vmatpush1.msra.mxu0 0.0
    %3600 = vmatprep.subr.mxu0 0.0
    %3601 = vmatpush1.msra.mxu0 0.0
    %3602 = vmatprep.subr.mxu0 0.0
    %3603 = vmatpush1.msra.mxu0 0.0
    %3604 = vmatprep.subr.mxu0 0.0
    %3605 = vmatpush1.msra.mxu0 0.0
    %3606 = vmatprep.subr.mxu0 0.0
    %3607 = vmatpush1.msra.mxu0 0.0
    %3608 = vmatprep.subr.mxu0 0.0
    %3609 = vmatpush1.msra.mxu0 0.0
    %3610 = vmatprep.subr.mxu0 0.0
    %3611 = vmatpush1.msra.mxu0 0.0
    %3612 = vmatprep.subr.mxu0 0.0
    %3613 = vmatpush1.msra.mxu0 0.0
    %3614 = vmatprep.subr.mxu0 0.0
    %3615 = vmatpush1.msra.mxu0 0.0
    %3616 = vmatprep.subr.mxu0 0.0
    %3617 = vmatpush1.msra.mxu0 0.0
    %3618 = vmatprep.subr.mxu0 0.0
    %3619 = vmatpush1.msra.mxu0 0.0
    %3620 = vmatprep.subr.mxu0 0.0
    %3621 = vmatpush1.msra.mxu0 0.0
    %3622 = vmatprep.subr.mxu0 0.0
    %3623 = vmatpush1.msra.mxu0 0.0
    %3624 = vmatprep.subr.mxu0 0.0
    %3625 = vmatpush1.msra.mxu0 0.0
    %3626 = vmatprep.subr.mxu0 0.0
    %3627 = vmatpush1.msra.mxu0 0.0
    %3628 = vmatprep.subr.mxu0 0.0
    %3629 = vmatpush1.msra.mxu0 0.0
    %3630 = vmatprep.subr.mxu0 0.0
    %3631 = vmatpush1.msra.mxu0 0.0
    %3632 = vmatprep.subr.mxu0 0.0
    %3633 = vmatpush1.msra.mxu0 0.0
    %3634 = vmatprep.mubr.f32.mxu0 0.0
    %3635 = vmatmul.mubr.f32.gmra.mrb[0].mxu0 %v3565
    %v3636 = vpop.f32.mrb[0].mxu0
    %v3637 = vadd.f32 0.0, %v3636
    %v3638 = vpop.f32.mrb[0].mxu0
    %3639 = vmatprep.mubr.f32.mxu0 0.0
    %3640 = vmatmul.mubr.f32.gmra.mrb[0].mxu0 %v3568
    %v3641 = vpop.f32.mrb[0].mxu0
    %v3642 = vadd.f32 0.0, %v3641
    %v3643 = vpop.f32.mrb[0].mxu0
    %3644 = vdwg.mxu0
    %3645 = vrot.lane.b32.xlu0 %v2922, 56
    %v3646 = vpop.permute.xlu0 %3645
    %3647 = vrot.lane.b32.xlu0 %v2925, 56
    %v3648 = vpop.permute.xlu0 %3647
    %v3652 = vsel %vm870, %v3556, 0
    %v3655 = vsel %vm870, %v3557, 0
    %3657 = vmatprep.subr.mxu0 0.0
    %3658 = vmatpush1.msra.mxu0 %v3646
    %3659 = vmatprep.subr.mxu0 0.0
    %3660 = vmatpush1.msra.mxu0 %v3648
    %3661 = vmatprep.subr.mxu0 0.0
    %3662 = vmatpush1.msra.mxu0 0.0
    %3663 = vmatprep.subr.mxu0 0.0
    %3664 = vmatpush1.msra.mxu0 0.0
    %3665 = vmatprep.subr.mxu0 0.0
    %3666 = vmatpush1.msra.mxu0 0.0
    %3667 = vmatprep.subr.mxu0 0.0
    %3668 = vmatpush1.msra.mxu0 0.0
    %3669 = vmatprep.subr.mxu0 0.0
    %3670 = vmatpush1.msra.mxu0 0.0
    %3671 = vmatprep.subr.mxu0 0.0
    %3672 = vmatpush1.msra.mxu0 0.0
    %3673 = vmatprep.subr.mxu0 0.0
    %3674 = vmatpush1.msra.mxu0 0.0
    %3675 = vmatprep.subr.mxu0 0.0
    %3676 = vmatpush1.msra.mxu0 0.0
    %3677 = vmatprep.subr.mxu0 0.0
    %3678 = vmatpush1.msra.mxu0 0.0
    %3679 = vmatprep.subr.mxu0 0.0
    %3680 = vmatpush1.msra.mxu0 0.0
    %3681 = vmatprep.subr.mxu0 0.0
    %3682 = vmatpush1.msra.mxu0 0.0
    %3683 = vmatprep.subr.mxu0 0.0
    %3684 = vmatpush1.msra.mxu0 0.0
    %3685 = vmatprep.subr.mxu0 0.0
    %3686 = vmatpush1.msra.mxu0 0.0
    %3687 = vmatprep.subr.mxu0 0.0
    %3688 = vmatpush1.msra.mxu0 0.0
    %3689 = vmatprep.subr.mxu0 0.0
    %3690 = vmatpush1.msra.mxu0 0.0
    %3691 = vmatprep.subr.mxu0 0.0
    %3692 = vmatpush1.msra.mxu0 0.0
    %3693 = vmatprep.subr.mxu0 0.0
    %3694 = vmatpush1.msra.mxu0 0.0
    %3695 = vmatprep.subr.mxu0 0.0
    %3696 = vmatpush1.msra.mxu0 0.0
    %3697 = vmatprep.subr.mxu0 0.0
    %3698 = vmatpush1.msra.mxu0 0.0
    %3699 = vmatprep.subr.mxu0 0.0
    %3700 = vmatpush1.msra.mxu0 0.0
    %3701 = vmatprep.subr.mxu0 0.0
    %3702 = vmatpush1.msra.mxu0 0.0
    %3703 = vmatprep.subr.mxu0 0.0
    %3704 = vmatpush1.msra.mxu0 0.0
    %3705 = vmatprep.subr.mxu0 0.0
    %3706 = vmatpush1.msra.mxu0 0.0
    %3707 = vmatprep.subr.mxu0 0.0
    %3708 = vmatpush1.msra.mxu0 0.0
    %3709 = vmatprep.subr.mxu0 0.0
    %3710 = vmatpush1.msra.mxu0 0.0
    %3711 = vmatprep.subr.mxu0 0.0
    %3712 = vmatpush1.msra.mxu0 0.0
    %3713 = vmatprep.subr.mxu0 0.0
    %3714 = vmatpush1.msra.mxu0 0.0
    %3715 = vmatprep.subr.mxu0 0.0
    %3716 = vmatpush1.msra.mxu0 0.0
    %3717 = vmatprep.subr.mxu0 0.0
    %3718 = vmatpush1.msra.mxu0 0.0
    %3719 = vmatprep.subr.mxu0 0.0
    %3720 = vmatpush1.msra.mxu0 0.0
    %3721 = vmatprep.mubr.f32.mxu0 0.0
    %3722 = vmatmul.mubr.f32.gmra.mrb[0].mxu0 %v3652
    %v3723 = vpop.f32.mrb[0].mxu0
    %v3724 = vadd.f32 0.0, %v3723
    %v3725 = vpop.f32.mrb[0].mxu0
    %3726 = vmatprep.mubr.f32.mxu0 0.0
    %3727 = vmatmul.mubr.f32.gmra.mrb[0].mxu0 %v3655
    %v3728 = vpop.f32.mrb[0].mxu0
    %v3729 = vadd.f32 0.0, %v3728
    %v3730 = vpop.f32.mrb[0].mxu0
    %3731 = vdwg.mxu0
    %3732 = vrot.lane.b32.xlu0 %v2914, 112
    %v3733 = vpop.permute.xlu0 %3732
    %3734 = vrot.lane.b32.xlu0 %v2917, 112
    %v3735 = vpop.permute.xlu0 %3734
    %3736 = vrot.lane.b32.xlu0 %v2914, 80
    %v3737 = vpop.permute.xlu0 %3736
    %3738 = vrot.lane.b32.xlu0 %v2917, 80
    %v3739 = vpop.permute.xlu0 %3738
    %v3740 = vsel %vm693, %v3733, 0
    %v3742 = vsel %vm693, %v3735, 0
    %v3744 = vsel %vm693, %v3737, 0
    %v3746 = vsel %vm693, %v3739, 0
    %3748 = vmatprep.subr.mxu0 0.0
    %3749 = vmatpush1.xpose.msra.mxu0 %v3744
    %3750 = vmatprep.subr.mxu0 0.0
    %3751 = vmatpush1.xpose.msra.mxu0 %v3746
    %3752 = vmatprep.subr.mxu0 0.0
    %3753 = vmatpush1.xpose.msra.mxu0 0.0
    %3754 = vmatprep.subr.mxu0 0.0
    %3755 = vmatpush1.xpose.msra.mxu0 0.0
    %3756 = vmatprep.subr.mxu0 0.0
    %3757 = vmatpush1.xpose.msra.mxu0 0.0
    %3758 = vmatprep.subr.mxu0 0.0
    %3759 = vmatpush1.xpose.msra.mxu0 0.0
    %3760 = vmatprep.subr.mxu0 0.0
    %3761 = vmatpush1.xpose.msra.mxu0 0.0
    %3762 = vmatprep.subr.mxu0 0.0
    %3763 = vmatpush1.xpose.msra.mxu0 0.0
    %3764 = vmatprep.subr.mxu0 0.0
    %3765 = vmatpush1.xpose.msra.mxu0 0.0
    %3766 = vmatprep.subr.mxu0 0.0
    %3767 = vmatpush1.xpose.msra.mxu0 0.0
    %3768 = vmatprep.subr.mxu0 0.0
    %3769 = vmatpush1.xpose.msra.mxu0 0.0
    %3770 = vmatprep.subr.mxu0 0.0
    %3771 = vmatpush1.xpose.msra.mxu0 0.0
    %3772 = vmatprep.subr.mxu0 0.0
    %3773 = vmatpush1.xpose.msra.mxu0 0.0
    %3774 = vmatprep.subr.mxu0 0.0
    %3775 = vmatpush1.xpose.msra.mxu0 0.0
    %3776 = vmatprep.subr.mxu0 0.0
    %3777 = vmatpush1.xpose.msra.mxu0 0.0
    %3778 = vmatprep.subr.mxu0 0.0
    %3779 = vmatpush1.xpose.msra.mxu0 0.0
    %3780 = vmatprep.subr.mxu0 0.0
    %3781 = vmatpush1.xpose.msra.mxu0 0.0
    %3782 = vmatprep.subr.mxu0 0.0
    %3783 = vmatpush1.xpose.msra.mxu0 0.0
    %3784 = vmatprep.subr.mxu0 0.0
    %3785 = vmatpush1.xpose.msra.mxu0 0.0
    %3786 = vmatprep.subr.mxu0 0.0
    %3787 = vmatpush1.xpose.msra.mxu0 0.0
    %3788 = vmatprep.subr.mxu0 0.0
    %3789 = vmatpush1.xpose.msra.mxu0 0.0
    %3790 = vmatprep.subr.mxu0 0.0
    %3791 = vmatpush1.xpose.msra.mxu0 0.0
    %3792 = vmatprep.subr.mxu0 0.0
    %3793 = vmatpush1.xpose.msra.mxu0 0.0
    %3794 = vmatprep.subr.mxu0 0.0
    %3795 = vmatpush1.xpose.msra.mxu0 0.0
    %3796 = vmatprep.subr.mxu0 0.0
    %3797 = vmatpush1.xpose.msra.mxu0 0.0
    %3798 = vmatprep.subr.mxu0 0.0
    %3799 = vmatpush1.xpose.msra.mxu0 0.0
    %3800 = vmatprep.subr.mxu0 0.0
    %3801 = vmatpush1.xpose.msra.mxu0 0.0
    %3802 = vmatprep.subr.mxu0 0.0
    %3803 = vmatpush1.xpose.msra.mxu0 0.0
    %3804 = vmatprep.subr.mxu0 0.0
    %3805 = vmatpush1.xpose.msra.mxu0 0.0
    %3806 = vmatprep.subr.mxu0 0.0
    %3807 = vmatpush1.xpose.msra.mxu0 0.0
    %3808 = vmatprep.subr.mxu0 0.0
    %3809 = vmatpush1.xpose.msra.mxu0 0.0
    %3810 = vmatprep.subr.mxu0 0.0
    %3811 = vmatpush1.xpose.msra.mxu0 0.0
    %3812 = vmatprep.mubr.f32.mxu0 0.0
    %3813 = vmatmul.mubr.f32.gmra.mrb[0].mxu0 %v3740
    %v3814 = vpop.f32.mrb[0].mxu0
    %v3815 = vadd.f32 0.0, %v3814
    %v3816 = vpop.f32.mrb[0].mxu0
    %3817 = vmatprep.mubr.f32.mxu0 0.0
    %3818 = vmatmul.mubr.f32.gmra.mrb[0].mxu0 %v3742
    %v3819 = vpop.f32.mrb[0].mxu0
    %v3820 = vadd.f32 0.0, %v3819
    %v3821 = vpop.f32.mrb[0].mxu0
    %3822 = vdwg.mxu0
    %3823 = vrot.lane.b32.xlu0 %v2922, 112
    %v3824 = vpop.permute.xlu0 %3823
    %3825 = vrot.lane.b32.xlu0 %v2925, 112
    %v3826 = vpop.permute.xlu0 %3825
    %3827 = vrot.lane.b32.xlu0 %v2922, 80
    %v3828 = vpop.permute.xlu0 %3827
    %3829 = vrot.lane.b32.xlu0 %v2925, 80
    %v3830 = vpop.permute.xlu0 %3829
    %v3831 = vsel %vm693, %v3824, 0
    %v3833 = vsel %vm693, %v3826, 0
    %v3835 = vsel %vm693, %v3828, 0
    %v3837 = vsel %vm693, %v3830, 0
    %3839 = vmatprep.subr.mxu0 0.0
    %3840 = vmatpush1.xpose.msra.mxu0 %v3835
    %3841 = vmatprep.subr.mxu0 0.0
    %3842 = vmatpush1.xpose.msra.mxu0 %v3837
    %3843 = vmatprep.subr.mxu0 0.0
    %3844 = vmatpush1.xpose.msra.mxu0 0.0
    %3845 = vmatprep.subr.mxu0 0.0
    %3846 = vmatpush1.xpose.msra.mxu0 0.0
    %3847 = vmatprep.subr.mxu0 0.0
    %3848 = vmatpush1.xpose.msra.mxu0 0.0
    %3849 = vmatprep.subr.mxu0 0.0
    %3850 = vmatpush1.xpose.msra.mxu0 0.0
    %3851 = vmatprep.subr.mxu0 0.0
    %3852 = vmatpush1.xpose.msra.mxu0 0.0
    %3853 = vmatprep.subr.mxu0 0.0
    %3854 = vmatpush1.xpose.msra.mxu0 0.0
    %3855 = vmatprep.subr.mxu0 0.0
    %3856 = vmatpush1.xpose.msra.mxu0 0.0
    %3857 = vmatprep.subr.mxu0 0.0
    %3858 = vmatpush1.xpose.msra.mxu0 0.0
    %3859 = vmatprep.subr.mxu0 0.0
    %3860 = vmatpush1.xpose.msra.mxu0 0.0
    %3861 = vmatprep.subr.mxu0 0.0
    %3862 = vmatpush1.xpose.msra.mxu0 0.0
    %3863 = vmatprep.subr.mxu0 0.0
    %3864 = vmatpush1.xpose.msra.mxu0 0.0
    %3865 = vmatprep.subr.mxu0 0.0
    %3866 = vmatpush1.xpose.msra.mxu0 0.0
    %3867 = vmatprep.subr.mxu0 0.0
    %3868 = vmatpush1.xpose.msra.mxu0 0.0
    %3869 = vmatprep.subr.mxu0 0.0
    %3870 = vmatpush1.xpose.msra.mxu0 0.0
    %3871 = vmatprep.subr.mxu0 0.0
    %3872 = vmatpush1.xpose.msra.mxu0 0.0
    %3873 = vmatprep.subr.mxu0 0.0
    %3874 = vmatpush1.xpose.msra.mxu0 0.0
    %3875 = vmatprep.subr.mxu0 0.0
    %3876 = vmatpush1.xpose.msra.mxu0 0.0
    %3877 = vmatprep.subr.mxu0 0.0
    %3878 = vmatpush1.xpose.msra.mxu0 0.0
    %3879 = vmatprep.subr.mxu0 0.0
    %3880 = vmatpush1.xpose.msra.mxu0 0.0
    %3881 = vmatprep.subr.mxu0 0.0
    %3882 = vmatpush1.xpose.msra.mxu0 0.0
    %3883 = vmatprep.subr.mxu0 0.0
    %3884 = vmatpush1.xpose.msra.mxu0 0.0
    %3885 = vmatprep.subr.mxu0 0.0
    %3886 = vmatpush1.xpose.msra.mxu0 0.0
    %3887 = vmatprep.subr.mxu0 0.0
    %3888 = vmatpush1.xpose.msra.mxu0 0.0
    %3889 = vmatprep.subr.mxu0 0.0
    %3890 = vmatpush1.xpose.msra.mxu0 0.0
    %3891 = vmatprep.subr.mxu0 0.0
    %3892 = vmatpush1.xpose.msra.mxu0 0.0
    %3893 = vmatprep.subr.mxu0 0.0
    %3894 = vmatpush1.xpose.msra.mxu0 0.0
    %3895 = vmatprep.subr.mxu0 0.0
    %3896 = vmatpush1.xpose.msra.mxu0 0.0
    %3897 = vmatprep.subr.mxu0 0.0
    %3898 = vmatpush1.xpose.msra.mxu0 0.0
    %3899 = vmatprep.subr.mxu0 0.0
    %3900 = vmatpush1.xpose.msra.mxu0 0.0
    %3901 = vmatprep.subr.mxu0 0.0
    %3902 = vmatpush1.xpose.msra.mxu0 0.0
    %3903 = vmatprep.mubr.f32.mxu0 0.0
    %3904 = vmatmul.mubr.f32.gmra.mrb[0].mxu0 %v3831
    %v3905 = vpop.f32.mrb[0].mxu0
    %v3906 = vadd.f32 0.0, %v3905
    %v3907 = vpop.f32.mrb[0].mxu0
    %3908 = vmatprep.mubr.f32.mxu0 0.0
    %3909 = vmatmul.mubr.f32.gmra.mrb[0].mxu0 %v3833
    %v3910 = vpop.f32.mrb[0].mxu0
    %v3911 = vadd.f32 0.0, %v3910
    %v3912 = vpop.f32.mrb[0].mxu0
    %3913 = vdwg.mxu0
    %v3914 = vmul.f32 %v3815, 0.35355338
    %v3915 = vmul.f32 %v3820, 0.35355338
    %v3916 = vmul.f32 %v3906, 0.35355338
    %v3917 = vmul.f32 %v3911, 0.35355338
    %v3918 = vsel %vm870, %v3914, -inf
    %3919 = vmax.xlane.f32.xlu0 %v3918
    %v3920 = vpop.xlane.xlu0 %3919
    %v3921 = vsel %vm870, %v3915, -inf
    %3922 = vmax.xlane.f32.xlu0 %v3921
    %v3923 = vpop.xlane.xlu0 %3922
    %v3924 = vsel %vm870, %v3916, -inf
    %3925 = vmax.xlane.f32.xlu0 %v3924
    %v3926 = vpop.xlane.xlu0 %3925
    %v3927 = vsel %vm870, %v3917, -inf
    %3928 = vmax.xlane.f32.xlu0 %v3927
    %v3929 = vpop.xlane.xlu0 %3928
    %v3930 = vsub.f32 %v3914, %v3920
    %v3931 = vsub.f32 %v3915, %v3923
    %v3932 = vsub.f32 %v3916, %v3926
    %v3933 = vsub.f32 %v3917, %v3929
    %v3934 = vmul.f32 %v3930, 1.442695
    %v3935 = vpow.pop %v3934
    %v3936 = vmul.f32 %v3931, 1.442695
    %v3937 = vpow.pop %v3936
    %v3938 = vmul.f32 %v3932, 1.442695
    %v3939 = vpow.pop %v3938
    %v3940 = vmul.f32 %v3933, 1.442695
    %v3941 = vpow.pop %v3940
    %v3942 = vsel %vm870, %v3935, 0.0
    %3943 = vadd.xlane.f32.xlu0 %v3942
    %v3944 = vpop.xlane.xlu0 %3943
    %v3945 = vsel %vm870, %v3937, 0.0
    %3946 = vadd.xlane.f32.xlu0 %v3945
    %v3947 = vpop.xlane.xlu0 %3946
    %v3948 = vsel %vm870, %v3939, 0.0
    %3949 = vadd.xlane.f32.xlu0 %v3948
    %v3950 = vpop.xlane.xlu0 %3949
    %v3951 = vsel %vm870, %v3941, 0.0
    %3952 = vadd.xlane.f32.xlu0 %v3951
    %v3953 = vpop.xlane.xlu0 %3952
    %v3954 = vrcp.pop %v3944
    %v3955 = vrcp.pop %v3947
    %v3956 = vrcp.pop %v3950
    %v3957 = vrcp.pop %v3953
    %v3958 = vmul.f32 %v3935, %v3954
    %v3959 = vmul.f32 %v3937, %v3955
    %v3960 = vmul.f32 %v3939, %v3956
    %v3961 = vmul.f32 %v3941, %v3957
    %3962 = vrot.lane.b32.xlu0 %v2914, 48
    %v3963 = vpop.permute.xlu0 %3962
    %3964 = vrot.lane.b32.xlu0 %v2917, 48
    %v3965 = vpop.permute.xlu0 %3964
    %v3969 = vsel %vm870, %v3958, 0
    %v3972 = vsel %vm870, %v3959, 0
    %3974 = vmatprep.subr.mxu0 0.0
    %3975 = vmatpush1.msra.mxu0 %v3963
    %3976 = vmatprep.subr.mxu0 0.0
    %3977 = vmatpush1.msra.mxu0 %v3965
    %3978 = vmatprep.subr.mxu0 0.0
    %3979 = vmatpush1.msra.mxu0 0.0
    %3980 = vmatprep.subr.mxu0 0.0
    %3981 = vmatpush1.msra.mxu0 0.0
    %3982 = vmatprep.subr.mxu0 0.0
    %3983 = vmatpush1.msra.mxu0 0.0
    %3984 = vmatprep.subr.mxu0 0.0
    %3985 = vmatpush1.msra.mxu0 0.0
    %3986 = vmatprep.subr.mxu0 0.0
    %3987 = vmatpush1.msra.mxu0 0.0
    %3988 = vmatprep.subr.mxu0 0.0
    %3989 = vmatpush1.msra.mxu0 0.0
    %3990 = vmatprep.subr.mxu0 0.0
    %3991 = vmatpush1.msra.mxu0 0.0
    %3992 = vmatprep.subr.mxu0 0.0
    %3993 = vmatpush1.msra.mxu0 0.0
    %3994 = vmatprep.subr.mxu0 0.0
    %3995 = vmatpush1.msra.mxu0 0.0
    %3996 = vmatprep.subr.mxu0 0.0
    %3997 = vmatpush1.msra.mxu0 0.0
    %3998 = vmatprep.subr.mxu0 0.0
    %3999 = vmatpush1.msra.mxu0 0.0
    %4000 = vmatprep.subr.mxu0 0.0
    %4001 = vmatpush1.msra.mxu0 0.0
    %4002 = vmatprep.subr.mxu0 0.0
    %4003 = vmatpush1.msra.mxu0 0.0
    %4004 = vmatprep.subr.mxu0 0.0
    %4005 = vmatpush1.msra.mxu0 0.0
    %4006 = vmatprep.subr.mxu0 0.0
    %4007 = vmatpush1.msra.mxu0 0.0
    %4008 = vmatprep.subr.mxu0 0.0
    %4009 = vmatpush1.msra.mxu0 0.0
    %4010 = vmatprep.subr.mxu0 0.0
    %4011 = vmatpush1.msra.mxu0 0.0
    %4012 = vmatprep.subr.mxu0 0.0
    %4013 = vmatpush1.msra.mxu0 0.0
    %4014 = vmatprep.subr.mxu0 0.0
    %4015 = vmatpush1.msra.mxu0 0.0
    %4016 = vmatprep.subr.mxu0 0.0
    %4017 = vmatpush1.msra.mxu0 0.0
    %4018 = vmatprep.subr.mxu0 0.0
    %4019 = vmatpush1.msra.mxu0 0.0
    %4020 = vmatprep.subr.mxu0 0.0
    %4021 = vmatpush1.msra.mxu0 0.0
    %4022 = vmatprep.subr.mxu0 0.0
    %4023 = vmatpush1.msra.mxu0 0.0
    %4024 = vmatprep.subr.mxu0 0.0
    %4025 = vmatpush1.msra.mxu0 0.0
    %4026 = vmatprep.subr.mxu0 0.0
    %4027 = vmatpush1.msra.mxu0 0.0
    %4028 = vmatprep.subr.mxu0 0.0
    %4029 = vmatpush1.msra.mxu0 0.0
    %4030 = vmatprep.subr.mxu0 0.0
    %4031 = vmatpush1.msra.mxu0 0.0
    %4032 = vmatprep.subr.mxu0 0.0
    %4033 = vmatpush1.msra.mxu0 0.0
    %4034 = vmatprep.subr.mxu0 0.0
    %4035 = vmatpush1.msra.mxu0 0.0
    %4036 = vmatprep.subr.mxu0 0.0
    %4037 = vmatpush1.msra.mxu0 0.0
    %4038 = vmatprep.mubr.f32.mxu0 0.0
    %4039 = vmatmul.mubr.f32.gmra.mrb[0].mxu0 %v3969
    %v4040 = vpop.f32.mrb[0].mxu0
    %v4041 = vadd.f32 0.0, %v4040
    %v4042 = vpop.f32.mrb[0].mxu0
    %4043 = vmatprep.mubr.f32.mxu0 0.0
    %4044 = vmatmul.mubr.f32.gmra.mrb[0].mxu0 %v3972
    %v4045 = vpop.f32.mrb[0].mxu0
    %v4046 = vadd.f32 0.0, %v4045
    %v4047 = vpop.f32.mrb[0].mxu0
    %4048 = vdwg.mxu0
    %4049 = vrot.lane.b32.xlu0 %v2922, 48
    %v4050 = vpop.permute.xlu0 %4049
    %4051 = vrot.lane.b32.xlu0 %v2925, 48
    %v4052 = vpop.permute.xlu0 %4051
    %v4056 = vsel %vm870, %v3960, 0
    %v4059 = vsel %vm870, %v3961, 0
    %4061 = vmatprep.subr.mxu0 0.0
    %4062 = vmatpush1.msra.mxu0 %v4050
    %4063 = vmatprep.subr.mxu0 0.0
    %4064 = vmatpush1.msra.mxu0 %v4052
    %4065 = vmatprep.subr.mxu0 0.0
    %4066 = vmatpush1.msra.mxu0 0.0
    %4067 = vmatprep.subr.mxu0 0.0
    %4068 = vmatpush1.msra.mxu0 0.0
    %4069 = vmatprep.subr.mxu0 0.0
    %4070 = vmatpush1.msra.mxu0 0.0
    %4071 = vmatprep.subr.mxu0 0.0
    %4072 = vmatpush1.msra.mxu0 0.0
    %4073 = vmatprep.subr.mxu0 0.0
    %4074 = vmatpush1.msra.mxu0 0.0
    %4075 = vmatprep.subr.mxu0 0.0
    %4076 = vmatpush1.msra.mxu0 0.0
    %4077 = vmatprep.subr.mxu0 0.0
    %4078 = vmatpush1.msra.mxu0 0.0
    %4079 = vmatprep.subr.mxu0 0.0
    %4080 = vmatpush1.msra.mxu0 0.0
    %4081 = vmatprep.subr.mxu0 0.0
    %4082 = vmatpush1.msra.mxu0 0.0
    %4083 = vmatprep.subr.mxu0 0.0
    %4084 = vmatpush1.msra.mxu0 0.0
    %4085 = vmatprep.subr.mxu0 0.0
    %4086 = vmatpush1.msra.mxu0 0.0
    %4087 = vmatprep.subr.mxu0 0.0
    %4088 = vmatpush1.msra.mxu0 0.0
    %4089 = vmatprep.subr.mxu0 0.0
    %4090 = vmatpush1.msra.mxu0 0.0
    %4091 = vmatprep.subr.mxu0 0.0
    %4092 = vmatpush1.msra.mxu0 0.0
    %4093 = vmatprep.subr.mxu0 0.0
    %4094 = vmatpush1.msra.mxu0 0.0
    %4095 = vmatprep.subr.mxu0 0.0
    %4096 = vmatpush1.msra.mxu0 0.0
    %4097 = vmatprep.subr.mxu0 0.0
    %4098 = vmatpush1.msra.mxu0 0.0
    %4099 = vmatprep.subr.mxu0 0.0
    %4100 = vmatpush1.msra.mxu0 0.0
    %4101 = vmatprep.subr.mxu0 0.0
    %4102 = vmatpush1.msra.mxu0 0.0
    %4103 = vmatprep.subr.mxu0 0.0
    %4104 = vmatpush1.msra.mxu0 0.0
    %4105 = vmatprep.subr.mxu0 0.0
    %4106 = vmatpush1.msra.mxu0 0.0
    %4107 = vmatprep.subr.mxu0 0.0
    %4108 = vmatpush1.msra.mxu0 0.0
    %4109 = vmatprep.subr.mxu0 0.0
    %4110 = vmatpush1.msra.mxu0 0.0
    %4111 = vmatprep.subr.mxu0 0.0
    %4112 = vmatpush1.msra.mxu0 0.0
    %4113 = vmatprep.subr.mxu0 0.0
    %4114 = vmatpush1.msra.mxu0 0.0
    %4115 = vmatprep.subr.mxu0 0.0
    %4116 = vmatpush1.msra.mxu0 0.0
    %4117 = vmatprep.subr.mxu0 0.0
    %4118 = vmatpush1.msra.mxu0 0.0
    %4119 = vmatprep.subr.mxu0 0.0
    %4120 = vmatpush1.msra.mxu0 0.0
    %4121 = vmatprep.subr.mxu0 0.0
    %4122 = vmatpush1.msra.mxu0 0.0
    %4123 = vmatprep.subr.mxu0 0.0
    %4124 = vmatpush1.msra.mxu0 0.0
    %4125 = vmatprep.mubr.f32.mxu0 0.0
    %4126 = vmatmul.mubr.f32.gmra.mrb[0].mxu0 %v4056
    %v4127 = vpop.f32.mrb[0].mxu0
    %v4128 = vadd.f32 0.0, %v4127
    %v4129 = vpop.f32.mrb[0].mxu0
    %4130 = vmatprep.mubr.f32.mxu0 0.0
    %4131 = vmatmul.mubr.f32.gmra.mrb[0].mxu0 %v4059
    %v4132 = vpop.f32.mrb[0].mxu0
    %v4133 = vadd.f32 0.0, %v4132
    %v4134 = vpop.f32.mrb[0].mxu0
    %4135 = vdwg.mxu0
    %4136 = vrot.lane.b32.xlu0 %v2914, 104
    %v4137 = vpop.permute.xlu0 %4136
    %4138 = vrot.lane.b32.xlu0 %v2917, 104
    %v4139 = vpop.permute.xlu0 %4138
    %4140 = vrot.lane.b32.xlu0 %v2914, 72
    %v4141 = vpop.permute.xlu0 %4140
    %4142 = vrot.lane.b32.xlu0 %v2917, 72
    %v4143 = vpop.permute.xlu0 %4142
    %v4144 = vsel %vm693, %v4137, 0
    %v4146 = vsel %vm693, %v4139, 0
    %v4148 = vsel %vm693, %v4141, 0
    %v4150 = vsel %vm693, %v4143, 0
    %4152 = vmatprep.subr.mxu0 0.0
    %4153 = vmatpush1.xpose.msra.mxu0 %v4148
    %4154 = vmatprep.subr.mxu0 0.0
    %4155 = vmatpush1.xpose.msra.mxu0 %v4150
    %4156 = vmatprep.subr.mxu0 0.0
    %4157 = vmatpush1.xpose.msra.mxu0 0.0
    %4158 = vmatprep.subr.mxu0 0.0
    %4159 = vmatpush1.xpose.msra.mxu0 0.0
    %4160 = vmatprep.subr.mxu0 0.0
    %4161 = vmatpush1.xpose.msra.mxu0 0.0
    %4162 = vmatprep.subr.mxu0 0.0
    %4163 = vmatpush1.xpose.msra.mxu0 0.0
    %4164 = vmatprep.subr.mxu0 0.0
    %4165 = vmatpush1.xpose.msra.mxu0 0.0
    %4166 = vmatprep.subr.mxu0 0.0
    %4167 = vmatpush1.xpose.msra.mxu0 0.0
    %4168 = vmatprep.subr.mxu0 0.0
    %4169 = vmatpush1.xpose.msra.mxu0 0.0
    %4170 = vmatprep.subr.mxu0 0.0
    %4171 = vmatpush1.xpose.msra.mxu0 0.0
    %4172 = vmatprep.subr.mxu0 0.0
    %4173 = vmatpush1.xpose.msra.mxu0 0.0
    %4174 = vmatprep.subr.mxu0 0.0
    %4175 = vmatpush1.xpose.msra.mxu0 0.0
    %4176 = vmatprep.subr.mxu0 0.0
    %4177 = vmatpush1.xpose.msra.mxu0 0.0
    %4178 = vmatprep.subr.mxu0 0.0
    %4179 = vmatpush1.xpose.msra.mxu0 0.0
    %4180 = vmatprep.subr.mxu0 0.0
    %4181 = vmatpush1.xpose.msra.mxu0 0.0
    %4182 = vmatprep.subr.mxu0 0.0
    %4183 = vmatpush1.xpose.msra.mxu0 0.0
    %4184 = vmatprep.subr.mxu0 0.0
    %4185 = vmatpush1.xpose.msra.mxu0 0.0
    %4186 = vmatprep.subr.mxu0 0.0
    %4187 = vmatpush1.xpose.msra.mxu0 0.0
    %4188 = vmatprep.subr.mxu0 0.0
    %4189 = vmatpush1.xpose.msra.mxu0 0.0
    %4190 = vmatprep.subr.mxu0 0.0
    %4191 = vmatpush1.xpose.msra.mxu0 0.0
    %4192 = vmatprep.subr.mxu0 0.0
    %4193 = vmatpush1.xpose.msra.mxu0 0.0
    %4194 = vmatprep.subr.mxu0 0.0
    %4195 = vmatpush1.xpose.msra.mxu0 0.0
    %4196 = vmatprep.subr.mxu0 0.0
    %4197 = vmatpush1.xpose.msra.mxu0 0.0
    %4198 = vmatprep.subr.mxu0 0.0
    %4199 = vmatpush1.xpose.msra.mxu0 0.0
    %4200 = vmatprep.subr.mxu0 0.0
    %4201 = vmatpush1.xpose.msra.mxu0 0.0
    %4202 = vmatprep.subr.mxu0 0.0
    %4203 = vmatpush1.xpose.msra.mxu0 0.0
    %4204 = vmatprep.subr.mxu0 0.0
    %4205 = vmatpush1.xpose.msra.mxu0 0.0
    %4206 = vmatprep.subr.mxu0 0.0
    %4207 = vmatpush1.xpose.msra.mxu0 0.0
    %4208 = vmatprep.subr.mxu0 0.0
    %4209 = vmatpush1.xpose.msra.mxu0 0.0
    %4210 = vmatprep.subr.mxu0 0.0
    %4211 = vmatpush1.xpose.msra.mxu0 0.0
    %4212 = vmatprep.subr.mxu0 0.0
    %4213 = vmatpush1.xpose.msra.mxu0 0.0
    %4214 = vmatprep.subr.mxu0 0.0
    %4215 = vmatpush1.xpose.msra.mxu0 0.0
    %4216 = vmatprep.mubr.f32.mxu0 0.0
    %4217 = vmatmul.mubr.f32.gmra.mrb[0].mxu0 %v4144
    %v4218 = vpop.f32.mrb[0].mxu0
    %v4219 = vadd.f32 0.0, %v4218
    %v4220 = vpop.f32.mrb[0].mxu0
    %4221 = vmatprep.mubr.f32.mxu0 0.0
    %4222 = vmatmul.mubr.f32.gmra.mrb[0].mxu0 %v4146
    %v4223 = vpop.f32.mrb[0].mxu0
    %v4224 = vadd.f32 0.0, %v4223
    %v4225 = vpop.f32.mrb[0].mxu0
    %4226 = vdwg.mxu0
    %4227 = vrot.lane.b32.xlu0 %v2922, 104
    %v4228 = vpop.permute.xlu0 %4227
    %4229 = vrot.lane.b32.xlu0 %v2925, 104
    %v4230 = vpop.permute.xlu0 %4229
    %4231 = vrot.lane.b32.xlu0 %v2922, 72
    %v4232 = vpop.permute.xlu0 %4231
    %4233 = vrot.lane.b32.xlu0 %v2925, 72
    %v4234 = vpop.permute.xlu0 %4233
    %v4235 = vsel %vm693, %v4228, 0
    %v4237 = vsel %vm693, %v4230, 0
    %v4239 = vsel %vm693, %v4232, 0
    %v4241 = vsel %vm693, %v4234, 0
    %4243 = vmatprep.subr.mxu0 0.0
    %4244 = vmatpush1.xpose.msra.mxu0 %v4239
    %4245 = vmatprep.subr.mxu0 0.0
    %4246 = vmatpush1.xpose.msra.mxu0 %v4241
    %4247 = vmatprep.subr.mxu0 0.0
    %4248 = vmatpush1.xpose.msra.mxu0 0.0
    %4249 = vmatprep.subr.mxu0 0.0
    %4250 = vmatpush1.xpose.msra.mxu0 0.0
    %4251 = vmatprep.subr.mxu0 0.0
    %4252 = vmatpush1.xpose.msra.mxu0 0.0
    %4253 = vmatprep.subr.mxu0 0.0
    %4254 = vmatpush1.xpose.msra.mxu0 0.0
    %4255 = vmatprep.subr.mxu0 0.0
    %4256 = vmatpush1.xpose.msra.mxu0 0.0
    %4257 = vmatprep.subr.mxu0 0.0
    %4258 = vmatpush1.xpose.msra.mxu0 0.0
    %4259 = vmatprep.subr.mxu0 0.0
    %4260 = vmatpush1.xpose.msra.mxu0 0.0
    %4261 = vmatprep.subr.mxu0 0.0
    %4262 = vmatpush1.xpose.msra.mxu0 0.0
    %4263 = vmatprep.subr.mxu0 0.0
    %4264 = vmatpush1.xpose.msra.mxu0 0.0
    %4265 = vmatprep.subr.mxu0 0.0
    %4266 = vmatpush1.xpose.msra.mxu0 0.0
    %4267 = vmatprep.subr.mxu0 0.0
    %4268 = vmatpush1.xpose.msra.mxu0 0.0
    %4269 = vmatprep.subr.mxu0 0.0
    %4270 = vmatpush1.xpose.msra.mxu0 0.0
    %4271 = vmatprep.subr.mxu0 0.0
    %4272 = vmatpush1.xpose.msra.mxu0 0.0
    %4273 = vmatprep.subr.mxu0 0.0
    %4274 = vmatpush1.xpose.msra.mxu0 0.0
    %4275 = vmatprep.subr.mxu0 0.0
    %4276 = vmatpush1.xpose.msra.mxu0 0.0
    %4277 = vmatprep.subr.mxu0 0.0
    %4278 = vmatpush1.xpose.msra.mxu0 0.0
    %4279 = vmatprep.subr.mxu0 0.0
    %4280 = vmatpush1.xpose.msra.mxu0 0.0
    %4281 = vmatprep.subr.mxu0 0.0
    %4282 = vmatpush1.xpose.msra.mxu0 0.0
    %4283 = vmatprep.subr.mxu0 0.0
    %4284 = vmatpush1.xpose.msra.mxu0 0.0
    %4285 = vmatprep.subr.mxu0 0.0
    %4286 = vmatpush1.xpose.msra.mxu0 0.0
    %4287 = vmatprep.subr.mxu0 0.0
    %4288 = vmatpush1.xpose.msra.mxu0 0.0
    %4289 = vmatprep.subr.mxu0 0.0
    %4290 = vmatpush1.xpose.msra.mxu0 0.0
    %4291 = vmatprep.subr.mxu0 0.0
    %4292 = vmatpush1.xpose.msra.mxu0 0.0
    %4293 = vmatprep.subr.mxu0 0.0
    %4294 = vmatpush1.xpose.msra.mxu0 0.0
    %4295 = vmatprep.subr.mxu0 0.0
    %4296 = vmatpush1.xpose.msra.mxu0 0.0
    %4297 = vmatprep.subr.mxu0 0.0
    %4298 = vmatpush1.xpose.msra.mxu0 0.0
    %4299 = vmatprep.subr.mxu0 0.0
    %4300 = vmatpush1.xpose.msra.mxu0 0.0
    %4301 = vmatprep.subr.mxu0 0.0
    %4302 = vmatpush1.xpose.msra.mxu0 0.0
    %4303 = vmatprep.subr.mxu0 0.0
    %4304 = vmatpush1.xpose.msra.mxu0 0.0
    %4305 = vmatprep.subr.mxu0 0.0
    %4306 = vmatpush1.xpose.msra.mxu0 0.0
    %4307 = vmatprep.mubr.f32.mxu0 0.0
    %4308 = vmatmul.mubr.f32.gmra.mrb[0].mxu0 %v4235
    %v4309 = vpop.f32.mrb[0].mxu0
    %v4310 = vadd.f32 0.0, %v4309
    %v4311 = vpop.f32.mrb[0].mxu0
    %4312 = vmatprep.mubr.f32.mxu0 0.0
    %4313 = vmatmul.mubr.f32.gmra.mrb[0].mxu0 %v4237
    %v4314 = vpop.f32.mrb[0].mxu0
    %v4315 = vadd.f32 0.0, %v4314
    %v4316 = vpop.f32.mrb[0].mxu0
    %4317 = vdwg.mxu0
    %v4318 = vmul.f32 %v4219, 0.35355338
    %v4319 = vmul.f32 %v4224, 0.35355338
    %v4320 = vmul.f32 %v4310, 0.35355338
    %v4321 = vmul.f32 %v4315, 0.35355338
    %v4322 = vsel %vm870, %v4318, -inf
    %4323 = vmax.xlane.f32.xlu0 %v4322
    %v4324 = vpop.xlane.xlu0 %4323
    %v4325 = vsel %vm870, %v4319, -inf
    %4326 = vmax.xlane.f32.xlu0 %v4325
    %v4327 = vpop.xlane.xlu0 %4326
    %v4328 = vsel %vm870, %v4320, -inf
    %4329 = vmax.xlane.f32.xlu0 %v4328
    %v4330 = vpop.xlane.xlu0 %4329
    %v4331 = vsel %vm870, %v4321, -inf
    %4332 = vmax.xlane.f32.xlu0 %v4331
    %v4333 = vpop.xlane.xlu0 %4332
    %v4334 = vsub.f32 %v4318, %v4324
    %v4335 = vsub.f32 %v4319, %v4327
    %v4336 = vsub.f32 %v4320, %v4330
    %v4337 = vsub.f32 %v4321, %v4333
    %v4338 = vmul.f32 %v4334, 1.442695
    %v4339 = vpow.pop %v4338
    %v4340 = vmul.f32 %v4335, 1.442695
    %v4341 = vpow.pop %v4340
    %v4342 = vmul.f32 %v4336, 1.442695
    %v4343 = vpow.pop %v4342
    %v4344 = vmul.f32 %v4337, 1.442695
    %v4345 = vpow.pop %v4344
    %v4346 = vsel %vm870, %v4339, 0.0
    %4347 = vadd.xlane.f32.xlu0 %v4346
    %v4348 = vpop.xlane.xlu0 %4347
    %v4349 = vsel %vm870, %v4341, 0.0
    %4350 = vadd.xlane.f32.xlu0 %v4349
    %v4351 = vpop.xlane.xlu0 %4350
    %v4352 = vsel %vm870, %v4343, 0.0
    %4353 = vadd.xlane.f32.xlu0 %v4352
    %v4354 = vpop.xlane.xlu0 %4353
    %v4355 = vsel %vm870, %v4345, 0.0
    %4356 = vadd.xlane.f32.xlu0 %v4355
    %v4357 = vpop.xlane.xlu0 %4356
    %v4358 = vrcp.pop %v4348
    %v4359 = vrcp.pop %v4351
    %v4360 = vrcp.pop %v4354
    %v4361 = vrcp.pop %v4357
    %v4362 = vmul.f32 %v4339, %v4358
    %v4363 = vmul.f32 %v4341, %v4359
    %v4364 = vmul.f32 %v4343, %v4360
    %v4365 = vmul.f32 %v4345, %v4361
    %4366 = vrot.lane.b32.xlu0 %v2914, 40
    %v4367 = vpop.permute.xlu0 %4366
    %4368 = vrot.lane.b32.xlu0 %v2917, 40
    %v4369 = vpop.permute.xlu0 %4368
    %v4373 = vsel %vm870, %v4362, 0
    %v4376 = vsel %vm870, %v4363, 0
    %4378 = vmatprep.subr.mxu0 0.0
    %4379 = vmatpush1.msra.mxu0 %v4367
    %4380 = vmatprep.subr.mxu0 0.0
    %4381 = vmatpush1.msra.mxu0 %v4369
    %4382 = vmatprep.subr.mxu0 0.0
    %4383 = vmatpush1.msra.mxu0 0.0
    %4384 = vmatprep.subr.mxu0 0.0
    %4385 = vmatpush1.msra.mxu0 0.0
    %4386 = vmatprep.subr.mxu0 0.0
    %4387 = vmatpush1.msra.mxu0 0.0
    %4388 = vmatprep.subr.mxu0 0.0
    %4389 = vmatpush1.msra.mxu0 0.0
    %4390 = vmatprep.subr.mxu0 0.0
    %4391 = vmatpush1.msra.mxu0 0.0
    %4392 = vmatprep.subr.mxu0 0.0
    %4393 = vmatpush1.msra.mxu0 0.0
    %4394 = vmatprep.subr.mxu0 0.0
    %4395 = vmatpush1.msra.mxu0 0.0
    %4396 = vmatprep.subr.mxu0 0.0
    %4397 = vmatpush1.msra.mxu0 0.0
    %4398 = vmatprep.subr.mxu0 0.0
    %4399 = vmatpush1.msra.mxu0 0.0
    %4400 = vmatprep.subr.mxu0 0.0
    %4401 = vmatpush1.msra.mxu0 0.0
    %4402 = vmatprep.subr.mxu0 0.0
    %4403 = vmatpush1.msra.mxu0 0.0
    %4404 = vmatprep.subr.mxu0 0.0
    %4405 = vmatpush1.msra.mxu0 0.0
    %4406 = vmatprep.subr.mxu0 0.0
    %4407 = vmatpush1.msra.mxu0 0.0
    %4408 = vmatprep.subr.mxu0 0.0
    %4409 = vmatpush1.msra.mxu0 0.0
    %4410 = vmatprep.subr.mxu0 0.0
    %4411 = vmatpush1.msra.mxu0 0.0
    %4412 = vmatprep.subr.mxu0 0.0
    %4413 = vmatpush1.msra.mxu0 0.0
    %4414 = vmatprep.subr.mxu0 0.0
    %4415 = vmatpush1.msra.mxu0 0.0
    %4416 = vmatprep.subr.mxu0 0.0
    %4417 = vmatpush1.msra.mxu0 0.0
    %4418 = vmatprep.subr.mxu0 0.0
    %4419 = vmatpush1.msra.mxu0 0.0
    %4420 = vmatprep.subr.mxu0 0.0
    %4421 = vmatpush1.msra.mxu0 0.0
    %4422 = vmatprep.subr.mxu0 0.0
    %4423 = vmatpush1.msra.mxu0 0.0
    %4424 = vmatprep.subr.mxu0 0.0
    %4425 = vmatpush1.msra.mxu0 0.0
    %4426 = vmatprep.subr.mxu0 0.0
    %4427 = vmatpush1.msra.mxu0 0.0
    %4428 = vmatprep.subr.mxu0 0.0
    %4429 = vmatpush1.msra.mxu0 0.0
    %4430 = vmatprep.subr.mxu0 0.0
    %4431 = vmatpush1.msra.mxu0 0.0
    %4432 = vmatprep.subr.mxu0 0.0
    %4433 = vmatpush1.msra.mxu0 0.0
    %4434 = vmatprep.subr.mxu0 0.0
    %4435 = vmatpush1.msra.mxu0 0.0
    %4436 = vmatprep.subr.mxu0 0.0
    %4437 = vmatpush1.msra.mxu0 0.0
    %4438 = vmatprep.subr.mxu0 0.0
    %4439 = vmatpush1.msra.mxu0 0.0
    %4440 = vmatprep.subr.mxu0 0.0
    %4441 = vmatpush1.msra.mxu0 0.0
    %4442 = vmatprep.mubr.f32.mxu0 0.0
    %4443 = vmatmul.mubr.f32.gmra.mrb[0].mxu0 %v4373
    %v4444 = vpop.f32.mrb[0].mxu0
    %v4445 = vadd.f32 0.0, %v4444
    %v4446 = vpop.f32.mrb[0].mxu0
    %4447 = vmatprep.mubr.f32.mxu0 0.0
    %4448 = vmatmul.mubr.f32.gmra.mrb[0].mxu0 %v4376
    %v4449 = vpop.f32.mrb[0].mxu0
    %v4450 = vadd.f32 0.0, %v4449
    %v4451 = vpop.f32.mrb[0].mxu0
    %4452 = vdwg.mxu0
    %4453 = vrot.lane.b32.xlu0 %v2922, 40
    %v4454 = vpop.permute.xlu0 %4453
    %4455 = vrot.lane.b32.xlu0 %v2925, 40
    %v4456 = vpop.permute.xlu0 %4455
    %v4460 = vsel %vm870, %v4364, 0
    %v4463 = vsel %vm870, %v4365, 0
    %4465 = vmatprep.subr.mxu0 0.0
    %4466 = vmatpush1.msra.mxu0 %v4454
    %4467 = vmatprep.subr.mxu0 0.0
    %4468 = vmatpush1.msra.mxu0 %v4456
    %4469 = vmatprep.subr.mxu0 0.0
    %4470 = vmatpush1.msra.mxu0 0.0
    %4471 = vmatprep.subr.mxu0 0.0
    %4472 = vmatpush1.msra.mxu0 0.0
    %4473 = vmatprep.subr.mxu0 0.0
    %4474 = vmatpush1.msra.mxu0 0.0
    %4475 = vmatprep.subr.mxu0 0.0
    %4476 = vmatpush1.msra.mxu0 0.0
    %4477 = vmatprep.subr.mxu0 0.0
    %4478 = vmatpush1.msra.mxu0 0.0
    %4479 = vmatprep.subr.mxu0 0.0
    %4480 = vmatpush1.msra.mxu0 0.0
    %4481 = vmatprep.subr.mxu0 0.0
    %4482 = vmatpush1.msra.mxu0 0.0
    %4483 = vmatprep.subr.mxu0 0.0
    %4484 = vmatpush1.msra.mxu0 0.0
    %4485 = vmatprep.subr.mxu0 0.0
    %4486 = vmatpush1.msra.mxu0 0.0
    %4487 = vmatprep.subr.mxu0 0.0
    %4488 = vmatpush1.msra.mxu0 0.0
    %4489 = vmatprep.subr.mxu0 0.0
    %4490 = vmatpush1.msra.mxu0 0.0
    %4491 = vmatprep.subr.mxu0 0.0
    %4492 = vmatpush1.msra.mxu0 0.0
    %4493 = vmatprep.subr.mxu0 0.0
    %4494 = vmatpush1.msra.mxu0 0.0
    %4495 = vmatprep.subr.mxu0 0.0
    %4496 = vmatpush1.msra.mxu0 0.0
    %4497 = vmatprep.subr.mxu0 0.0
    %4498 = vmatpush1.msra.mxu0 0.0
    %4499 = vmatprep.subr.mxu0 0.0
    %4500 = vmatpush1.msra.mxu0 0.0
    %4501 = vmatprep.subr.mxu0 0.0
    %4502 = vmatpush1.msra.mxu0 0.0
    %4503 = vmatprep.subr.mxu0 0.0
    %4504 = vmatpush1.msra.mxu0 0.0
    %4505 = vmatprep.subr.mxu0 0.0
    %4506 = vmatpush1.msra.mxu0 0.0
    %4507 = vmatprep.subr.mxu0 0.0
    %4508 = vmatpush1.msra.mxu0 0.0
    %4509 = vmatprep.subr.mxu0 0.0
    %4510 = vmatpush1.msra.mxu0 0.0
    %4511 = vmatprep.subr.mxu0 0.0
    %4512 = vmatpush1.msra.mxu0 0.0
    %4513 = vmatprep.subr.mxu0 0.0
    %4514 = vmatpush1.msra.mxu0 0.0
    %4515 = vmatprep.subr.mxu0 0.0
    %4516 = vmatpush1.msra.mxu0 0.0
    %4517 = vmatprep.subr.mxu0 0.0
    %4518 = vmatpush1.msra.mxu0 0.0
    %4519 = vmatprep.subr.mxu0 0.0
    %4520 = vmatpush1.msra.mxu0 0.0
    %4521 = vmatprep.subr.mxu0 0.0
    %4522 = vmatpush1.msra.mxu0 0.0
    %4523 = vmatprep.subr.mxu0 0.0
    %4524 = vmatpush1.msra.mxu0 0.0
    %4525 = vmatprep.subr.mxu0 0.0
    %4526 = vmatpush1.msra.mxu0 0.0
    %4527 = vmatprep.subr.mxu0 0.0
    %4528 = vmatpush1.msra.mxu0 0.0
    %4529 = vmatprep.mubr.f32.mxu0 0.0
    %4530 = vmatmul.mubr.f32.gmra.mrb[0].mxu0 %v4460
    %v4531 = vpop.f32.mrb[0].mxu0
    %v4532 = vadd.f32 0.0, %v4531
    %v4533 = vpop.f32.mrb[0].mxu0
    %4534 = vmatprep.mubr.f32.mxu0 0.0
    %4535 = vmatmul.mubr.f32.gmra.mrb[0].mxu0 %v4463
    %v4536 = vpop.f32.mrb[0].mxu0
    %v4537 = vadd.f32 0.0, %v4536
    %v4538 = vpop.f32.mrb[0].mxu0
    %4539 = vdwg.mxu0
    %4544 = vrot.lane.b32.xlu0 %v3637, 8
    %v4545 = vpop.permute.xlu0 %4544
    %4546 = vrot.lane.b32.xlu0 %v3642, 8
    %v4547 = vpop.permute.xlu0 %4546
    %4548 = vrot.lane.b32.xlu0 %v3724, 8
    %v4549 = vpop.permute.xlu0 %4548
    %4550 = vrot.lane.b32.xlu0 %v3729, 8
    %v4551 = vpop.permute.xlu0 %4550
    %4560 = vrot.lane.b32.xlu0 %v4041, 16
    %v4561 = vpop.permute.xlu0 %4560
    %4562 = vrot.lane.b32.xlu0 %v4046, 16
    %v4563 = vpop.permute.xlu0 %4562
    %4564 = vrot.lane.b32.xlu0 %v4128, 16
    %v4565 = vpop.permute.xlu0 %4564
    %4566 = vrot.lane.b32.xlu0 %v4133, 16
    %v4567 = vpop.permute.xlu0 %4566
    %4576 = vrot.lane.b32.xlu0 %v4445, 24
    %v4577 = vpop.permute.xlu0 %4576
    %4578 = vrot.lane.b32.xlu0 %v4450, 24
    %v4579 = vpop.permute.xlu0 %4578
    %4580 = vrot.lane.b32.xlu0 %v4532, 24
    %v4581 = vpop.permute.xlu0 %4580
    %4582 = vrot.lane.b32.xlu0 %v4537, 24
    %v4583 = vpop.permute.xlu0 %4582
    %v4588 = vsel %vm693, %v3233, %v4545
    %v4589 = vsel %vm693, %v3238, %v4547
    %v4590 = vsel %vm693, %v3320, %v4549
    %v4591 = vsel %vm693, %v3325, %v4551
    %v4592 = vsel %vm870, %v4588, %v4561
    %v4593 = vsel %vm870, %v4589, %v4563
    %v4594 = vsel %vm870, %v4590, %v4565
    %v4595 = vsel %vm870, %v4591, %v4567
    %v4596 = vsel %vm2357, %v4592, %v4577
    %v4597 = vsel %vm2357, %v4593, %v4579
    %v4598 = vsel %vm2357, %v4594, %v4581
    %v4599 = vsel %vm2357, %v4595, %v4583
    %v4600 = vpack.c.bf16 %v4597, %v4596
    %v4601 = vpack.c.bf16 %v4599, %v4598
    %s4602 = scalar_lea.vmem %s14, 16
    %v4603 = vld [vmem:[%s4602] sm:$0xf]
    %v4604 = vld [vmem:[%s4602 + $0x4] sm:$0xf]
    %v4605 = vld [vmem:[%s4602 + $0x8] sm:$0xf]
    %v4606 = vld [vmem:[%s4602 + $0xc] sm:$0xf]
    %v4611 = vunpack.c.l.b16 %v4603
    %v4612 = vunpack.c.l.b16 %v4604
    %v4613 = vunpack.c.l.b16 %v4605
    %v4614 = vunpack.c.l.b16 %v4606
    %v4615 = vpack.c.b16 %v4612, %v4611
    %v4616 = vpack.c.b16 %v4614, %v4613
    %v4620 = vsel %vm200, %v4600, 0
    %v4623 = vsel %vm200, %v4601, 0
    %4625 = vmatprep.subr.bf16.mxu0 0
    %4626 = vmatpush1.bf16.msra.mxu0 %v4615
    %4627 = vmatprep.subr.bf16.mxu0 0
    %4628 = vmatpush1.bf16.msra.mxu0 %v4616
    %4629 = vmatprep.subr.bf16.mxu0 0
    %4630 = vmatpush1.bf16.msra.mxu0 0
    %4631 = vmatprep.subr.bf16.mxu0 0
    %4632 = vmatpush1.bf16.msra.mxu0 0
    %4633 = vmatprep.subr.bf16.mxu0 0
    %4634 = vmatpush1.bf16.msra.mxu0 0
    %4635 = vmatprep.subr.bf16.mxu0 0
    %4636 = vmatpush1.bf16.msra.mxu0 0
    %4637 = vmatprep.subr.bf16.mxu0 0
    %4638 = vmatpush1.bf16.msra.mxu0 0
    %4639 = vmatprep.subr.bf16.mxu0 0
    %4640 = vmatpush1.bf16.msra.mxu0 0
    %4641 = vmatprep.subr.bf16.mxu0 0
    %4642 = vmatpush1.bf16.msra.mxu0 0
    %4643 = vmatprep.subr.bf16.mxu0 0
    %4644 = vmatpush1.bf16.msra.mxu0 0
    %4645 = vmatprep.subr.bf16.mxu0 0
    %4646 = vmatpush1.bf16.msra.mxu0 0
    %4647 = vmatprep.subr.bf16.mxu0 0
    %4648 = vmatpush1.bf16.msra.mxu0 0
    %4649 = vmatprep.subr.bf16.mxu0 0
    %4650 = vmatpush1.bf16.msra.mxu0 0
    %4651 = vmatprep.subr.bf16.mxu0 0
    %4652 = vmatpush1.bf16.msra.mxu0 0
    %4653 = vmatprep.subr.bf16.mxu0 0
    %4654 = vmatpush1.bf16.msra.mxu0 0
    %4655 = vmatprep.subr.bf16.mxu0 0
    %4656 = vmatpush1.bf16.msra.mxu0 0
    %4657 = vmatprep.mubr.bf16.mxu0 0
    %4658 = vmatmul.mubr.bf16.gmra.mrb[0].mxu0 %v4620
    %v4659 = vpop.f32.mrb[0].mxu0
    %v4660 = vadd.f32 0.0, %v4659
    %v4661 = vpop.f32.mrb[0].mxu0
    %v4662 = vpop.f32.mrb[0].mxu0
    %v4663 = vadd.f32 0.0, %v4662
    %v4664 = vpop.f32.mrb[0].mxu0
    %4665 = vmatprep.mubr.bf16.mxu0 0
    %4666 = vmatmul.mubr.bf16.gmra.mrb[0].mxu0 %v4623
    %v4667 = vpop.f32.mrb[0].mxu0
    %v4668 = vadd.f32 0.0, %v4667
    %v4669 = vpop.f32.mrb[0].mxu0
    %v4670 = vpop.f32.mrb[0].mxu0
    %v4671 = vadd.f32 0.0, %v4670
    %v4672 = vpop.f32.mrb[0].mxu0
    %4673 = vdwg.mxu0
    %v4674 = vadd.f32 %v2766, %v4660
    %v4675 = vadd.f32 %v2767, %v4663
    %v4676 = vadd.f32 %v2768, %v4668
    %v4677 = vadd.f32 %v2769, %v4671
    %s4678 = scalar_lea.vmem %s15, 1
    %v4679 = vld [vmem:[%s4678] sm:$0x1]
    %v4681 = vlaneseq
    %v4682 = vshrl.u32 %v4681, 7
    %v4683 = vsub.s32 0, %v4682
    %v4684 = vrot.slane %v4679, %v4683
    %v4686 = vadd.f32 %v4674, %v4684
    %v4687 = vadd.f32 %v4675, %v4684
    %v4688 = vadd.f32 %v4676, %v4684
    %v4689 = vadd.f32 %v4677, %v4684
    %s4690 = scalar_lea.vmem %s10, 1
    %v4691 = vld [vmem:[%s4690] sm:$0x1]
    %s4692 = scalar_lea.vmem %s11, 1
    %v4693 = vld [vmem:[%s4692] sm:$0x1]
    %v4694 = vsel %vm200, %v4686, 0.0
    %4695 = vadd.xlane.f32.xlu0 %v4694
    %v4696 = vpop.xlane.xlu0 %4695
    %v4697 = vsel %vm200, %v4687, 0.0
    %4698 = vadd.xlane.f32.xlu0 %v4697
    %v4699 = vpop.xlane.xlu0 %4698
    %v4700 = vsel %vm200, %v4688, 0.0
    %4701 = vadd.xlane.f32.xlu0 %v4700
    %v4702 = vpop.xlane.xlu0 %4701
    %v4703 = vsel %vm200, %v4689, 0.0
    %4704 = vadd.xlane.f32.xlu0 %v4703
    %v4705 = vpop.xlane.xlu0 %4704
    %v4706 = vmul.f32 %v4696, %v546
    %v4707 = vmul.f32 %v4699, %v546
    %v4708 = vmul.f32 %v4702, %v546
    %v4709 = vmul.f32 %v4705, %v546
    %v4710 = vsub.f32 %v4686, %v4706
    %v4711 = vsub.f32 %v4687, %v4707
    %v4712 = vsub.f32 %v4688, %v4708
    %v4713 = vsub.f32 %v4689, %v4709
    %v4714 = vmul.f32 %v4710, %v4710
    %v4715 = vmul.f32 %v4711, %v4711
    %v4716 = vmul.f32 %v4712, %v4712
    %v4717 = vmul.f32 %v4713, %v4713
    %v4718 = vsel %vm200, %v4714, 0.0
    %4719 = vadd.xlane.f32.xlu0 %v4718
    %v4720 = vpop.xlane.xlu0 %4719
    %v4721 = vsel %vm200, %v4715, 0.0
    %4722 = vadd.xlane.f32.xlu0 %v4721
    %v4723 = vpop.xlane.xlu0 %4722
    %v4724 = vsel %vm200, %v4716, 0.0
    %4725 = vadd.xlane.f32.xlu0 %v4724
    %v4726 = vpop.xlane.xlu0 %4725
    %v4727 = vsel %vm200, %v4717, 0.0
    %4728 = vadd.xlane.f32.xlu0 %v4727
    %v4729 = vpop.xlane.xlu0 %4728
    %v4730 = vmul.f32 %v4720, %v546
    %v4731 = vmul.f32 %v4723, %v546
    %v4732 = vmul.f32 %v4726, %v546
    %v4733 = vmul.f32 %v4729, %v546
    %v4734 = vadd.f32 %v4730, 1e-05
    %v4735 = vadd.f32 %v4731, 1e-05
    %v4736 = vadd.f32 %v4732, 1e-05
    %v4737 = vadd.f32 %v4733, 1e-05
    %v4738 = vrsqrt.pop %v4734
    %v4739 = vrsqrt.pop %v4735
    %v4740 = vrsqrt.pop %v4736
    %v4741 = vrsqrt.pop %v4737
    %v4742 = vmul.f32 %v4710, %v4738
    %v4743 = vmul.f32 %v4711, %v4739
    %v4744 = vmul.f32 %v4712, %v4740
    %v4745 = vmul.f32 %v4713, %v4741
    %v4747 = vlaneseq
    %v4748 = vshrl.u32 %v4747, 7
    %v4749 = vsub.s32 0, %v4748
    %v4750 = vrot.slane %v4691, %v4749
    %v4752 = vmul.f32 %v4742, %v4750
    %v4753 = vmul.f32 %v4743, %v4750
    %v4754 = vmul.f32 %v4744, %v4750
    %v4755 = vmul.f32 %v4745, %v4750
    %v4757 = vlaneseq
    %v4758 = vshrl.u32 %v4757, 7
    %v4759 = vsub.s32 0, %v4758
    %v4760 = vrot.slane %v4693, %v4759
    %v4762 = vadd.f32 %v4752, %v4760
    %v4763 = vadd.f32 %v4753, %v4760
    %v4764 = vadd.f32 %v4754, %v4760
    %v4765 = vadd.f32 %v4755, %v4760
    %v4766 = vpack.c.bf16 %v4763, %v4762
    %v4767 = vpack.c.bf16 %v4765, %v4764
    %s4768 = scalar_lea.vmem %s16, 16
    %v4769 = vld [vmem:[%s4768] sm:$0xf]
    %v4770 = vld [vmem:[%s4768 + $0x4] sm:$0xf]
    %v4771 = vld [vmem:[%s4768 + $0x8] sm:$0xf]
    %v4772 = vld [vmem:[%s4768 + $0xc] sm:$0xf]
    %s4773 = scalar_lea.vmem %s17, 1
    %v4774 = vld [vmem:[%s4773] sm:$0x1]
    %v4776 = vlaneseq
    %v4777 = vshrl.u32 %v4776, 7
    %v4778 = vsub.s32 0, %v4777
    %v4779 = vrot.slane %v4774, %v4778
    %v4785 = vunpack.c.l.b16 %v4769
    %v4786 = vunpack.c.l.b16 %v4770
    %v4787 = vunpack.c.l.b16 %v4771
    %v4788 = vunpack.c.l.b16 %v4772
    %v4789 = vpack.c.b16 %v4786, %v4785
    %v4790 = vpack.c.b16 %v4788, %v4787
    %v4794 = vsel %vm200, %v4766, 0
    %v4797 = vsel %vm200, %v4767, 0
    %4799 = vmatprep.subr.bf16.mxu0 0
    %4800 = vmatpush1.bf16.msra.mxu0 %v4789
    %4801 = vmatprep.subr.bf16.mxu0 0
    %4802 = vmatpush1.bf16.msra.mxu0 %v4790
    %4803 = vmatprep.subr.bf16.mxu0 0
    %4804 = vmatpush1.bf16.msra.mxu0 0
    %4805 = vmatprep.subr.bf16.mxu0 0
    %4806 = vmatpush1.bf16.msra.mxu0 0
    %4807 = vmatprep.subr.bf16.mxu0 0
    %4808 = vmatpush1.bf16.msra.mxu0 0
    %4809 = vmatprep.subr.bf16.mxu0 0
    %4810 = vmatpush1.bf16.msra.mxu0 0
    %4811 = vmatprep.subr.bf16.mxu0 0
    %4812 = vmatpush1.bf16.msra.mxu0 0
    %4813 = vmatprep.subr.bf16.mxu0 0
    %4814 = vmatpush1.bf16.msra.mxu0 0
    %4815 = vmatprep.subr.bf16.mxu0 0
    %4816 = vmatpush1.bf16.msra.mxu0 0
    %4817 = vmatprep.subr.bf16.mxu0 0
    %4818 = vmatpush1.bf16.msra.mxu0 0
    %4819 = vmatprep.subr.bf16.mxu0 0
    %4820 = vmatpush1.bf16.msra.mxu0 0
    %4821 = vmatprep.subr.bf16.mxu0 0
    %4822 = vmatpush1.bf16.msra.mxu0 0
    %4823 = vmatprep.subr.bf16.mxu0 0
    %4824 = vmatpush1.bf16.msra.mxu0 0
    %4825 = vmatprep.subr.bf16.mxu0 0
    %4826 = vmatpush1.bf16.msra.mxu0 0
    %4827 = vmatprep.subr.bf16.mxu0 0
    %4828 = vmatpush1.bf16.msra.mxu0 0
    %4829 = vmatprep.subr.bf16.mxu0 0
    %4830 = vmatpush1.bf16.msra.mxu0 0
    %4831 = vmatprep.mubr.bf16.mxu0 0
    %4832 = vmatmul.mubr.bf16.gmra.mrb[0].mxu0 %v4794
    %v4833 = vpop.f32.mrb[0].mxu0
    %v4834 = vadd.f32 %v4779, %v4833
    %v4835 = vpop.f32.mrb[0].mxu0
    %v4836 = vpop.f32.mrb[0].mxu0
    %v4837 = vadd.f32 %v4779, %v4836
    %v4838 = vpop.f32.mrb[0].mxu0
    %4839 = vmatprep.mubr.bf16.mxu0 0
    %4840 = vmatmul.mubr.bf16.gmra.mrb[0].mxu0 %v4797
    %v4841 = vpop.f32.mrb[0].mxu0
    %v4842 = vadd.f32 %v4779, %v4841
    %v4843 = vpop.f32.mrb[0].mxu0
    %v4844 = vpop.f32.mrb[0].mxu0
    %v4845 = vadd.f32 %v4779, %v4844
    %v4846 = vpop.f32.mrb[0].mxu0
    %4847 = vdwg.mxu0
    %v4848 = vmul.f32 %v4834, 0.5
    %v4849 = vmul.f32 %v4837, 0.5
    %v4850 = vmul.f32 %v4842, 0.5
    %v4851 = vmul.f32 %v4845, 0.5
    %v4852 = vmul.f32 %v4834, 0.044715
    %v4853 = vmul.f32 %v4837, 0.044715
    %v4854 = vmul.f32 %v4842, 0.044715
    %v4855 = vmul.f32 %v4845, 0.044715
    %v4856 = vmul.f32 %v4852, %v4834
    %v4857 = vmul.f32 %v4853, %v4837
    %v4858 = vmul.f32 %v4854, %v4842
    %v4859 = vmul.f32 %v4855, %v4845
    %v4860 = vmul.f32 %v4856, %v4834
    %v4861 = vmul.f32 %v4857, %v4837
    %v4862 = vmul.f32 %v4858, %v4842
    %v4863 = vmul.f32 %v4859, %v4845
    %v4864 = vadd.f32 %v4834, %v4860
    %v4865 = vadd.f32 %v4837, %v4861
    %v4866 = vadd.f32 %v4842, %v4862
    %v4867 = vadd.f32 %v4845, %v4863
    %v4868 = vmul.f32 %v4864, 0.7978846
    %v4869 = vmul.f32 %v4865, 0.7978846
    %v4870 = vmul.f32 %v4866, 0.7978846
    %v4871 = vmul.f32 %v4867, 0.7978846
    %v4872 = vtanh.pop %v4868
    %v4873 = vtanh.pop %v4869
    %v4874 = vtanh.pop %v4870
    %v4875 = vtanh.pop %v4871
    %v4876 = vadd.f32 %v4872, 1.0
    %v4877 = vadd.f32 %v4873, 1.0
    %v4878 = vadd.f32 %v4874, 1.0
    %v4879 = vadd.f32 %v4875, 1.0
    %v4880 = vmul.f32 %v4848, %v4876
    %v4881 = vmul.f32 %v4849, %v4877
    %v4882 = vmul.f32 %v4850, %v4878
    %v4883 = vmul.f32 %v4851, %v4879
    %v4884 = vpack.c.bf16 %v4881, %v4880
    %v4885 = vpack.c.bf16 %v4883, %v4882
    %s4886 = scalar_lea.vmem %s18, 64
    %v4887 = vld [vmem:[%s4886] sm:$0xf]
    %v4888 = vld [vmem:[%s4886 + $0x4] sm:$0xf]
    %v4889 = vld [vmem:[%s4886 + $0x8] sm:$0xf]
    %v4890 = vld [vmem:[%s4886 + $0xc] sm:$0xf]
    %v4891 = vld [vmem:[%s4886 + $0x10] sm:$0xf]
    %v4892 = vld [vmem:[%s4886 + $0x14] sm:$0xf]
    %v4893 = vld [vmem:[%s4886 + $0x18] sm:$0xf]
    %v4894 = vld [vmem:[%s4886 + $0x1c] sm:$0xf]
    %v4895 = vld [vmem:[%s4886 + $0x20] sm:$0xf]
    %v4896 = vld [vmem:[%s4886 + $0x24] sm:$0xf]
    %v4897 = vld [vmem:[%s4886 + $0x28] sm:$0xf]
    %v4898 = vld [vmem:[%s4886 + $0x2c] sm:$0xf]
    %v4899 = vld [vmem:[%s4886 + $0x30] sm:$0xf]
    %v4900 = vld [vmem:[%s4886 + $0x34] sm:$0xf]
    %v4901 = vld [vmem:[%s4886 + $0x38] sm:$0xf]
    %v4902 = vld [vmem:[%s4886 + $0x3c] sm:$0xf]
    %v4919 = vunpack.c.l.b16 %v4887
    %v4920 = vunpack.c.l.b16 %v4888
    %v4921 = vunpack.c.l.b16 %v4889
    %v4922 = vunpack.c.l.b16 %v4890
    %v4923 = vunpack.c.l.b16 %v4891
    %v4924 = vunpack.c.l.b16 %v4892
    %v4925 = vunpack.c.l.b16 %v4893
    %v4926 = vunpack.c.l.b16 %v4894
    %v4927 = vunpack.c.l.b16 %v4895
    %v4928 = vunpack.c.l.b16 %v4896
    %v4929 = vunpack.c.l.b16 %v4897
    %v4930 = vunpack.c.l.b16 %v4898
    %v4931 = vunpack.c.l.b16 %v4899
    %v4932 = vunpack.c.l.b16 %v4900
    %v4933 = vunpack.c.l.b16 %v4901
    %v4934 = vunpack.c.l.b16 %v4902
    %v4935 = vpack.c.b16 %v4920, %v4919
    %v4936 = vpack.c.b16 %v4922, %v4921
    %v4937 = vpack.c.b16 %v4924, %v4923
    %v4938 = vpack.c.b16 %v4926, %v4925
    %v4939 = vpack.c.b16 %v4928, %v4927
    %v4940 = vpack.c.b16 %v4930, %v4929
    %v4941 = vpack.c.b16 %v4932, %v4931
    %v4942 = vpack.c.b16 %v4934, %v4933
    %4951 = vmatprep.subr.bf16.mxu0 0
    %4952 = vmatpush1.bf16.msra.mxu0 %v4935
    %4953 = vmatprep.subr.bf16.mxu0 0
    %4954 = vmatpush1.bf16.msra.mxu0 %v4936
    %4955 = vmatprep.subr.bf16.mxu0 0
    %4956 = vmatpush1.bf16.msra.mxu0 %v4937
    %4957 = vmatprep.subr.bf16.mxu0 0
    %4958 = vmatpush1.bf16.msra.mxu0 %v4938
    %4959 = vmatprep.subr.bf16.mxu0 0
    %4960 = vmatpush1.bf16.msra.mxu0 %v4939
    %4961 = vmatprep.subr.bf16.mxu0 0
    %4962 = vmatpush1.bf16.msra.mxu0 %v4940
    %4963 = vmatprep.subr.bf16.mxu0 0
    %4964 = vmatpush1.bf16.msra.mxu0 %v4941
    %4965 = vmatprep.subr.bf16.mxu0 0
    %4966 = vmatpush1.bf16.msra.mxu0 %v4942
    %4967 = vmatprep.subr.bf16.mxu0 0
    %4968 = vmatpush1.bf16.msra.mxu0 0
    %4969 = vmatprep.subr.bf16.mxu0 0
    %4970 = vmatpush1.bf16.msra.mxu0 0
    %4971 = vmatprep.subr.bf16.mxu0 0
    %4972 = vmatpush1.bf16.msra.mxu0 0
    %4973 = vmatprep.subr.bf16.mxu0 0
    %4974 = vmatpush1.bf16.msra.mxu0 0
    %4975 = vmatprep.subr.bf16.mxu0 0
    %4976 = vmatpush1.bf16.msra.mxu0 0
    %4977 = vmatprep.subr.bf16.mxu0 0
    %4978 = vmatpush1.bf16.msra.mxu0 0
    %4979 = vmatprep.subr.bf16.mxu0 0
    %4980 = vmatpush1.bf16.msra.mxu0 0
    %4981 = vmatprep.subr.bf16.mxu0 0
    %4982 = vmatpush1.bf16.msra.mxu0 0
    %4983 = vmatprep.mubr.bf16.mxu0 0
    %4984 = vmatmul.mubr.bf16.gmra.mrb[0].mxu0 %v4884
    %v4985 = vpop.f32.mrb[0].mxu0
    %v4986 = vadd.f32 0.0, %v4985
    %v4987 = vpop.f32.mrb[0].mxu0
    %v4988 = vpop.f32.mrb[0].mxu0
    %v4989 = vadd.f32 0.0, %v4988
    %v4990 = vpop.f32.mrb[0].mxu0
    %4991 = vmatprep.mubr.bf16.mxu0 0
    %4992 = vmatmul.mubr.bf16.gmra.mrb[0].mxu0 %v4885
    %v4993 = vpop.f32.mrb[0].mxu0
    %v4994 = vadd.f32 0.0, %v4993
    %v4995 = vpop.f32.mrb[0].mxu0
    %v4996 = vpop.f32.mrb[0].mxu0
    %v4997 = vadd.f32 0.0, %v4996
    %v4998 = vpop.f32.mrb[0].mxu0
    %4999 = vdwg.mxu0
    %v5000 = vadd.f32 %v4686, %v4986
    %v5001 = vadd.f32 %v4687, %v4989
    %v5002 = vadd.f32 %v4688, %v4994
    %v5003 = vadd.f32 %v4689, %v4997
    %s5004 = scalar_lea.vmem %s19, 1
    %v5005 = vld [vmem:[%s5004] sm:$0x1]
    %v5007 = vlaneseq
    %v5008 = vshrl.u32 %v5007, 7
    %v5009 = vsub.s32 0, %v5008
    %v5010 = vrot.slane %v5005, %v5009
    %v5012 = vadd.f32 %v5000, %v5010
    %v5013 = vadd.f32 %v5001, %v5010
    %v5014 = vadd.f32 %v5002, %v5010
    %v5015 = vadd.f32 %v5003, %v5010
    %v5016 = vld [vmem:[%s20] sm:$0x1]
    %v5017 = vld [vmem:[%s21] sm:$0x1]
    %v5018 = vsel %vm200, %v5012, 0.0
    %5019 = vadd.xlane.f32.xlu0 %v5018
    %v5020 = vpop.xlane.xlu0 %5019
    %v5021 = vsel %vm200, %v5013, 0.0
    %5022 = vadd.xlane.f32.xlu0 %v5021
    %v5023 = vpop.xlane.xlu0 %5022
    %v5024 = vsel %vm200, %v5014, 0.0
    %5025 = vadd.xlane.f32.xlu0 %v5024
    %v5026 = vpop.xlane.xlu0 %5025
    %v5027 = vsel %vm200, %v5015, 0.0
    %5028 = vadd.xlane.f32.xlu0 %v5027
    %v5029 = vpop.xlane.xlu0 %5028
    %v5030 = vmul.f32 %v5020, %v546
    %v5031 = vmul.f32 %v5023, %v546
    %v5032 = vmul.f32 %v5026, %v546
    %v5033 = vmul.f32 %v5029, %v546
    %v5034 = vsub.f32 %v5012, %v5030
    %v5035 = vsub.f32 %v5013, %v5031
    %v5036 = vsub.f32 %v5014, %v5032
    %v5037 = vsub.f32 %v5015, %v5033
    %v5038 = vmul.f32 %v5034, %v5034
    %v5039 = vmul.f32 %v5035, %v5035
    %v5040 = vmul.f32 %v5036, %v5036
    %v5041 = vmul.f32 %v5037, %v5037
    %v5042 = vsel %vm200, %v5038, 0.0
    %5043 = vadd.xlane.f32.xlu0 %v5042
    %v5044 = vpop.xlane.xlu0 %5043
    %v5045 = vsel %vm200, %v5039, 0.0
    %5046 = vadd.xlane.f32.xlu0 %v5045
    %v5047 = vpop.xlane.xlu0 %5046
    %v5048 = vsel %vm200, %v5040, 0.0
    %5049 = vadd.xlane.f32.xlu0 %v5048
    %v5050 = vpop.xlane.xlu0 %5049
    %v5051 = vsel %vm200, %v5041, 0.0
    %5052 = vadd.xlane.f32.xlu0 %v5051
    %v5053 = vpop.xlane.xlu0 %5052
    %v5054 = vmul.f32 %v5044, %v546
    %v5055 = vmul.f32 %v5047, %v546
    %v5056 = vmul.f32 %v5050, %v546
    %v5057 = vmul.f32 %v5053, %v546
    %v5058 = vadd.f32 %v5054, 1e-05
    %v5059 = vadd.f32 %v5055, 1e-05
    %v5060 = vadd.f32 %v5056, 1e-05
    %v5061 = vadd.f32 %v5057, 1e-05
    %v5062 = vrsqrt.pop %v5058
    %v5063 = vrsqrt.pop %v5059
    %v5064 = vrsqrt.pop %v5060
    %v5065 = vrsqrt.pop %v5061
    %v5066 = vmul.f32 %v5034, %v5062
    %v5067 = vmul.f32 %v5035, %v5063
    %v5068 = vmul.f32 %v5036, %v5064
    %v5069 = vmul.f32 %v5037, %v5065
    %v5071 = vlaneseq
    %v5072 = vshrl.u32 %v5071, 7
    %v5073 = vsub.s32 0, %v5072
    %v5074 = vrot.slane %v5016, %v5073
    %v5076 = vmul.f32 %v5066, %v5074
    %v5077 = vmul.f32 %v5067, %v5074
    %v5078 = vmul.f32 %v5068, %v5074
    %v5079 = vmul.f32 %v5069, %v5074
    %v5081 = vlaneseq
    %v5082 = vshrl.u32 %v5081, 7
    %v5083 = vsub.s32 0, %v5082
    %v5084 = vrot.slane %v5017, %v5083
    %v5086 = vadd.f32 %v5076, %v5084
    %v5087 = vadd.f32 %v5077, %v5084
    %v5088 = vadd.f32 %v5078, %v5084
    %v5089 = vadd.f32 %v5079, %v5084
    %v5090 = vpack.c.bf16 %v5087, %v5086
    %v5091 = vpack.c.bf16 %v5089, %v5088
    %v5092 = vld [vmem:[%s22] sm:$0xf]
    %v5093 = vld [vmem:[%s22 + $0x4] sm:$0xf]
    %v5094 = vld [vmem:[%s22 + $0x8] sm:$0xf]
    %v5095 = vld [vmem:[%s22 + $0xc] sm:$0xf]
    %v5096 = vld [vmem:[%s23] sm:$0x1]
    %v5098 = vlaneseq
    %v5099 = vshrl.u32 %v5098, 7
    %v5100 = vsub.s32 0, %v5099
    %v5101 = vrot.slane %v5096, %v5100
    %v5107 = vunpack.c.l.b16 %v5092
    %v5108 = vunpack.c.l.b16 %v5093
    %v5109 = vunpack.c.l.b16 %v5094
    %v5110 = vunpack.c.l.b16 %v5095
    %v5111 = vpack.c.b16 %v5108, %v5107
    %v5112 = vpack.c.b16 %v5110, %v5109
    %v5116 = vsel %vm200, %v5090, 0
    %v5119 = vsel %vm200, %v5091, 0
    %5121 = vmatprep.subr.bf16.mxu0 0
    %5122 = vmatpush1.bf16.msra.mxu0 %v5111
    %5123 = vmatprep.subr.bf16.mxu0 0
    %5124 = vmatpush1.bf16.msra.mxu0 %v5112
    %5125 = vmatprep.subr.bf16.mxu0 0
    %5126 = vmatpush1.bf16.msra.mxu0 0
    %5127 = vmatprep.subr.bf16.mxu0 0
    %5128 = vmatpush1.bf16.msra.mxu0 0
    %5129 = vmatprep.subr.bf16.mxu0 0
    %5130 = vmatpush1.bf16.msra.mxu0 0
    %5131 = vmatprep.subr.bf16.mxu0 0
    %5132 = vmatpush1.bf16.msra.mxu0 0
    %5133 = vmatprep.subr.bf16.mxu0 0
    %5134 = vmatpush1.bf16.msra.mxu0 0
    %5135 = vmatprep.subr.bf16.mxu0 0
    %5136 = vmatpush1.bf16.msra.mxu0 0
    %5137 = vmatprep.subr.bf16.mxu0 0
    %5138 = vmatpush1.bf16.msra.mxu0 0
    %5139 = vmatprep.subr.bf16.mxu0 0
    %5140 = vmatpush1.bf16.msra.mxu0 0
    %5141 = vmatprep.subr.bf16.mxu0 0
    %5142 = vmatpush1.bf16.msra.mxu0 0
    %5143 = vmatprep.subr.bf16.mxu0 0
    %5144 = vmatpush1.bf16.msra.mxu0 0
    %5145 = vmatprep.subr.bf16.mxu0 0
    %5146 = vmatpush1.bf16.msra.mxu0 0
    %5147 = vmatprep.subr.bf16.mxu0 0
    %5148 = vmatpush1.bf16.msra.mxu0 0
    %5149 = vmatprep.subr.bf16.mxu0 0
    %5150 = vmatpush1.bf16.msra.mxu0 0
    %5151 = vmatprep.subr.bf16.mxu0 0
    %5152 = vmatpush1.bf16.msra.mxu0 0
    %5153 = vmatprep.mubr.bf16.mxu0 0
    %5154 = vmatmul.mubr.bf16.gmra.mrb[0].mxu0 %v5116
    %v5155 = vpop.f32.mrb[0].mxu0
    %v5156 = vadd.f32 %v5101, %v5155
    %v5157 = vpop.f32.mrb[0].mxu0
    %v5158 = vpop.f32.mrb[0].mxu0
    %v5159 = vadd.f32 %v5101, %v5158
    %v5160 = vpop.f32.mrb[0].mxu0
    %5161 = vmatprep.mubr.bf16.mxu0 0
    %5162 = vmatmul.mubr.bf16.gmra.mrb[0].mxu0 %v5119
    %v5163 = vpop.f32.mrb[0].mxu0
    %v5164 = vadd.f32 %v5101, %v5163
    %v5165 = vpop.f32.mrb[0].mxu0
    %v5166 = vpop.f32.mrb[0].mxu0
    %v5167 = vadd.f32 %v5101, %v5166
    %v5168 = vpop.f32.mrb[0].mxu0
    %5169 = vdwg.mxu0
    %5170 = vst [vmem:[#allocation2] sm:$0xff] %v5156
    %5171 = vst [vmem:[#allocation2 + $0x8] sm:$0xff] %v5159
    %5172 = vst [vmem:[#allocation2 + $0x10] sm:$0xff] %v5164
    %5173 = vst [vmem:[#allocation2 + $0x18] sm:$0xff] %v5167
    // Predicated region
    $region98: #{_lambda_.1} parent=1 // pred_check
      _
    $region99: #{_lambda_.1} parent=1 // pred_check_branch
      %5175 = sbr.rel (0) target = $region101
    $region100: #{_lambda_.1} parent=1 // pred_region
      _
    $region101: #{_lambda_.1} parent=1 // pred_fallthru
      _
    // Predicated region
    $region102: #{_lambda_.1} parent=1 // pred_check
      _
    $region103: #{_lambda_.1} parent=1 // pred_check_branch
      %5177 = sbr.rel (0) target = $region105
    $region104: #{_lambda_.1} parent=1 // pred_region
      %s5179 = ssub.s32 512, 512
      %5180 = vsyncadd [#allocation3], %s5179
      %s5181 = sshll.u32 [#allocation2], 4
      %s5182 = int_to_ptr.vmem [resolvable:$true] %s5181
      %5187 = dma.vmem_to_hbm [thread:$0]  %s5182, 512, %s25, [#allocation3], 128, 128, 8
    $region105: #{_lambda_.1} parent=1 // pred_fallthru
      _
    // Predicated region
    $region106: #{_lambda_.1} parent=1 // pred_check
      _
    $region107: #{_lambda_.1} parent=1 // pred_check_branch
      %5189 = sbr.rel (0) target = $region109
    $region108: #{_lambda_.1} parent=1 // pred_region
      _
    $region109: #{_lambda_.1} parent=1 // pred_fallthru
      _
    // Predicated region
    $region110: #{_lambda_.1} parent=1 // pred_check
      _
    $region111: #{_lambda_.1} parent=1 // pred_check_branch
      %5191 = sbr.rel (0) target = $region113
    $region112: #{_lambda_.1} parent=1 // pred_region
      %5192 = dma.done [#allocation3], 512
    $region113: #{_lambda_.1} parent=1 // pred_fallthru
      _
    %5193 = vsyncpa [#allocation3], 1

</llo_original>
